<compile_context>
chip_gen: v6e
topology: v6e:2x2x1
jax: 0.10.0
libtpu: 0.0.40
codegen_flags: <defaults>
</compile_context>

<pallas_src>
import jax
import jax.numpy as jnp
from jax import lax
from jax.experimental import pallas as pl
from jax.experimental.pallas import tpu as pltpu

# ----- problem sizes (small, consistent with the module) -----
B        = 2                    # batch
S_TGT    = 8                    # target (decoder) sequence length
S_SRC    = 8                    # source (encoder memory) sequence length
D_MODEL  = 32                   # layer.size
N_HEADS  = 4
D_HEAD   = D_MODEL // N_HEADS
D_FF     = 64
N_LAYERS = 2
EPS      = 1e-5
BS_T     = B * S_TGT
BS_S     = B * S_SRC
SCALE    = 1.0 / (D_HEAD ** 0.5)
MXU_DTYPE = jnp.bfloat16        # MXU operand dtype; accumulation is f32.
                                # (set to jnp.float32 for bit-closer numerics)

# 128-lane-aligned segment offsets shared by the weight blob and the bias blob.
SEG          = 128
OFF_SELF_QKV = 0 * SEG          # width 3*D_MODEL = 96
OFF_SELF_O   = 1 * SEG          # width D_MODEL
OFF_SRC_Q    = 2 * SEG          # width D_MODEL
OFF_SRC_KV   = 3 * SEG          # width 2*D_MODEL
OFF_SRC_O    = 4 * SEG          # width D_MODEL
OFF_FF1      = 5 * SEG          # width D_FF
OFF_FF2      = 6 * SEG          # width D_MODEL  (rows 0:D_FF)
N_SEG        = 7
BLOB_W       = N_SEG * SEG      # 896
BLOB_ROWS    = max(D_MODEL, D_FF)  # 64 rows in the weight blob


# ---------------- in-kernel helpers (traced inside the Pallas body) ----------
def _layer_norm(x, g, b):
    # x: (BS_T, D) f32; g, b: (1, D) f32 broadcast at point of use.
    mu = jnp.mean(x, axis=-1, keepdims=True)
    var = jnp.mean((x - mu) ** 2, axis=-1, keepdims=True)
    return (x - mu) * lax.rsqrt(var + EPS) * g + b


def _softmax(s):
    m = jnp.max(s, axis=-1, keepdims=True)
    e = jnp.exp(s - m)
    return e / jnp.sum(e, axis=-1, keepdims=True)


def _attention(q, k, v, bias, w_o, b_o):
    """Batch-folded multi-head attention + single output projection.

    q : (BS_q, D_MODEL) bf16   (SCALE already folded into the Q projection)
    k, v : (BS_kv, D_MODEL) bf16
    bias : (BS_q, BS_kv) f32 additive bias; cross-batch blocks carry -1e9
    w_o : (D_MODEL, D_MODEL) bf16, b_o : (1, D_MODEL) f32
    """
    ctx_heads = []
    for h in range(N_HEADS):
        sl = slice(h * D_HEAD, (h + 1) * D_HEAD)
        scores = jnp.einsum('qd,kd->qk', q[:, sl], k[:, sl],
                            preferred_element_type=jnp.float32) + bias
        p = _softmax(scores)
        ctx_heads.append(jnp.dot(p.astype(MXU_DTYPE), v[:, sl],
                                 preferred_element_type=jnp.float32))
    # lane-pack the heads and do ONE output projection against the full Wo
    ctx = jnp.concatenate(ctx_heads, axis=-1)            # (BS_q, D_MODEL) f32
    return jnp.dot(ctx.astype(MXU_DTYPE), w_o,
                   preferred_element_type=jnp.float32) + b_o


# ------------------------------- Pallas kernel -------------------------------
def decoder_kernel(x_ref, mem_ref, mask_ref, w_ref, p_ref, out_ref):
    x   = x_ref[...]                                     # (BS_T, D) f32
    mem = mem_ref[...]                                   # (BS_S, D) f32

    # host-precomputed additive mask biases (batch-block masked, -1e9 off-diag)
    tgt_bias = mask_ref[0:BS_T, 0:BS_T]                  # (16, 16) f32
    src_bias = mask_ref[0:BS_T, SEG:SEG + BS_S]          # (16, 16) f32

    # --- bf16 weight blob: static 128-lane-aligned slices ---------------------
    w_self_qkv = w_ref[0:D_MODEL, OFF_SELF_QKV:OFF_SELF_QKV + 3 * D_MODEL]
    w_self_o   = w_ref[0:D_MODEL, OFF_SELF_O:OFF_SELF_O + D_MODEL]
    w_src_q    = w_ref[0:D_MODEL, OFF_SRC_Q:OFF_SRC_Q + D_MODEL]
    w_src_kv   = w_ref[0:D_MODEL, OFF_SRC_KV:OFF_SRC_KV + 2 * D_MODEL]
    w_src_o    = w_ref[0:D_MODEL, OFF_SRC_O:OFF_SRC_O + D_MODEL]
    w_ff1      = w_ref[0:D_MODEL, OFF_FF1:OFF_FF1 + D_FF]
    w_ff2      = w_ref[0:D_FF,    OFF_FF2:OFF_FF2 + D_MODEL]

    # --- f32 bias / LayerNorm blob: keep (1, n), broadcast at point of use ----
    b_self_qkv = p_ref[0:1, OFF_SELF_QKV:OFF_SELF_QKV + 3 * D_MODEL]
    b_self_o   = p_ref[0:1, OFF_SELF_O:OFF_SELF_O + D_MODEL]
    b_src_q    = p_ref[0:1, OFF_SRC_Q:OFF_SRC_Q + D_MODEL]
    b_src_kv   = p_ref[0:1, OFF_SRC_KV:OFF_SRC_KV + 2 * D_MODEL]
    b_src_o    = p_ref[0:1, OFF_SRC_O:OFF_SRC_O + D_MODEL]
    b_ff1      = p_ref[0:1, OFF_FF1:OFF_FF1 + D_FF]
    b_ff2      = p_ref[0:1, OFF_FF2:OFF_FF2 + D_MODEL]
    ln_g = [p_ref[1 + i:2 + i, 0:D_MODEL] for i in range(3)]
    ln_b = [p_ref[4 + i:5 + i, 0:D_MODEL] for i in range(3)]

    # --- cross-attention K/V of `memory`: params shared across layers and
    #     memory constant -> compute ONCE outside the layer loop. --------------
    kv = jnp.dot(mem.astype(MXU_DTYPE), w_src_kv,
                 preferred_element_type=jnp.float32) + b_src_kv      # (BS_S,2D)
    kv_b = kv.astype(MXU_DTYPE)
    k_mem = kv_b[:, 0:D_MODEL]
    v_mem = kv_b[:, D_MODEL:2 * D_MODEL]

    # --- layer loop: `[deepcopy(layer)] * num_layers` => SHARED parameters ----
    for _ in range(N_LAYERS):
        # 1) self-attention + add & norm (fused QKV projection)
        proj = jnp.dot(x.astype(MXU_DTYPE), w_self_qkv,
                       preferred_element_type=jnp.float32) + b_self_qkv
        proj_b = proj.astype(MXU_DTYPE)
        sa = _attention(proj_b[:, 0:D_MODEL],
                        proj_b[:, D_MODEL:2 * D_MODEL],
                        proj_b[:, 2 * D_MODEL:3 * D_MODEL],
                        tgt_bias, w_self_o, b_self_o)
        x = _layer_norm(x + sa, ln_g[0], ln_b[0])

        # 2) source (cross) attention + add & norm
        q = jnp.dot(x.astype(MXU_DTYPE), w_src_q,
                    preferred_element_type=jnp.float32) + b_src_q
        ca = _attention(q.astype(MXU_DTYPE), k_mem, v_mem,
                        src_bias, w_src_o, b_src_o)
        x = _layer_norm(x + ca, ln_g[1], ln_b[1])

        # 3) position-wise FFN + add & norm
        h1 = jnp.maximum(
            jnp.dot(x.astype(MXU_DTYPE), w_ff1,
                    preferred_element_type=jnp.float32) + b_ff1, 0.0)
        ff = jnp.dot(h1.astype(MXU_DTYPE), w_ff2,
                     preferred_element_type=jnp.float32) + b_ff2
        x = _layer_norm(x + ff, ln_g[2], ln_b[2])

    # --- final BatchNorm1d(d_model, momentum=None, affine=False) --------------
    # training stats: per-feature mean / biased var over (batch*seq) rows.
    mu = jnp.mean(x, axis=0, keepdims=True)
    var = jnp.mean((x - mu) ** 2, axis=0, keepdims=True)
    out_ref[...] = ((x - mu) * lax.rsqrt(var + EPS)).astype(out_ref.dtype)


# ------------------------------- host wrapper --------------------------------
def _batch_block_bias(mask, batch):
    """(S_q, S_k) float mask (1=attend) -> (B*S_q, B*S_k) additive bias with
    (mask-1)*1e9 on within-batch blocks and -1e9 on cross-batch blocks."""
    s_q, s_k = mask.shape
    bias = (mask - 1.0) * 1e9
    eye = jnp.eye(batch, dtype=jnp.float32)
    full = (eye[:, None, :, None] * bias[None, :, None, :]
            + (1.0 - eye)[:, None, :, None] * (-1e9))
    return full.reshape(batch * s_q, batch * s_k)


def _pad_seg_w(w):    # weight -> one 128-lane segment of the (BLOB_ROWS, ·) blob
    return jnp.pad(w, ((0, BLOB_ROWS - w.shape[0]), (0, SEG - w.shape[1])))


def _pad_seg_b(b):    # (1, n) bias -> one 128-lane segment of row 0
    return jnp.pad(b, ((0, 0), (0, SEG - b.shape[1])))


def composite_decoder(x, memory, src_mask, tgt_mask, params):
    x2d   = x.reshape(BS_T, D_MODEL)
    mem2d = memory.reshape(BS_S, D_MODEL)

    # fold SCALE = 1/sqrt(d_head) into the Q projection (weights AND biases)
    w_self_qkv = params["w_self_qkv"].at[:, :D_MODEL].multiply(SCALE)
    b_self_qkv = params["b_self_qkv"].at[:, :D_MODEL].multiply(SCALE)
    w_src_q = params["w_src_q"] * SCALE
    b_src_q = params["b_src_q"] * SCALE

    # bf16 weight blob (BLOB_ROWS, 896): one 128-lane segment per matrix
    w_blob = jnp.concatenate([
        _pad_seg_w(w_self_qkv), _pad_seg_w(params["w_self_o"]),
        _pad_seg_w(w_src_q), _pad_seg_w(params["w_src_kv"]),
        _pad_seg_w(params["w_src_o"]), _pad_seg_w(params["w_ff1"]),
        _pad_seg_w(params["w_ff2"]),
    ], axis=1).astype(MXU_DTYPE)                               # (64, 896)

    # f32 bias / LayerNorm blob (7, 896): row 0 = biases, rows 1-3 = ln gamma,
    # rows 4-6 = ln beta (lanes 0:32)
    bias_row = jnp.concatenate([
        _pad_seg_b(b_self_qkv), _pad_seg_b(params["b_self_o"]),
        _pad_seg_b(b_src_q), _pad_seg_b(params["b_src_kv"]),
        _pad_seg_b(params["b_src_o"]), _pad_seg_b(params["b_ff1"]),
        _pad_seg_b(params["b_ff2"]),
    ], axis=1)                                                 # (1, 896)
    ln_rows = jnp.pad(
        jnp.concatenate([params["ln_g"], params["ln_b"]], axis=0),
        ((0, 0), (0, BLOB_W - D_MODEL)))                       # (6, 896)
    p_blob = jnp.concatenate([bias_row, ln_rows], axis=0)      # (7, 896)

    # additive mask-bias blob (16, 256): [tgt | pad | src | pad]
    tgt_bias = _batch_block_bias(tgt_mask, B)                  # (16, 16)
    src_bias = _batch_block_bias(src_mask, B)                  # (16, 16)
    mask_blob = jnp.concatenate([
        jnp.pad(tgt_bias, ((0, 0), (0, SEG - BS_T))),
        jnp.pad(src_bias, ((0, 0), (0, SEG - BS_S))),
    ], axis=1)                                                 # (16, 256)

    vmem = pl.BlockSpec(memory_space=pltpu.MemorySpace.VMEM)
    out2d = pl.pallas_call(
        decoder_kernel,
        out_shape=jax.ShapeDtypeStruct((BS_T, D_MODEL), jnp.float32),
        in_specs=[vmem] * 5,
        out_specs=vmem,
    )(x2d, mem2d, mask_blob, w_blob, p_blob)
    return out2d.reshape(B, S_TGT, D_MODEL)


# --------------------------- deterministic params ----------------------------
def init_params(key):
    ks = jax.random.split(key, 14)
    s = 0.05
    return {
        # self-attention: fused [Wq|Wk|Wv] stored (in, out), plus Wo
        "w_self_qkv": s * jax.random.normal(ks[0], (D_MODEL, 3 * D_MODEL), jnp.float32),
        "b_self_qkv": s * jax.random.normal(ks[1], (1, 3 * D_MODEL), jnp.float32),
        "w_self_o":   s * jax.random.normal(ks[2], (D_MODEL, D_MODEL), jnp.float32),
        "b_self_o":   s * jax.random.normal(ks[3], (1, D_MODEL), jnp.float32),
        # source (cross) attention: Wq separate, fused [Wk|Wv], plus Wo
        "w_src_q":    s * jax.random.normal(ks[4], (D_MODEL, D_MODEL), jnp.float32),
        "b_src_q":    s * jax.random.normal(ks[5], (1, D_MODEL), jnp.float32),
        "w_src_kv":   s * jax.random.normal(ks[6], (D_MODEL, 2 * D_MODEL), jnp.float32),
        "b_src_kv":   s * jax.random.normal(ks[7], (1, 2 * D_MODEL), jnp.float32),
        "w_src_o":    s * jax.random.normal(ks[8], (D_MODEL, D_MODEL), jnp.float32),
        "b_src_o":    s * jax.random.normal(ks[9], (1, D_MODEL), jnp.float32),
        # position-wise FFN
        "w_ff1":      s * jax.random.normal(ks[10], (D_MODEL, D_FF), jnp.float32),
        "b_ff1":      s * jax.random.normal(ks[11], (1, D_FF), jnp.float32),
        "w_ff2":      s * jax.random.normal(ks[12], (D_FF, D_MODEL), jnp.float32),
        "b_ff2":      s * jax.random.normal(ks[13], (1, D_MODEL), jnp.float32),
        # 3 LayerNorms (add&norm 1/2/3): gamma init 1, beta init 0
        "ln_g": jnp.ones((3, D_MODEL), jnp.float32),
        "ln_b": jnp.zeros((3, D_MODEL), jnp.float32),
    }
    # TODO(synk): dropout inside AddAndNormWithDropoutLayer is identity here
    # (eval-mode forward); no Pallas-side RNG is needed for that.


if __name__ == "__main__":
    key = jax.random.PRNGKey(0)
    k_x, k_m, k_p = jax.random.split(key, 3)

    x      = jax.random.normal(k_x, (B, S_TGT, D_MODEL), jnp.float32)
    memory = jax.random.normal(k_m, (B, S_SRC, D_MODEL), jnp.float32)
    # causal target mask, all-ones source mask (1.0 = attend, 0.0 = masked)
    tgt_mask = jnp.tril(jnp.ones((S_TGT, S_TGT), jnp.float32))
    src_mask = jnp.ones((S_TGT, S_SRC), jnp.float32)

    params = init_params(k_p)

    out = composite_decoder(x, memory, src_mask, tgt_mask, params)
    out = jax.block_until_ready(out)
    assert out.shape == (B, S_TGT, D_MODEL)
    assert bool(jnp.all(jnp.isfinite(out)))
    print("KERNEL_OK")
</pallas_src>

<mosaic_0001>
module attributes {stable_mosaic.version = 11 : i64} {
  func.func @decoder_kernel(%arg0: memref<16x32xf32, #tpu.memory_space<vmem>>, %arg1: memref<16x32xf32, #tpu.memory_space<vmem>>, %arg2: memref<16x256xf32, #tpu.memory_space<vmem>>, %arg3: memref<64x896xbf16, #tpu.memory_space<vmem>>, %arg4: memref<7x896xf32, #tpu.memory_space<vmem>>, %arg5: memref<16x32xf32, #tpu.memory_space<vmem>>) attributes {dimension_semantics = [], scalar_prefetch = 0 : i64, scratch_operands = 0 : i64, tpu.core_type = #tpu.core_type<tc>} {
    %c0 = arith.constant 0 : index
    %c0_0 = arith.constant 0 : index
    %0 = vector.load %arg0[%c0, %c0_0] : memref<16x32xf32, #tpu.memory_space<vmem>>, vector<16x32xf32>
    %c0_1 = arith.constant 0 : index
    %c0_2 = arith.constant 0 : index
    %1 = vector.load %arg1[%c0_1, %c0_2] : memref<16x32xf32, #tpu.memory_space<vmem>>, vector<16x32xf32>
    %c0_3 = arith.constant 0 : index
    %c0_4 = arith.constant 0 : index
    %2 = vector.load %arg2[%c0_3, %c0_4] : memref<16x256xf32, #tpu.memory_space<vmem>>, vector<16x16xf32>
    %c0_5 = arith.constant 0 : index
    %c128 = arith.constant 128 : index
    %3 = vector.load %arg2[%c0_5, %c128] : memref<16x256xf32, #tpu.memory_space<vmem>>, vector<16x16xf32>
    %c0_6 = arith.constant 0 : index
    %c0_7 = arith.constant 0 : index
    %4 = vector.load %arg3[%c0_6, %c0_7] : memref<64x896xbf16, #tpu.memory_space<vmem>>, vector<32x96xbf16>
    %c0_8 = arith.constant 0 : index
    %c128_9 = arith.constant 128 : index
    %5 = vector.load %arg3[%c0_8, %c128_9] : memref<64x896xbf16, #tpu.memory_space<vmem>>, vector<32x32xbf16>
    %c0_10 = arith.constant 0 : index
    %c256 = arith.constant 256 : index
    %6 = vector.load %arg3[%c0_10, %c256] : memref<64x896xbf16, #tpu.memory_space<vmem>>, vector<32x32xbf16>
    %c0_11 = arith.constant 0 : index
    %c384 = arith.constant 384 : index
    %7 = vector.load %arg3[%c0_11, %c384] : memref<64x896xbf16, #tpu.memory_space<vmem>>, vector<32x64xbf16>
    %c0_12 = arith.constant 0 : index
    %c512 = arith.constant 512 : index
    %8 = vector.load %arg3[%c0_12, %c512] : memref<64x896xbf16, #tpu.memory_space<vmem>>, vector<32x32xbf16>
    %c0_13 = arith.constant 0 : index
    %c640 = arith.constant 640 : index
    %9 = vector.load %arg3[%c0_13, %c640] : memref<64x896xbf16, #tpu.memory_space<vmem>>, vector<32x64xbf16>
    %c0_14 = arith.constant 0 : index
    %c768 = arith.constant 768 : index
    %10 = vector.load %arg3[%c0_14, %c768] : memref<64x896xbf16, #tpu.memory_space<vmem>>, vector<64x32xbf16>
    %c0_15 = arith.constant 0 : index
    %c0_16 = arith.constant 0 : index
    %11 = vector.load %arg4[%c0_15, %c0_16] : memref<7x896xf32, #tpu.memory_space<vmem>>, vector<1x96xf32>
    %c0_17 = arith.constant 0 : index
    %c128_18 = arith.constant 128 : index
    %12 = vector.load %arg4[%c0_17, %c128_18] : memref<7x896xf32, #tpu.memory_space<vmem>>, vector<1x32xf32>
    %c0_19 = arith.constant 0 : index
    %c256_20 = arith.constant 256 : index
    %13 = vector.load %arg4[%c0_19, %c256_20] : memref<7x896xf32, #tpu.memory_space<vmem>>, vector<1x32xf32>
    %c0_21 = arith.constant 0 : index
    %c384_22 = arith.constant 384 : index
    %14 = vector.load %arg4[%c0_21, %c384_22] : memref<7x896xf32, #tpu.memory_space<vmem>>, vector<1x64xf32>
    %c0_23 = arith.constant 0 : index
    %c512_24 = arith.constant 512 : index
    %15 = vector.load %arg4[%c0_23, %c512_24] : memref<7x896xf32, #tpu.memory_space<vmem>>, vector<1x32xf32>
    %c0_25 = arith.constant 0 : index
    %c640_26 = arith.constant 640 : index
    %16 = vector.load %arg4[%c0_25, %c640_26] : memref<7x896xf32, #tpu.memory_space<vmem>>, vector<1x64xf32>
    %c0_27 = arith.constant 0 : index
    %c768_28 = arith.constant 768 : index
    %17 = vector.load %arg4[%c0_27, %c768_28] : memref<7x896xf32, #tpu.memory_space<vmem>>, vector<1x32xf32>
    %c1 = arith.constant 1 : index
    %c0_29 = arith.constant 0 : index
    %18 = vector.load %arg4[%c1, %c0_29] : memref<7x896xf32, #tpu.memory_space<vmem>>, vector<1x32xf32>
    %c2 = arith.constant 2 : index
    %c0_30 = arith.constant 0 : index
    %19 = vector.load %arg4[%c2, %c0_30] : memref<7x896xf32, #tpu.memory_space<vmem>>, vector<1x32xf32>
    %c3 = arith.constant 3 : index
    %c0_31 = arith.constant 0 : index
    %20 = vector.load %arg4[%c3, %c0_31] : memref<7x896xf32, #tpu.memory_space<vmem>>, vector<1x32xf32>
    %c4 = arith.constant 4 : index
    %c0_32 = arith.constant 0 : index
    %21 = vector.load %arg4[%c4, %c0_32] : memref<7x896xf32, #tpu.memory_space<vmem>>, vector<1x32xf32>
    %c5 = arith.constant 5 : index
    %c0_33 = arith.constant 0 : index
    %22 = vector.load %arg4[%c5, %c0_33] : memref<7x896xf32, #tpu.memory_space<vmem>>, vector<1x32xf32>
    %c6 = arith.constant 6 : index
    %c0_34 = arith.constant 0 : index
    %23 = vector.load %arg4[%c6, %c0_34] : memref<7x896xf32, #tpu.memory_space<vmem>>, vector<1x32xf32>
    %24 = arith.truncf %1 : vector<16x32xf32> to vector<16x32xbf16>
    %cst = arith.constant dense<0.000000e+00> : vector<16x64xf32>
    %25 = tpu.matmul %24, %7, %cst {dimension_numbers = #tpu.dot_dimension_numbers<[1], [0], [0], [1], [0, 0, 1, 1], [], []>} : vector<16x32xbf16>, vector<32x64xbf16>, vector<16x64xf32> -> vector<16x64xf32>
    %26 = vector.broadcast %14 : vector<1x64xf32> to vector<16x64xf32>
    %27 = arith.addf %25, %26 : vector<16x64xf32>
    %28 = arith.truncf %27 : vector<16x64xf32> to vector<16x64xbf16>
    %29 = vector.extract_strided_slice %28 {offsets = [0, 0], sizes = [16, 32], strides = [1, 1]} : vector<16x64xbf16> to vector<16x32xbf16>
    %30 = vector.extract_strided_slice %28 {offsets = [0, 32], sizes = [16, 32], strides = [1, 1]} : vector<16x64xbf16> to vector<16x32xbf16>
    %31 = arith.truncf %0 : vector<16x32xf32> to vector<16x32xbf16>
    %cst_35 = arith.constant dense<0.000000e+00> : vector<16x96xf32>
    %32 = tpu.matmul %31, %4, %cst_35 {dimension_numbers = #tpu.dot_dimension_numbers<[1], [0], [0], [1], [0, 0, 1, 1], [], []>} : vector<16x32xbf16>, vector<32x96xbf16>, vector<16x96xf32> -> vector<16x96xf32>
    %33 = vector.broadcast %11 : vector<1x96xf32> to vector<16x96xf32>
    %34 = arith.addf %32, %33 : vector<16x96xf32>
    %35 = arith.truncf %34 : vector<16x96xf32> to vector<16x96xbf16>
    %36 = vector.extract_strided_slice %35 {offsets = [0, 0], sizes = [16, 32], strides = [1, 1]} : vector<16x96xbf16> to vector<16x32xbf16>
    %37 = vector.extract_strided_slice %35 {offsets = [0, 32], sizes = [16, 32], strides = [1, 1]} : vector<16x96xbf16> to vector<16x32xbf16>
    %38 = vector.extract_strided_slice %35 {offsets = [0, 64], sizes = [16, 32], strides = [1, 1]} : vector<16x96xbf16> to vector<16x32xbf16>
    %39 = vector.extract_strided_slice %36 {offsets = [0, 0], sizes = [16, 8], strides = [1, 1]} : vector<16x32xbf16> to vector<16x8xbf16>
    %40 = vector.extract_strided_slice %37 {offsets = [0, 0], sizes = [16, 8], strides = [1, 1]} : vector<16x32xbf16> to vector<16x8xbf16>
    "tpu.trace_start"() <{level = 10 : i32, message = "qd,kd->qk"}> : () -> ()
    %cst_36 = arith.constant dense<0.000000e+00> : vector<16x16xf32>
    %41 = tpu.matmul %39, %40, %cst_36 {dimension_numbers = #tpu.dot_dimension_numbers<[1], [1], [0], [0], [0, 0, 1, 0], [], []>} : vector<16x8xbf16>, vector<16x8xbf16>, vector<16x16xf32> -> vector<16x16xf32>
    "tpu.trace_stop"() : () -> ()
    %42 = arith.addf %41, %2 : vector<16x16xf32>
    %cst_37 = arith.constant dense<0xFF800000> : vector<16xf32>
    %43 = vector.multi_reduction <maximumf>, %42, %cst_37 [1] : vector<16x16xf32> to vector<16xf32>
    %44 = vector.shape_cast %43 : vector<16xf32> to vector<16x1xf32>
    %45 = vector.broadcast %44 : vector<16x1xf32> to vector<16x16xf32>
    %46 = arith.subf %42, %45 : vector<16x16xf32>
    %47 = math.exp %46 : vector<16x16xf32>
    %cst_38 = arith.constant dense<0.000000e+00> : vector<16xf32>
    %48 = vector.multi_reduction <add>, %47, %cst_38 [1] : vector<16x16xf32> to vector<16xf32>
    %49 = vector.shape_cast %48 : vector<16xf32> to vector<16x1xf32>
    %50 = vector.broadcast %49 : vector<16x1xf32> to vector<16x16xf32>
    %51 = arith.divf %47, %50 : vector<16x16xf32>
    %52 = arith.truncf %51 : vector<16x16xf32> to vector<16x16xbf16>
    %53 = vector.extract_strided_slice %38 {offsets = [0, 0], sizes = [16, 8], strides = [1, 1]} : vector<16x32xbf16> to vector<16x8xbf16>
    %cst_39 = arith.constant dense<0.000000e+00> : vector<16x8xf32>
    %54 = tpu.matmul %52, %53, %cst_39 {dimension_numbers = #tpu.dot_dimension_numbers<[1], [0], [0], [1], [0, 0, 1, 1], [], []>} : vector<16x16xbf16>, vector<16x8xbf16>, vector<16x8xf32> -> vector<16x8xf32>
    %55 = vector.extract_strided_slice %36 {offsets = [0, 8], sizes = [16, 8], strides = [1, 1]} : vector<16x32xbf16> to vector<16x8xbf16>
    %56 = vector.extract_strided_slice %37 {offsets = [0, 8], sizes = [16, 8], strides = [1, 1]} : vector<16x32xbf16> to vector<16x8xbf16>
    "tpu.trace_start"() <{level = 10 : i32, message = "qd,kd->qk"}> : () -> ()
    %cst_40 = arith.constant dense<0.000000e+00> : vector<16x16xf32>
    %57 = tpu.matmul %55, %56, %cst_40 {dimension_numbers = #tpu.dot_dimension_numbers<[1], [1], [0], [0], [0, 0, 1, 0], [], []>} : vector<16x8xbf16>, vector<16x8xbf16>, vector<16x16xf32> -> vector<16x16xf32>
    "tpu.trace_stop"() : () -> ()
    %58 = arith.addf %57, %2 : vector<16x16xf32>
    %cst_41 = arith.constant dense<0xFF800000> : vector<16xf32>
    %59 = vector.multi_reduction <maximumf>, %58, %cst_41 [1] : vector<16x16xf32> to vector<16xf32>
    %60 = vector.shape_cast %59 : vector<16xf32> to vector<16x1xf32>
    %61 = vector.broadcast %60 : vector<16x1xf32> to vector<16x16xf32>
    %62 = arith.subf %58, %61 : vector<16x16xf32>
    %63 = math.exp %62 : vector<16x16xf32>
    %cst_42 = arith.constant dense<0.000000e+00> : vector<16xf32>
    %64 = vector.multi_reduction <add>, %63, %cst_42 [1] : vector<16x16xf32> to vector<16xf32>
    %65 = vector.shape_cast %64 : vector<16xf32> to vector<16x1xf32>
    %66 = vector.broadcast %65 : vector<16x1xf32> to vector<16x16xf32>
    %67 = arith.divf %63, %66 : vector<16x16xf32>
    %68 = arith.truncf %67 : vector<16x16xf32> to vector<16x16xbf16>
    %69 = vector.extract_strided_slice %38 {offsets = [0, 8], sizes = [16, 8], strides = [1, 1]} : vector<16x32xbf16> to vector<16x8xbf16>
    %cst_43 = arith.constant dense<0.000000e+00> : vector<16x8xf32>
    %70 = tpu.matmul %68, %69, %cst_43 {dimension_numbers = #tpu.dot_dimension_numbers<[1], [0], [0], [1], [0, 0, 1, 1], [], []>} : vector<16x16xbf16>, vector<16x8xbf16>, vector<16x8xf32> -> vector<16x8xf32>
    %71 = vector.extract_strided_slice %36 {offsets = [0, 16], sizes = [16, 8], strides = [1, 1]} : vector<16x32xbf16> to vector<16x8xbf16>
    %72 = vector.extract_strided_slice %37 {offsets = [0, 16], sizes = [16, 8], strides = [1, 1]} : vector<16x32xbf16> to vector<16x8xbf16>
    "tpu.trace_start"() <{level = 10 : i32, message = "qd,kd->qk"}> : () -> ()
    %cst_44 = arith.constant dense<0.000000e+00> : vector<16x16xf32>
    %73 = tpu.matmul %71, %72, %cst_44 {dimension_numbers = #tpu.dot_dimension_numbers<[1], [1], [0], [0], [0, 0, 1, 0], [], []>} : vector<16x8xbf16>, vector<16x8xbf16>, vector<16x16xf32> -> vector<16x16xf32>
    "tpu.trace_stop"() : () -> ()
    %74 = arith.addf %73, %2 : vector<16x16xf32>
    %cst_45 = arith.constant dense<0xFF800000> : vector<16xf32>
    %75 = vector.multi_reduction <maximumf>, %74, %cst_45 [1] : vector<16x16xf32> to vector<16xf32>
    %76 = vector.shape_cast %75 : vector<16xf32> to vector<16x1xf32>
    %77 = vector.broadcast %76 : vector<16x1xf32> to vector<16x16xf32>
    %78 = arith.subf %74, %77 : vector<16x16xf32>
    %79 = math.exp %78 : vector<16x16xf32>
    %cst_46 = arith.constant dense<0.000000e+00> : vector<16xf32>
    %80 = vector.multi_reduction <add>, %79, %cst_46 [1] : vector<16x16xf32> to vector<16xf32>
    %81 = vector.shape_cast %80 : vector<16xf32> to vector<16x1xf32>
    %82 = vector.broadcast %81 : vector<16x1xf32> to vector<16x16xf32>
    %83 = arith.divf %79, %82 : vector<16x16xf32>
    %84 = arith.truncf %83 : vector<16x16xf32> to vector<16x16xbf16>
    %85 = vector.extract_strided_slice %38 {offsets = [0, 16], sizes = [16, 8], strides = [1, 1]} : vector<16x32xbf16> to vector<16x8xbf16>
    %cst_47 = arith.constant dense<0.000000e+00> : vector<16x8xf32>
    %86 = tpu.matmul %84, %85, %cst_47 {dimension_numbers = #tpu.dot_dimension_numbers<[1], [0], [0], [1], [0, 0, 1, 1], [], []>} : vector<16x16xbf16>, vector<16x8xbf16>, vector<16x8xf32> -> vector<16x8xf32>
    %87 = vector.extract_strided_slice %36 {offsets = [0, 24], sizes = [16, 8], strides = [1, 1]} : vector<16x32xbf16> to vector<16x8xbf16>
    %88 = vector.extract_strided_slice %37 {offsets = [0, 24], sizes = [16, 8], strides = [1, 1]} : vector<16x32xbf16> to vector<16x8xbf16>
    "tpu.trace_start"() <{level = 10 : i32, message = "qd,kd->qk"}> : () -> ()
    %cst_48 = arith.constant dense<0.000000e+00> : vector<16x16xf32>
    %89 = tpu.matmul %87, %88, %cst_48 {dimension_numbers = #tpu.dot_dimension_numbers<[1], [1], [0], [0], [0, 0, 1, 0], [], []>} : vector<16x8xbf16>, vector<16x8xbf16>, vector<16x16xf32> -> vector<16x16xf32>
    "tpu.trace_stop"() : () -> ()
    %90 = arith.addf %89, %2 : vector<16x16xf32>
    %cst_49 = arith.constant dense<0xFF800000> : vector<16xf32>
    %91 = vector.multi_reduction <maximumf>, %90, %cst_49 [1] : vector<16x16xf32> to vector<16xf32>
    %92 = vector.shape_cast %91 : vector<16xf32> to vector<16x1xf32>
    %93 = vector.broadcast %92 : vector<16x1xf32> to vector<16x16xf32>
    %94 = arith.subf %90, %93 : vector<16x16xf32>
    %95 = math.exp %94 : vector<16x16xf32>
    %cst_50 = arith.constant dense<0.000000e+00> : vector<16xf32>
    %96 = vector.multi_reduction <add>, %95, %cst_50 [1] : vector<16x16xf32> to vector<16xf32>
    %97 = vector.shape_cast %96 : vector<16xf32> to vector<16x1xf32>
    %98 = vector.broadcast %97 : vector<16x1xf32> to vector<16x16xf32>
    %99 = arith.divf %95, %98 : vector<16x16xf32>
    %100 = arith.truncf %99 : vector<16x16xf32> to vector<16x16xbf16>
    %101 = vector.extract_strided_slice %38 {offsets = [0, 24], sizes = [16, 8], strides = [1, 1]} : vector<16x32xbf16> to vector<16x8xbf16>
    %cst_51 = arith.constant dense<0.000000e+00> : vector<16x8xf32>
    %102 = tpu.matmul %100, %101, %cst_51 {dimension_numbers = #tpu.dot_dimension_numbers<[1], [0], [0], [1], [0, 0, 1, 1], [], []>} : vector<16x16xbf16>, vector<16x8xbf16>, vector<16x8xf32> -> vector<16x8xf32>
    %103 = tpu.concatenate %54, %70, %86, %102 in 1 : vector<16x8xf32>, vector<16x8xf32>, vector<16x8xf32>, vector<16x8xf32> -> vector<16x32xf32>
    %104 = arith.truncf %103 : vector<16x32xf32> to vector<16x32xbf16>
    %cst_52 = arith.constant dense<0.000000e+00> : vector<16x32xf32>
    %105 = tpu.matmul %104, %5, %cst_52 {dimension_numbers = #tpu.dot_dimension_numbers<[1], [0], [0], [1], [0, 0, 1, 1], [], []>} : vector<16x32xbf16>, vector<32x32xbf16>, vector<16x32xf32> -> vector<16x32xf32>
    %106 = vector.broadcast %12 : vector<1x32xf32> to vector<16x32xf32>
    %107 = arith.addf %105, %106 : vector<16x32xf32>
    %108 = arith.addf %0, %107 : vector<16x32xf32>
    %cst_53 = arith.constant dense<0.000000e+00> : vector<16xf32>
    %109 = vector.multi_reduction <add>, %108, %cst_53 [1] : vector<16x32xf32> to vector<16xf32>
    %110 = vector.shape_cast %109 : vector<16xf32> to vector<16x1xf32>
    %cst_54 = arith.constant 3.200000e+01 : f32
    %111 = vector.broadcast %cst_54 : f32 to vector<16x1xf32>
    %112 = arith.divf %110, %111 : vector<16x1xf32>
    %113 = vector.broadcast %112 : vector<16x1xf32> to vector<16x32xf32>
    %114 = arith.subf %108, %113 : vector<16x32xf32>
    %115 = arith.mulf %114, %114 : vector<16x32xf32>
    %cst_55 = arith.constant dense<0.000000e+00> : vector<16xf32>
    %116 = vector.multi_reduction <add>, %115, %cst_55 [1] : vector<16x32xf32> to vector<16xf32>
    %117 = vector.shape_cast %116 : vector<16xf32> to vector<16x1xf32>
    %cst_56 = arith.constant 3.200000e+01 : f32
    %118 = vector.broadcast %cst_56 : f32 to vector<16x1xf32>
    %119 = arith.divf %117, %118 : vector<16x1xf32>
    %120 = vector.broadcast %112 : vector<16x1xf32> to vector<16x32xf32>
    %121 = arith.subf %108, %120 : vector<16x32xf32>
    %cst_57 = arith.constant 9.99999974E-6 : f32
    %122 = vector.broadcast %cst_57 : f32 to vector<16x1xf32>
    %123 = arith.addf %119, %122 : vector<16x1xf32>
    %124 = math.rsqrt %123 : vector<16x1xf32>
    %125 = vector.broadcast %124 : vector<16x1xf32> to vector<16x32xf32>
    %126 = arith.mulf %121, %125 : vector<16x32xf32>
    %127 = vector.broadcast %18 : vector<1x32xf32> to vector<16x32xf32>
    %128 = arith.mulf %126, %127 : vector<16x32xf32>
    %129 = vector.broadcast %21 : vector<1x32xf32> to vector<16x32xf32>
    %130 = arith.addf %128, %129 : vector<16x32xf32>
    %131 = arith.truncf %130 : vector<16x32xf32> to vector<16x32xbf16>
    %cst_58 = arith.constant dense<0.000000e+00> : vector<16x32xf32>
    %132 = tpu.matmul %131, %6, %cst_58 {dimension_numbers = #tpu.dot_dimension_numbers<[1], [0], [0], [1], [0, 0, 1, 1], [], []>} : vector<16x32xbf16>, vector<32x32xbf16>, vector<16x32xf32> -> vector<16x32xf32>
    %133 = vector.broadcast %13 : vector<1x32xf32> to vector<16x32xf32>
    %134 = arith.addf %132, %133 : vector<16x32xf32>
    %135 = arith.truncf %134 : vector<16x32xf32> to vector<16x32xbf16>
    %136 = vector.extract_strided_slice %135 {offsets = [0, 0], sizes = [16, 8], strides = [1, 1]} : vector<16x32xbf16> to vector<16x8xbf16>
    %137 = vector.extract_strided_slice %29 {offsets = [0, 0], sizes = [16, 8], strides = [1, 1]} : vector<16x32xbf16> to vector<16x8xbf16>
    "tpu.trace_start"() <{level = 10 : i32, message = "qd,kd->qk"}> : () -> ()
    %cst_59 = arith.constant dense<0.000000e+00> : vector<16x16xf32>
    %138 = tpu.matmul %136, %137, %cst_59 {dimension_numbers = #tpu.dot_dimension_numbers<[1], [1], [0], [0], [0, 0, 1, 0], [], []>} : vector<16x8xbf16>, vector<16x8xbf16>, vector<16x16xf32> -> vector<16x16xf32>
    "tpu.trace_stop"() : () -> ()
    %139 = arith.addf %138, %3 : vector<16x16xf32>
    %cst_60 = arith.constant dense<0xFF800000> : vector<16xf32>
    %140 = vector.multi_reduction <maximumf>, %139, %cst_60 [1] : vector<16x16xf32> to vector<16xf32>
    %141 = vector.shape_cast %140 : vector<16xf32> to vector<16x1xf32>
    %142 = vector.broadcast %141 : vector<16x1xf32> to vector<16x16xf32>
    %143 = arith.subf %139, %142 : vector<16x16xf32>
    %144 = math.exp %143 : vector<16x16xf32>
    %cst_61 = arith.constant dense<0.000000e+00> : vector<16xf32>
    %145 = vector.multi_reduction <add>, %144, %cst_61 [1] : vector<16x16xf32> to vector<16xf32>
    %146 = vector.shape_cast %145 : vector<16xf32> to vector<16x1xf32>
    %147 = vector.broadcast %146 : vector<16x1xf32> to vector<16x16xf32>
    %148 = arith.divf %144, %147 : vector<16x16xf32>
    %149 = arith.truncf %148 : vector<16x16xf32> to vector<16x16xbf16>
    %150 = vector.extract_strided_slice %30 {offsets = [0, 0], sizes = [16, 8], strides = [1, 1]} : vector<16x32xbf16> to vector<16x8xbf16>
    %cst_62 = arith.constant dense<0.000000e+00> : vector<16x8xf32>
    %151 = tpu.matmul %149, %150, %cst_62 {dimension_numbers = #tpu.dot_dimension_numbers<[1], [0], [0], [1], [0, 0, 1, 1], [], []>} : vector<16x16xbf16>, vector<16x8xbf16>, vector<16x8xf32> -> vector<16x8xf32>
    %152 = vector.extract_strided_slice %135 {offsets = [0, 8], sizes = [16, 8], strides = [1, 1]} : vector<16x32xbf16> to vector<16x8xbf16>
    %153 = vector.extract_strided_slice %29 {offsets = [0, 8], sizes = [16, 8], strides = [1, 1]} : vector<16x32xbf16> to vector<16x8xbf16>
    "tpu.trace_start"() <{level = 10 : i32, message = "qd,kd->qk"}> : () -> ()
    %cst_63 = arith.constant dense<0.000000e+00> : vector<16x16xf32>
    %154 = tpu.matmul %152, %153, %cst_63 {dimension_numbers = #tpu.dot_dimension_numbers<[1], [1], [0], [0], [0, 0, 1, 0], [], []>} : vector<16x8xbf16>, vector<16x8xbf16>, vector<16x16xf32> -> vector<16x16xf32>
    "tpu.trace_stop"() : () -> ()
    %155 = arith.addf %154, %3 : vector<16x16xf32>
    %cst_64 = arith.constant dense<0xFF800000> : vector<16xf32>
    %156 = vector.multi_reduction <maximumf>, %155, %cst_64 [1] : vector<16x16xf32> to vector<16xf32>
    %157 = vector.shape_cast %156 : vector<16xf32> to vector<16x1xf32>
    %158 = vector.broadcast %157 : vector<16x1xf32> to vector<16x16xf32>
    %159 = arith.subf %155, %158 : vector<16x16xf32>
    %160 = math.exp %159 : vector<16x16xf32>
    %cst_65 = arith.constant dense<0.000000e+00> : vector<16xf32>
    %161 = vector.multi_reduction <add>, %160, %cst_65 [1] : vector<16x16xf32> to vector<16xf32>
    %162 = vector.shape_cast %161 : vector<16xf32> to vector<16x1xf32>
    %163 = vector.broadcast %162 : vector<16x1xf32> to vector<16x16xf32>
    %164 = arith.divf %160, %163 : vector<16x16xf32>
    %165 = arith.truncf %164 : vector<16x16xf32> to vector<16x16xbf16>
    %166 = vector.extract_strided_slice %30 {offsets = [0, 8], sizes = [16, 8], strides = [1, 1]} : vector<16x32xbf16> to vector<16x8xbf16>
    %cst_66 = arith.constant dense<0.000000e+00> : vector<16x8xf32>
    %167 = tpu.matmul %165, %166, %cst_66 {dimension_numbers = #tpu.dot_dimension_numbers<[1], [0], [0], [1], [0, 0, 1, 1], [], []>} : vector<16x16xbf16>, vector<16x8xbf16>, vector<16x8xf32> -> vector<16x8xf32>
    %168 = vector.extract_strided_slice %135 {offsets = [0, 16], sizes = [16, 8], strides = [1, 1]} : vector<16x32xbf16> to vector<16x8xbf16>
    %169 = vector.extract_strided_slice %29 {offsets = [0, 16], sizes = [16, 8], strides = [1, 1]} : vector<16x32xbf16> to vector<16x8xbf16>
    "tpu.trace_start"() <{level = 10 : i32, message = "qd,kd->qk"}> : () -> ()
    %cst_67 = arith.constant dense<0.000000e+00> : vector<16x16xf32>
    %170 = tpu.matmul %168, %169, %cst_67 {dimension_numbers = #tpu.dot_dimension_numbers<[1], [1], [0], [0], [0, 0, 1, 0], [], []>} : vector<16x8xbf16>, vector<16x8xbf16>, vector<16x16xf32> -> vector<16x16xf32>
    "tpu.trace_stop"() : () -> ()
    %171 = arith.addf %170, %3 : vector<16x16xf32>
    %cst_68 = arith.constant dense<0xFF800000> : vector<16xf32>
    %172 = vector.multi_reduction <maximumf>, %171, %cst_68 [1] : vector<16x16xf32> to vector<16xf32>
    %173 = vector.shape_cast %172 : vector<16xf32> to vector<16x1xf32>
    %174 = vector.broadcast %173 : vector<16x1xf32> to vector<16x16xf32>
    %175 = arith.subf %171, %174 : vector<16x16xf32>
    %176 = math.exp %175 : vector<16x16xf32>
    %cst_69 = arith.constant dense<0.000000e+00> : vector<16xf32>
    %177 = vector.multi_reduction <add>, %176, %cst_69 [1] : vector<16x16xf32> to vector<16xf32>
    %178 = vector.shape_cast %177 : vector<16xf32> to vector<16x1xf32>
    %179 = vector.broadcast %178 : vector<16x1xf32> to vector<16x16xf32>
    %180 = arith.divf %176, %179 : vector<16x16xf32>
    %181 = arith.truncf %180 : vector<16x16xf32> to vector<16x16xbf16>
    %182 = vector.extract_strided_slice %30 {offsets = [0, 16], sizes = [16, 8], strides = [1, 1]} : vector<16x32xbf16> to vector<16x8xbf16>
    %cst_70 = arith.constant dense<0.000000e+00> : vector<16x8xf32>
    %183 = tpu.matmul %181, %182, %cst_70 {dimension_numbers = #tpu.dot_dimension_numbers<[1], [0], [0], [1], [0, 0, 1, 1], [], []>} : vector<16x16xbf16>, vector<16x8xbf16>, vector<16x8xf32> -> vector<16x8xf32>
    %184 = vector.extract_strided_slice %135 {offsets = [0, 24], sizes = [16, 8], strides = [1, 1]} : vector<16x32xbf16> to vector<16x8xbf16>
    %185 = vector.extract_strided_slice %29 {offsets = [0, 24], sizes = [16, 8], strides = [1, 1]} : vector<16x32xbf16> to vector<16x8xbf16>
    "tpu.trace_start"() <{level = 10 : i32, message = "qd,kd->qk"}> : () -> ()
    %cst_71 = arith.constant dense<0.000000e+00> : vector<16x16xf32>
    %186 = tpu.matmul %184, %185, %cst_71 {dimension_numbers = #tpu.dot_dimension_numbers<[1], [1], [0], [0], [0, 0, 1, 0], [], []>} : vector<16x8xbf16>, vector<16x8xbf16>, vector<16x16xf32> -> vector<16x16xf32>
    "tpu.trace_stop"() : () -> ()
    %187 = arith.addf %186, %3 : vector<16x16xf32>
    %cst_72 = arith.constant dense<0xFF800000> : vector<16xf32>
    %188 = vector.multi_reduction <maximumf>, %187, %cst_72 [1] : vector<16x16xf32> to vector<16xf32>
    %189 = vector.shape_cast %188 : vector<16xf32> to vector<16x1xf32>
    %190 = vector.broadcast %189 : vector<16x1xf32> to vector<16x16xf32>
    %191 = arith.subf %187, %190 : vector<16x16xf32>
    %192 = math.exp %191 : vector<16x16xf32>
    %cst_73 = arith.constant dense<0.000000e+00> : vector<16xf32>
    %193 = vector.multi_reduction <add>, %192, %cst_73 [1] : vector<16x16xf32> to vector<16xf32>
    %194 = vector.shape_cast %193 : vector<16xf32> to vector<16x1xf32>
    %195 = vector.broadcast %194 : vector<16x1xf32> to vector<16x16xf32>
    %196 = arith.divf %192, %195 : vector<16x16xf32>
    %197 = arith.truncf %196 : vector<16x16xf32> to vector<16x16xbf16>
    %198 = vector.extract_strided_slice %30 {offsets = [0, 24], sizes = [16, 8], strides = [1, 1]} : vector<16x32xbf16> to vector<16x8xbf16>
    %cst_74 = arith.constant dense<0.000000e+00> : vector<16x8xf32>
    %199 = tpu.matmul %197, %198, %cst_74 {dimension_numbers = #tpu.dot_dimension_numbers<[1], [0], [0], [1], [0, 0, 1, 1], [], []>} : vector<16x16xbf16>, vector<16x8xbf16>, vector<16x8xf32> -> vector<16x8xf32>
    %200 = tpu.concatenate %151, %167, %183, %199 in 1 : vector<16x8xf32>, vector<16x8xf32>, vector<16x8xf32>, vector<16x8xf32> -> vector<16x32xf32>
    %201 = arith.truncf %200 : vector<16x32xf32> to vector<16x32xbf16>
    %cst_75 = arith.constant dense<0.000000e+00> : vector<16x32xf32>
    %202 = tpu.matmul %201, %8, %cst_75 {dimension_numbers = #tpu.dot_dimension_numbers<[1], [0], [0], [1], [0, 0, 1, 1], [], []>} : vector<16x32xbf16>, vector<32x32xbf16>, vector<16x32xf32> -> vector<16x32xf32>
    %203 = vector.broadcast %15 : vector<1x32xf32> to vector<16x32xf32>
    %204 = arith.addf %202, %203 : vector<16x32xf32>
    %205 = arith.addf %130, %204 : vector<16x32xf32>
    %cst_76 = arith.constant dense<0.000000e+00> : vector<16xf32>
    %206 = vector.multi_reduction <add>, %205, %cst_76 [1] : vector<16x32xf32> to vector<16xf32>
    %207 = vector.shape_cast %206 : vector<16xf32> to vector<16x1xf32>
    %cst_77 = arith.constant 3.200000e+01 : f32
    %208 = vector.broadcast %cst_77 : f32 to vector<16x1xf32>
    %209 = arith.divf %207, %208 : vector<16x1xf32>
    %210 = vector.broadcast %209 : vector<16x1xf32> to vector<16x32xf32>
    %211 = arith.subf %205, %210 : vector<16x32xf32>
    %212 = arith.mulf %211, %211 : vector<16x32xf32>
    %cst_78 = arith.constant dense<0.000000e+00> : vector<16xf32>
    %213 = vector.multi_reduction <add>, %212, %cst_78 [1] : vector<16x32xf32> to vector<16xf32>
    %214 = vector.shape_cast %213 : vector<16xf32> to vector<16x1xf32>
    %cst_79 = arith.constant 3.200000e+01 : f32
    %215 = vector.broadcast %cst_79 : f32 to vector<16x1xf32>
    %216 = arith.divf %214, %215 : vector<16x1xf32>
    %217 = vector.broadcast %209 : vector<16x1xf32> to vector<16x32xf32>
    %218 = arith.subf %205, %217 : vector<16x32xf32>
    %cst_80 = arith.constant 9.99999974E-6 : f32
    %219 = vector.broadcast %cst_80 : f32 to vector<16x1xf32>
    %220 = arith.addf %216, %219 : vector<16x1xf32>
    %221 = math.rsqrt %220 : vector<16x1xf32>
    %222 = vector.broadcast %221 : vector<16x1xf32> to vector<16x32xf32>
    %223 = arith.mulf %218, %222 : vector<16x32xf32>
    %224 = vector.broadcast %19 : vector<1x32xf32> to vector<16x32xf32>
    %225 = arith.mulf %223, %224 : vector<16x32xf32>
    %226 = vector.broadcast %22 : vector<1x32xf32> to vector<16x32xf32>
    %227 = arith.addf %225, %226 : vector<16x32xf32>
    %228 = arith.truncf %227 : vector<16x32xf32> to vector<16x32xbf16>
    %cst_81 = arith.constant dense<0.000000e+00> : vector<16x64xf32>
    %229 = tpu.matmul %228, %9, %cst_81 {dimension_numbers = #tpu.dot_dimension_numbers<[1], [0], [0], [1], [0, 0, 1, 1], [], []>} : vector<16x32xbf16>, vector<32x64xbf16>, vector<16x64xf32> -> vector<16x64xf32>
    %230 = vector.broadcast %16 : vector<1x64xf32> to vector<16x64xf32>
    %231 = arith.addf %229, %230 : vector<16x64xf32>
    %cst_82 = arith.constant 0.000000e+00 : f32
    %232 = vector.broadcast %cst_82 : f32 to vector<16x64xf32>
    %233 = arith.maximumf %231, %232 : vector<16x64xf32>
    %234 = arith.truncf %233 : vector<16x64xf32> to vector<16x64xbf16>
    %cst_83 = arith.constant dense<0.000000e+00> : vector<16x32xf32>
    %235 = tpu.matmul %234, %10, %cst_83 {dimension_numbers = #tpu.dot_dimension_numbers<[1], [0], [0], [1], [0, 0, 1, 1], [], []>} : vector<16x64xbf16>, vector<64x32xbf16>, vector<16x32xf32> -> vector<16x32xf32>
    %236 = vector.broadcast %17 : vector<1x32xf32> to vector<16x32xf32>
    %237 = arith.addf %235, %236 : vector<16x32xf32>
    %238 = arith.addf %227, %237 : vector<16x32xf32>
    %cst_84 = arith.constant dense<0.000000e+00> : vector<16xf32>
    %239 = vector.multi_reduction <add>, %238, %cst_84 [1] : vector<16x32xf32> to vector<16xf32>
    %240 = vector.shape_cast %239 : vector<16xf32> to vector<16x1xf32>
    %cst_85 = arith.constant 3.200000e+01 : f32
    %241 = vector.broadcast %cst_85 : f32 to vector<16x1xf32>
    %242 = arith.divf %240, %241 : vector<16x1xf32>
    %243 = vector.broadcast %242 : vector<16x1xf32> to vector<16x32xf32>
    %244 = arith.subf %238, %243 : vector<16x32xf32>
    %245 = arith.mulf %244, %244 : vector<16x32xf32>
    %cst_86 = arith.constant dense<0.000000e+00> : vector<16xf32>
    %246 = vector.multi_reduction <add>, %245, %cst_86 [1] : vector<16x32xf32> to vector<16xf32>
    %247 = vector.shape_cast %246 : vector<16xf32> to vector<16x1xf32>
    %cst_87 = arith.constant 3.200000e+01 : f32
    %248 = vector.broadcast %cst_87 : f32 to vector<16x1xf32>
    %249 = arith.divf %247, %248 : vector<16x1xf32>
    %250 = vector.broadcast %242 : vector<16x1xf32> to vector<16x32xf32>
    %251 = arith.subf %238, %250 : vector<16x32xf32>
    %cst_88 = arith.constant 9.99999974E-6 : f32
    %252 = vector.broadcast %cst_88 : f32 to vector<16x1xf32>
    %253 = arith.addf %249, %252 : vector<16x1xf32>
    %254 = math.rsqrt %253 : vector<16x1xf32>
    %255 = vector.broadcast %254 : vector<16x1xf32> to vector<16x32xf32>
    %256 = arith.mulf %251, %255 : vector<16x32xf32>
    %257 = vector.broadcast %20 : vector<1x32xf32> to vector<16x32xf32>
    %258 = arith.mulf %256, %257 : vector<16x32xf32>
    %259 = vector.broadcast %23 : vector<1x32xf32> to vector<16x32xf32>
    %260 = arith.addf %258, %259 : vector<16x32xf32>
    %261 = arith.truncf %260 : vector<16x32xf32> to vector<16x32xbf16>
    %cst_89 = arith.constant dense<0.000000e+00> : vector<16x96xf32>
    %262 = tpu.matmul %261, %4, %cst_89 {dimension_numbers = #tpu.dot_dimension_numbers<[1], [0], [0], [1], [0, 0, 1, 1], [], []>} : vector<16x32xbf16>, vector<32x96xbf16>, vector<16x96xf32> -> vector<16x96xf32>
    %263 = vector.broadcast %11 : vector<1x96xf32> to vector<16x96xf32>
    %264 = arith.addf %262, %263 : vector<16x96xf32>
    %265 = arith.truncf %264 : vector<16x96xf32> to vector<16x96xbf16>
    %266 = vector.extract_strided_slice %265 {offsets = [0, 0], sizes = [16, 32], strides = [1, 1]} : vector<16x96xbf16> to vector<16x32xbf16>
    %267 = vector.extract_strided_slice %265 {offsets = [0, 32], sizes = [16, 32], strides = [1, 1]} : vector<16x96xbf16> to vector<16x32xbf16>
    %268 = vector.extract_strided_slice %265 {offsets = [0, 64], sizes = [16, 32], strides = [1, 1]} : vector<16x96xbf16> to vector<16x32xbf16>
    %269 = vector.extract_strided_slice %266 {offsets = [0, 0], sizes = [16, 8], strides = [1, 1]} : vector<16x32xbf16> to vector<16x8xbf16>
    %270 = vector.extract_strided_slice %267 {offsets = [0, 0], sizes = [16, 8], strides = [1, 1]} : vector<16x32xbf16> to vector<16x8xbf16>
    "tpu.trace_start"() <{level = 10 : i32, message = "qd,kd->qk"}> : () -> ()
    %cst_90 = arith.constant dense<0.000000e+00> : vector<16x16xf32>
    %271 = tpu.matmul %269, %270, %cst_90 {dimension_numbers = #tpu.dot_dimension_numbers<[1], [1], [0], [0], [0, 0, 1, 0], [], []>} : vector<16x8xbf16>, vector<16x8xbf16>, vector<16x16xf32> -> vector<16x16xf32>
    "tpu.trace_stop"() : () -> ()
    %272 = arith.addf %271, %2 : vector<16x16xf32>
    %cst_91 = arith.constant dense<0xFF800000> : vector<16xf32>
    %273 = vector.multi_reduction <maximumf>, %272, %cst_91 [1] : vector<16x16xf32> to vector<16xf32>
    %274 = vector.shape_cast %273 : vector<16xf32> to vector<16x1xf32>
    %275 = vector.broadcast %274 : vector<16x1xf32> to vector<16x16xf32>
    %276 = arith.subf %272, %275 : vector<16x16xf32>
    %277 = math.exp %276 : vector<16x16xf32>
    %cst_92 = arith.constant dense<0.000000e+00> : vector<16xf32>
    %278 = vector.multi_reduction <add>, %277, %cst_92 [1] : vector<16x16xf32> to vector<16xf32>
    %279 = vector.shape_cast %278 : vector<16xf32> to vector<16x1xf32>
    %280 = vector.broadcast %279 : vector<16x1xf32> to vector<16x16xf32>
    %281 = arith.divf %277, %280 : vector<16x16xf32>
    %282 = arith.truncf %281 : vector<16x16xf32> to vector<16x16xbf16>
    %283 = vector.extract_strided_slice %268 {offsets = [0, 0], sizes = [16, 8], strides = [1, 1]} : vector<16x32xbf16> to vector<16x8xbf16>
    %cst_93 = arith.constant dense<0.000000e+00> : vector<16x8xf32>
    %284 = tpu.matmul %282, %283, %cst_93 {dimension_numbers = #tpu.dot_dimension_numbers<[1], [0], [0], [1], [0, 0, 1, 1], [], []>} : vector<16x16xbf16>, vector<16x8xbf16>, vector<16x8xf32> -> vector<16x8xf32>
    %285 = vector.extract_strided_slice %266 {offsets = [0, 8], sizes = [16, 8], strides = [1, 1]} : vector<16x32xbf16> to vector<16x8xbf16>
    %286 = vector.extract_strided_slice %267 {offsets = [0, 8], sizes = [16, 8], strides = [1, 1]} : vector<16x32xbf16> to vector<16x8xbf16>
    "tpu.trace_start"() <{level = 10 : i32, message = "qd,kd->qk"}> : () -> ()
    %cst_94 = arith.constant dense<0.000000e+00> : vector<16x16xf32>
    %287 = tpu.matmul %285, %286, %cst_94 {dimension_numbers = #tpu.dot_dimension_numbers<[1], [1], [0], [0], [0, 0, 1, 0], [], []>} : vector<16x8xbf16>, vector<16x8xbf16>, vector<16x16xf32> -> vector<16x16xf32>
    "tpu.trace_stop"() : () -> ()
    %288 = arith.addf %287, %2 : vector<16x16xf32>
    %cst_95 = arith.constant dense<0xFF800000> : vector<16xf32>
    %289 = vector.multi_reduction <maximumf>, %288, %cst_95 [1] : vector<16x16xf32> to vector<16xf32>
    %290 = vector.shape_cast %289 : vector<16xf32> to vector<16x1xf32>
    %291 = vector.broadcast %290 : vector<16x1xf32> to vector<16x16xf32>
    %292 = arith.subf %288, %291 : vector<16x16xf32>
    %293 = math.exp %292 : vector<16x16xf32>
    %cst_96 = arith.constant dense<0.000000e+00> : vector<16xf32>
    %294 = vector.multi_reduction <add>, %293, %cst_96 [1] : vector<16x16xf32> to vector<16xf32>
    %295 = vector.shape_cast %294 : vector<16xf32> to vector<16x1xf32>
    %296 = vector.broadcast %295 : vector<16x1xf32> to vector<16x16xf32>
    %297 = arith.divf %293, %296 : vector<16x16xf32>
    %298 = arith.truncf %297 : vector<16x16xf32> to vector<16x16xbf16>
    %299 = vector.extract_strided_slice %268 {offsets = [0, 8], sizes = [16, 8], strides = [1, 1]} : vector<16x32xbf16> to vector<16x8xbf16>
    %cst_97 = arith.constant dense<0.000000e+00> : vector<16x8xf32>
    %300 = tpu.matmul %298, %299, %cst_97 {dimension_numbers = #tpu.dot_dimension_numbers<[1], [0], [0], [1], [0, 0, 1, 1], [], []>} : vector<16x16xbf16>, vector<16x8xbf16>, vector<16x8xf32> -> vector<16x8xf32>
    %301 = vector.extract_strided_slice %266 {offsets = [0, 16], sizes = [16, 8], strides = [1, 1]} : vector<16x32xbf16> to vector<16x8xbf16>
    %302 = vector.extract_strided_slice %267 {offsets = [0, 16], sizes = [16, 8], strides = [1, 1]} : vector<16x32xbf16> to vector<16x8xbf16>
    "tpu.trace_start"() <{level = 10 : i32, message = "qd,kd->qk"}> : () -> ()
    %cst_98 = arith.constant dense<0.000000e+00> : vector<16x16xf32>
    %303 = tpu.matmul %301, %302, %cst_98 {dimension_numbers = #tpu.dot_dimension_numbers<[1], [1], [0], [0], [0, 0, 1, 0], [], []>} : vector<16x8xbf16>, vector<16x8xbf16>, vector<16x16xf32> -> vector<16x16xf32>
    "tpu.trace_stop"() : () -> ()
    %304 = arith.addf %303, %2 : vector<16x16xf32>
    %cst_99 = arith.constant dense<0xFF800000> : vector<16xf32>
    %305 = vector.multi_reduction <maximumf>, %304, %cst_99 [1] : vector<16x16xf32> to vector<16xf32>
    %306 = vector.shape_cast %305 : vector<16xf32> to vector<16x1xf32>
    %307 = vector.broadcast %306 : vector<16x1xf32> to vector<16x16xf32>
    %308 = arith.subf %304, %307 : vector<16x16xf32>
    %309 = math.exp %308 : vector<16x16xf32>
    %cst_100 = arith.constant dense<0.000000e+00> : vector<16xf32>
    %310 = vector.multi_reduction <add>, %309, %cst_100 [1] : vector<16x16xf32> to vector<16xf32>
    %311 = vector.shape_cast %310 : vector<16xf32> to vector<16x1xf32>
    %312 = vector.broadcast %311 : vector<16x1xf32> to vector<16x16xf32>
    %313 = arith.divf %309, %312 : vector<16x16xf32>
    %314 = arith.truncf %313 : vector<16x16xf32> to vector<16x16xbf16>
    %315 = vector.extract_strided_slice %268 {offsets = [0, 16], sizes = [16, 8], strides = [1, 1]} : vector<16x32xbf16> to vector<16x8xbf16>
    %cst_101 = arith.constant dense<0.000000e+00> : vector<16x8xf32>
    %316 = tpu.matmul %314, %315, %cst_101 {dimension_numbers = #tpu.dot_dimension_numbers<[1], [0], [0], [1], [0, 0, 1, 1], [], []>} : vector<16x16xbf16>, vector<16x8xbf16>, vector<16x8xf32> -> vector<16x8xf32>
    %317 = vector.extract_strided_slice %266 {offsets = [0, 24], sizes = [16, 8], strides = [1, 1]} : vector<16x32xbf16> to vector<16x8xbf16>
    %318 = vector.extract_strided_slice %267 {offsets = [0, 24], sizes = [16, 8], strides = [1, 1]} : vector<16x32xbf16> to vector<16x8xbf16>
    "tpu.trace_start"() <{level = 10 : i32, message = "qd,kd->qk"}> : () -> ()
    %cst_102 = arith.constant dense<0.000000e+00> : vector<16x16xf32>
    %319 = tpu.matmul %317, %318, %cst_102 {dimension_numbers = #tpu.dot_dimension_numbers<[1], [1], [0], [0], [0, 0, 1, 0], [], []>} : vector<16x8xbf16>, vector<16x8xbf16>, vector<16x16xf32> -> vector<16x16xf32>
    "tpu.trace_stop"() : () -> ()
    %320 = arith.addf %319, %2 : vector<16x16xf32>
    %cst_103 = arith.constant dense<0xFF800000> : vector<16xf32>
    %321 = vector.multi_reduction <maximumf>, %320, %cst_103 [1] : vector<16x16xf32> to vector<16xf32>
    %322 = vector.shape_cast %321 : vector<16xf32> to vector<16x1xf32>
    %323 = vector.broadcast %322 : vector<16x1xf32> to vector<16x16xf32>
    %324 = arith.subf %320, %323 : vector<16x16xf32>
    %325 = math.exp %324 : vector<16x16xf32>
    %cst_104 = arith.constant dense<0.000000e+00> : vector<16xf32>
    %326 = vector.multi_reduction <add>, %325, %cst_104 [1] : vector<16x16xf32> to vector<16xf32>
    %327 = vector.shape_cast %326 : vector<16xf32> to vector<16x1xf32>
    %328 = vector.broadcast %327 : vector<16x1xf32> to vector<16x16xf32>
    %329 = arith.divf %325, %328 : vector<16x16xf32>
    %330 = arith.truncf %329 : vector<16x16xf32> to vector<16x16xbf16>
    %331 = vector.extract_strided_slice %268 {offsets = [0, 24], sizes = [16, 8], strides = [1, 1]} : vector<16x32xbf16> to vector<16x8xbf16>
    %cst_105 = arith.constant dense<0.000000e+00> : vector<16x8xf32>
    %332 = tpu.matmul %330, %331, %cst_105 {dimension_numbers = #tpu.dot_dimension_numbers<[1], [0], [0], [1], [0, 0, 1, 1], [], []>} : vector<16x16xbf16>, vector<16x8xbf16>, vector<16x8xf32> -> vector<16x8xf32>
    %333 = tpu.concatenate %284, %300, %316, %332 in 1 : vector<16x8xf32>, vector<16x8xf32>, vector<16x8xf32>, vector<16x8xf32> -> vector<16x32xf32>
    %334 = arith.truncf %333 : vector<16x32xf32> to vector<16x32xbf16>
    %cst_106 = arith.constant dense<0.000000e+00> : vector<16x32xf32>
    %335 = tpu.matmul %334, %5, %cst_106 {dimension_numbers = #tpu.dot_dimension_numbers<[1], [0], [0], [1], [0, 0, 1, 1], [], []>} : vector<16x32xbf16>, vector<32x32xbf16>, vector<16x32xf32> -> vector<16x32xf32>
    %336 = vector.broadcast %12 : vector<1x32xf32> to vector<16x32xf32>
    %337 = arith.addf %335, %336 : vector<16x32xf32>
    %338 = arith.addf %260, %337 : vector<16x32xf32>
    %cst_107 = arith.constant dense<0.000000e+00> : vector<16xf32>
    %339 = vector.multi_reduction <add>, %338, %cst_107 [1] : vector<16x32xf32> to vector<16xf32>
    %340 = vector.shape_cast %339 : vector<16xf32> to vector<16x1xf32>
    %cst_108 = arith.constant 3.200000e+01 : f32
    %341 = vector.broadcast %cst_108 : f32 to vector<16x1xf32>
    %342 = arith.divf %340, %341 : vector<16x1xf32>
    %343 = vector.broadcast %342 : vector<16x1xf32> to vector<16x32xf32>
    %344 = arith.subf %338, %343 : vector<16x32xf32>
    %345 = arith.mulf %344, %344 : vector<16x32xf32>
    %cst_109 = arith.constant dense<0.000000e+00> : vector<16xf32>
    %346 = vector.multi_reduction <add>, %345, %cst_109 [1] : vector<16x32xf32> to vector<16xf32>
    %347 = vector.shape_cast %346 : vector<16xf32> to vector<16x1xf32>
    %cst_110 = arith.constant 3.200000e+01 : f32
    %348 = vector.broadcast %cst_110 : f32 to vector<16x1xf32>
    %349 = arith.divf %347, %348 : vector<16x1xf32>
    %350 = vector.broadcast %342 : vector<16x1xf32> to vector<16x32xf32>
    %351 = arith.subf %338, %350 : vector<16x32xf32>
    %cst_111 = arith.constant 9.99999974E-6 : f32
    %352 = vector.broadcast %cst_111 : f32 to vector<16x1xf32>
    %353 = arith.addf %349, %352 : vector<16x1xf32>
    %354 = math.rsqrt %353 : vector<16x1xf32>
    %355 = vector.broadcast %354 : vector<16x1xf32> to vector<16x32xf32>
    %356 = arith.mulf %351, %355 : vector<16x32xf32>
    %357 = vector.broadcast %18 : vector<1x32xf32> to vector<16x32xf32>
    %358 = arith.mulf %356, %357 : vector<16x32xf32>
    %359 = vector.broadcast %21 : vector<1x32xf32> to vector<16x32xf32>
    %360 = arith.addf %358, %359 : vector<16x32xf32>
    %361 = arith.truncf %360 : vector<16x32xf32> to vector<16x32xbf16>
    %cst_112 = arith.constant dense<0.000000e+00> : vector<16x32xf32>
    %362 = tpu.matmul %361, %6, %cst_112 {dimension_numbers = #tpu.dot_dimension_numbers<[1], [0], [0], [1], [0, 0, 1, 1], [], []>} : vector<16x32xbf16>, vector<32x32xbf16>, vector<16x32xf32> -> vector<16x32xf32>
    %363 = vector.broadcast %13 : vector<1x32xf32> to vector<16x32xf32>
    %364 = arith.addf %362, %363 : vector<16x32xf32>
    %365 = arith.truncf %364 : vector<16x32xf32> to vector<16x32xbf16>
    %366 = vector.extract_strided_slice %365 {offsets = [0, 0], sizes = [16, 8], strides = [1, 1]} : vector<16x32xbf16> to vector<16x8xbf16>
    %367 = vector.extract_strided_slice %29 {offsets = [0, 0], sizes = [16, 8], strides = [1, 1]} : vector<16x32xbf16> to vector<16x8xbf16>
    "tpu.trace_start"() <{level = 10 : i32, message = "qd,kd->qk"}> : () -> ()
    %cst_113 = arith.constant dense<0.000000e+00> : vector<16x16xf32>
    %368 = tpu.matmul %366, %367, %cst_113 {dimension_numbers = #tpu.dot_dimension_numbers<[1], [1], [0], [0], [0, 0, 1, 0], [], []>} : vector<16x8xbf16>, vector<16x8xbf16>, vector<16x16xf32> -> vector<16x16xf32>
    "tpu.trace_stop"() : () -> ()
    %369 = arith.addf %368, %3 : vector<16x16xf32>
    %cst_114 = arith.constant dense<0xFF800000> : vector<16xf32>
    %370 = vector.multi_reduction <maximumf>, %369, %cst_114 [1] : vector<16x16xf32> to vector<16xf32>
    %371 = vector.shape_cast %370 : vector<16xf32> to vector<16x1xf32>
    %372 = vector.broadcast %371 : vector<16x1xf32> to vector<16x16xf32>
    %373 = arith.subf %369, %372 : vector<16x16xf32>
    %374 = math.exp %373 : vector<16x16xf32>
    %cst_115 = arith.constant dense<0.000000e+00> : vector<16xf32>
    %375 = vector.multi_reduction <add>, %374, %cst_115 [1] : vector<16x16xf32> to vector<16xf32>
    %376 = vector.shape_cast %375 : vector<16xf32> to vector<16x1xf32>
    %377 = vector.broadcast %376 : vector<16x1xf32> to vector<16x16xf32>
    %378 = arith.divf %374, %377 : vector<16x16xf32>
    %379 = arith.truncf %378 : vector<16x16xf32> to vector<16x16xbf16>
    %380 = vector.extract_strided_slice %30 {offsets = [0, 0], sizes = [16, 8], strides = [1, 1]} : vector<16x32xbf16> to vector<16x8xbf16>
    %cst_116 = arith.constant dense<0.000000e+00> : vector<16x8xf32>
    %381 = tpu.matmul %379, %380, %cst_116 {dimension_numbers = #tpu.dot_dimension_numbers<[1], [0], [0], [1], [0, 0, 1, 1], [], []>} : vector<16x16xbf16>, vector<16x8xbf16>, vector<16x8xf32> -> vector<16x8xf32>
    %382 = vector.extract_strided_slice %365 {offsets = [0, 8], sizes = [16, 8], strides = [1, 1]} : vector<16x32xbf16> to vector<16x8xbf16>
    %383 = vector.extract_strided_slice %29 {offsets = [0, 8], sizes = [16, 8], strides = [1, 1]} : vector<16x32xbf16> to vector<16x8xbf16>
    "tpu.trace_start"() <{level = 10 : i32, message = "qd,kd->qk"}> : () -> ()
    %cst_117 = arith.constant dense<0.000000e+00> : vector<16x16xf32>
    %384 = tpu.matmul %382, %383, %cst_117 {dimension_numbers = #tpu.dot_dimension_numbers<[1], [1], [0], [0], [0, 0, 1, 0], [], []>} : vector<16x8xbf16>, vector<16x8xbf16>, vector<16x16xf32> -> vector<16x16xf32>
    "tpu.trace_stop"() : () -> ()
    %385 = arith.addf %384, %3 : vector<16x16xf32>
    %cst_118 = arith.constant dense<0xFF800000> : vector<16xf32>
    %386 = vector.multi_reduction <maximumf>, %385, %cst_118 [1] : vector<16x16xf32> to vector<16xf32>
    %387 = vector.shape_cast %386 : vector<16xf32> to vector<16x1xf32>
    %388 = vector.broadcast %387 : vector<16x1xf32> to vector<16x16xf32>
    %389 = arith.subf %385, %388 : vector<16x16xf32>
    %390 = math.exp %389 : vector<16x16xf32>
    %cst_119 = arith.constant dense<0.000000e+00> : vector<16xf32>
    %391 = vector.multi_reduction <add>, %390, %cst_119 [1] : vector<16x16xf32> to vector<16xf32>
    %392 = vector.shape_cast %391 : vector<16xf32> to vector<16x1xf32>
    %393 = vector.broadcast %392 : vector<16x1xf32> to vector<16x16xf32>
    %394 = arith.divf %390, %393 : vector<16x16xf32>
    %395 = arith.truncf %394 : vector<16x16xf32> to vector<16x16xbf16>
    %396 = vector.extract_strided_slice %30 {offsets = [0, 8], sizes = [16, 8], strides = [1, 1]} : vector<16x32xbf16> to vector<16x8xbf16>
    %cst_120 = arith.constant dense<0.000000e+00> : vector<16x8xf32>
    %397 = tpu.matmul %395, %396, %cst_120 {dimension_numbers = #tpu.dot_dimension_numbers<[1], [0], [0], [1], [0, 0, 1, 1], [], []>} : vector<16x16xbf16>, vector<16x8xbf16>, vector<16x8xf32> -> vector<16x8xf32>
    %398 = vector.extract_strided_slice %365 {offsets = [0, 16], sizes = [16, 8], strides = [1, 1]} : vector<16x32xbf16> to vector<16x8xbf16>
    %399 = vector.extract_strided_slice %29 {offsets = [0, 16], sizes = [16, 8], strides = [1, 1]} : vector<16x32xbf16> to vector<16x8xbf16>
    "tpu.trace_start"() <{level = 10 : i32, message = "qd,kd->qk"}> : () -> ()
    %cst_121 = arith.constant dense<0.000000e+00> : vector<16x16xf32>
    %400 = tpu.matmul %398, %399, %cst_121 {dimension_numbers = #tpu.dot_dimension_numbers<[1], [1], [0], [0], [0, 0, 1, 0], [], []>} : vector<16x8xbf16>, vector<16x8xbf16>, vector<16x16xf32> -> vector<16x16xf32>
    "tpu.trace_stop"() : () -> ()
    %401 = arith.addf %400, %3 : vector<16x16xf32>
    %cst_122 = arith.constant dense<0xFF800000> : vector<16xf32>
    %402 = vector.multi_reduction <maximumf>, %401, %cst_122 [1] : vector<16x16xf32> to vector<16xf32>
    %403 = vector.shape_cast %402 : vector<16xf32> to vector<16x1xf32>
    %404 = vector.broadcast %403 : vector<16x1xf32> to vector<16x16xf32>
    %405 = arith.subf %401, %404 : vector<16x16xf32>
    %406 = math.exp %405 : vector<16x16xf32>
    %cst_123 = arith.constant dense<0.000000e+00> : vector<16xf32>
    %407 = vector.multi_reduction <add>, %406, %cst_123 [1] : vector<16x16xf32> to vector<16xf32>
    %408 = vector.shape_cast %407 : vector<16xf32> to vector<16x1xf32>
    %409 = vector.broadcast %408 : vector<16x1xf32> to vector<16x16xf32>
    %410 = arith.divf %406, %409 : vector<16x16xf32>
    %411 = arith.truncf %410 : vector<16x16xf32> to vector<16x16xbf16>
    %412 = vector.extract_strided_slice %30 {offsets = [0, 16], sizes = [16, 8], strides = [1, 1]} : vector<16x32xbf16> to vector<16x8xbf16>
    %cst_124 = arith.constant dense<0.000000e+00> : vector<16x8xf32>
    %413 = tpu.matmul %411, %412, %cst_124 {dimension_numbers = #tpu.dot_dimension_numbers<[1], [0], [0], [1], [0, 0, 1, 1], [], []>} : vector<16x16xbf16>, vector<16x8xbf16>, vector<16x8xf32> -> vector<16x8xf32>
    %414 = vector.extract_strided_slice %365 {offsets = [0, 24], sizes = [16, 8], strides = [1, 1]} : vector<16x32xbf16> to vector<16x8xbf16>
    %415 = vector.extract_strided_slice %29 {offsets = [0, 24], sizes = [16, 8], strides = [1, 1]} : vector<16x32xbf16> to vector<16x8xbf16>
    "tpu.trace_start"() <{level = 10 : i32, message = "qd,kd->qk"}> : () -> ()
    %cst_125 = arith.constant dense<0.000000e+00> : vector<16x16xf32>
    %416 = tpu.matmul %414, %415, %cst_125 {dimension_numbers = #tpu.dot_dimension_numbers<[1], [1], [0], [0], [0, 0, 1, 0], [], []>} : vector<16x8xbf16>, vector<16x8xbf16>, vector<16x16xf32> -> vector<16x16xf32>
    "tpu.trace_stop"() : () -> ()
    %417 = arith.addf %416, %3 : vector<16x16xf32>
    %cst_126 = arith.constant dense<0xFF800000> : vector<16xf32>
    %418 = vector.multi_reduction <maximumf>, %417, %cst_126 [1] : vector<16x16xf32> to vector<16xf32>
    %419 = vector.shape_cast %418 : vector<16xf32> to vector<16x1xf32>
    %420 = vector.broadcast %419 : vector<16x1xf32> to vector<16x16xf32>
    %421 = arith.subf %417, %420 : vector<16x16xf32>
    %422 = math.exp %421 : vector<16x16xf32>
    %cst_127 = arith.constant dense<0.000000e+00> : vector<16xf32>
    %423 = vector.multi_reduction <add>, %422, %cst_127 [1] : vector<16x16xf32> to vector<16xf32>
    %424 = vector.shape_cast %423 : vector<16xf32> to vector<16x1xf32>
    %425 = vector.broadcast %424 : vector<16x1xf32> to vector<16x16xf32>
    %426 = arith.divf %422, %425 : vector<16x16xf32>
    %427 = arith.truncf %426 : vector<16x16xf32> to vector<16x16xbf16>
    %428 = vector.extract_strided_slice %30 {offsets = [0, 24], sizes = [16, 8], strides = [1, 1]} : vector<16x32xbf16> to vector<16x8xbf16>
    %cst_128 = arith.constant dense<0.000000e+00> : vector<16x8xf32>
    %429 = tpu.matmul %427, %428, %cst_128 {dimension_numbers = #tpu.dot_dimension_numbers<[1], [0], [0], [1], [0, 0, 1, 1], [], []>} : vector<16x16xbf16>, vector<16x8xbf16>, vector<16x8xf32> -> vector<16x8xf32>
    %430 = tpu.concatenate %381, %397, %413, %429 in 1 : vector<16x8xf32>, vector<16x8xf32>, vector<16x8xf32>, vector<16x8xf32> -> vector<16x32xf32>
    %431 = arith.truncf %430 : vector<16x32xf32> to vector<16x32xbf16>
    %cst_129 = arith.constant dense<0.000000e+00> : vector<16x32xf32>
    %432 = tpu.matmul %431, %8, %cst_129 {dimension_numbers = #tpu.dot_dimension_numbers<[1], [0], [0], [1], [0, 0, 1, 1], [], []>} : vector<16x32xbf16>, vector<32x32xbf16>, vector<16x32xf32> -> vector<16x32xf32>
    %433 = vector.broadcast %15 : vector<1x32xf32> to vector<16x32xf32>
    %434 = arith.addf %432, %433 : vector<16x32xf32>
    %435 = arith.addf %360, %434 : vector<16x32xf32>
    %cst_130 = arith.constant dense<0.000000e+00> : vector<16xf32>
    %436 = vector.multi_reduction <add>, %435, %cst_130 [1] : vector<16x32xf32> to vector<16xf32>
    %437 = vector.shape_cast %436 : vector<16xf32> to vector<16x1xf32>
    %cst_131 = arith.constant 3.200000e+01 : f32
    %438 = vector.broadcast %cst_131 : f32 to vector<16x1xf32>
    %439 = arith.divf %437, %438 : vector<16x1xf32>
    %440 = vector.broadcast %439 : vector<16x1xf32> to vector<16x32xf32>
    %441 = arith.subf %435, %440 : vector<16x32xf32>
    %442 = arith.mulf %441, %441 : vector<16x32xf32>
    %cst_132 = arith.constant dense<0.000000e+00> : vector<16xf32>
    %443 = vector.multi_reduction <add>, %442, %cst_132 [1] : vector<16x32xf32> to vector<16xf32>
    %444 = vector.shape_cast %443 : vector<16xf32> to vector<16x1xf32>
    %cst_133 = arith.constant 3.200000e+01 : f32
    %445 = vector.broadcast %cst_133 : f32 to vector<16x1xf32>
    %446 = arith.divf %444, %445 : vector<16x1xf32>
    %447 = vector.broadcast %439 : vector<16x1xf32> to vector<16x32xf32>
    %448 = arith.subf %435, %447 : vector<16x32xf32>
    %cst_134 = arith.constant 9.99999974E-6 : f32
    %449 = vector.broadcast %cst_134 : f32 to vector<16x1xf32>
    %450 = arith.addf %446, %449 : vector<16x1xf32>
    %451 = math.rsqrt %450 : vector<16x1xf32>
    %452 = vector.broadcast %451 : vector<16x1xf32> to vector<16x32xf32>
    %453 = arith.mulf %448, %452 : vector<16x32xf32>
    %454 = vector.broadcast %19 : vector<1x32xf32> to vector<16x32xf32>
    %455 = arith.mulf %453, %454 : vector<16x32xf32>
    %456 = vector.broadcast %22 : vector<1x32xf32> to vector<16x32xf32>
    %457 = arith.addf %455, %456 : vector<16x32xf32>
    %458 = arith.truncf %457 : vector<16x32xf32> to vector<16x32xbf16>
    %cst_135 = arith.constant dense<0.000000e+00> : vector<16x64xf32>
    %459 = tpu.matmul %458, %9, %cst_135 {dimension_numbers = #tpu.dot_dimension_numbers<[1], [0], [0], [1], [0, 0, 1, 1], [], []>} : vector<16x32xbf16>, vector<32x64xbf16>, vector<16x64xf32> -> vector<16x64xf32>
    %460 = vector.broadcast %16 : vector<1x64xf32> to vector<16x64xf32>
    %461 = arith.addf %459, %460 : vector<16x64xf32>
    %cst_136 = arith.constant 0.000000e+00 : f32
    %462 = vector.broadcast %cst_136 : f32 to vector<16x64xf32>
    %463 = arith.maximumf %461, %462 : vector<16x64xf32>
    %464 = arith.truncf %463 : vector<16x64xf32> to vector<16x64xbf16>
    %cst_137 = arith.constant dense<0.000000e+00> : vector<16x32xf32>
    %465 = tpu.matmul %464, %10, %cst_137 {dimension_numbers = #tpu.dot_dimension_numbers<[1], [0], [0], [1], [0, 0, 1, 1], [], []>} : vector<16x64xbf16>, vector<64x32xbf16>, vector<16x32xf32> -> vector<16x32xf32>
    %466 = vector.broadcast %17 : vector<1x32xf32> to vector<16x32xf32>
    %467 = arith.addf %465, %466 : vector<16x32xf32>
    %468 = arith.addf %457, %467 : vector<16x32xf32>
    %cst_138 = arith.constant dense<0.000000e+00> : vector<16xf32>
    %469 = vector.multi_reduction <add>, %468, %cst_138 [1] : vector<16x32xf32> to vector<16xf32>
    %470 = vector.shape_cast %469 : vector<16xf32> to vector<16x1xf32>
    %cst_139 = arith.constant 3.200000e+01 : f32
    %471 = vector.broadcast %cst_139 : f32 to vector<16x1xf32>
    %472 = arith.divf %470, %471 : vector<16x1xf32>
    %473 = vector.broadcast %472 : vector<16x1xf32> to vector<16x32xf32>
    %474 = arith.subf %468, %473 : vector<16x32xf32>
    %475 = arith.mulf %474, %474 : vector<16x32xf32>
    %cst_140 = arith.constant dense<0.000000e+00> : vector<16xf32>
    %476 = vector.multi_reduction <add>, %475, %cst_140 [1] : vector<16x32xf32> to vector<16xf32>
    %477 = vector.shape_cast %476 : vector<16xf32> to vector<16x1xf32>
    %cst_141 = arith.constant 3.200000e+01 : f32
    %478 = vector.broadcast %cst_141 : f32 to vector<16x1xf32>
    %479 = arith.divf %477, %478 : vector<16x1xf32>
    %480 = vector.broadcast %472 : vector<16x1xf32> to vector<16x32xf32>
    %481 = arith.subf %468, %480 : vector<16x32xf32>
    %cst_142 = arith.constant 9.99999974E-6 : f32
    %482 = vector.broadcast %cst_142 : f32 to vector<16x1xf32>
    %483 = arith.addf %479, %482 : vector<16x1xf32>
    %484 = math.rsqrt %483 : vector<16x1xf32>
    %485 = vector.broadcast %484 : vector<16x1xf32> to vector<16x32xf32>
    %486 = arith.mulf %481, %485 : vector<16x32xf32>
    %487 = vector.broadcast %20 : vector<1x32xf32> to vector<16x32xf32>
    %488 = arith.mulf %486, %487 : vector<16x32xf32>
    %489 = vector.broadcast %23 : vector<1x32xf32> to vector<16x32xf32>
    %490 = arith.addf %488, %489 : vector<16x32xf32>
    %cst_143 = arith.constant dense<0.000000e+00> : vector<32xf32>
    %491 = vector.multi_reduction <add>, %490, %cst_143 [0] : vector<16x32xf32> to vector<32xf32>
    %492 = vector.shape_cast %491 : vector<32xf32> to vector<1x32xf32>
    %cst_144 = arith.constant 1.600000e+01 : f32
    %493 = vector.broadcast %cst_144 : f32 to vector<1x32xf32>
    %494 = arith.divf %492, %493 : vector<1x32xf32>
    %495 = vector.broadcast %494 : vector<1x32xf32> to vector<16x32xf32>
    %496 = arith.subf %490, %495 : vector<16x32xf32>
    %497 = arith.mulf %496, %496 : vector<16x32xf32>
    %cst_145 = arith.constant dense<0.000000e+00> : vector<32xf32>
    %498 = vector.multi_reduction <add>, %497, %cst_145 [0] : vector<16x32xf32> to vector<32xf32>
    %499 = vector.shape_cast %498 : vector<32xf32> to vector<1x32xf32>
    %cst_146 = arith.constant 1.600000e+01 : f32
    %500 = vector.broadcast %cst_146 : f32 to vector<1x32xf32>
    %501 = arith.divf %499, %500 : vector<1x32xf32>
    %502 = vector.broadcast %494 : vector<1x32xf32> to vector<16x32xf32>
    %503 = arith.subf %490, %502 : vector<16x32xf32>
    %cst_147 = arith.constant 9.99999974E-6 : f32
    %504 = vector.broadcast %cst_147 : f32 to vector<1x32xf32>
    %505 = arith.addf %501, %504 : vector<1x32xf32>
    %506 = math.rsqrt %505 : vector<1x32xf32>
    %507 = vector.broadcast %506 : vector<1x32xf32> to vector<16x32xf32>
    %508 = arith.mulf %503, %507 : vector<16x32xf32>
    %c0_148 = arith.constant 0 : index
    %c0_149 = arith.constant 0 : index
    %509 = vector.load %arg5[%c0_148, %c0_149] : memref<16x32xf32, #tpu.memory_space<vmem>>, vector<16x32xf32>
    tpu.vector_store %arg5[%c0_148, %c0_149], %508 {strides = array<i32>} : memref<16x32xf32, #tpu.memory_space<vmem>>, vector<16x32xf32>,
    return
  }
}

</mosaic_0001>

<llo_original>
// kernel: tpu_custom_call.1
$region0: #{tpu_custom_call.1}
  #allocation0 [shape = 'u32[]', space=smem, size = 0x4, offset = 0x4, fixed_abs, tag = 'smem constant byte address 0x4 - core index']
  #allocation1 [shape = 'u32[144,128]{1,0:T(1,128)}', space=vmem, size = 0x12000, scoped, tag = 'internal scratch']
  %s0 = inlined_call_operand.hbm [shape: f32[16,32], index: 0, kind: input, shape index: {}]
  %s1 = inlined_call_operand.hbm [shape: f32[16,32], index: 1, kind: input, shape index: {}]
  %s2 = inlined_call_operand.hbm [shape: f32[16,256], index: 2, kind: input, shape index: {}]
  %s3 = inlined_call_operand.hbm [shape: bf16[64,896], index: 3, kind: input, shape index: {}]
  %s4 = inlined_call_operand.hbm [shape: f32[7,896], index: 4, kind: input, shape index: {}]
  %s5 = inlined_call_operand.hbm [shape: f32[16,32], index: 5, kind: output, shape index: {}]
  %s6 = sld [smem:[#allocation0]]
  $region50: #{tpu_custom_call.1} parent=0
    _
  %s8 = ssub.s32 1, %s6
  %s9 = scalar_select 0, %s8, %s6
  $region1: #{tpu_custom_call.1} parent=0
    #allocation2 [shape = 'u8[8192]{0}', space=vmem, size = 0x2000, scoped, tag = 'input window, operand 0, single buffered']
    #allocation3 [shape = 's32[1]{0}', space=sflag, size = 0x4, scoped, tag = 'scoped memory for tpu_custom_call.1']
    #allocation4 [shape = 's32[1]{0}', space=sflag, size = 0x4, scoped, tag = 'scoped memory for tpu_custom_call.1']
    #allocation5 [shape = 'u8[8192]{0}', space=vmem, size = 0x2000, scoped, tag = 'input window, operand 1, single buffered']
    #allocation6 [shape = 's32[1]{0}', space=sflag, size = 0x4, scoped, tag = 'scoped memory for tpu_custom_call.1']
    #allocation7 [shape = 'u8[16384]{0}', space=vmem, size = 0x4000, scoped, tag = 'input window, operand 2, single buffered']
    #allocation8 [shape = 'u8[114688]{0}', space=vmem, size = 0x1c000, scoped, tag = 'input window, operand 3, single buffered']
    #allocation9 [shape = 's32[1]{0}', space=sflag, size = 0x4, scoped, tag = 'scoped memory for tpu_custom_call.1']
    #allocation10 [shape = 'u8[28672]{0}', space=vmem, size = 0x7000, scoped, tag = 'input window, operand 4, single buffered']
    #allocation11 [shape = 'u8[8192]{0}', space=vmem, size = 0x2000, scoped, tag = 'output window, operand 0, single buffered']
    %10 = vsyncpa [#allocation3], 0
    %11 = vsyncpa [#allocation6], 0
    %12 = vsyncpa [#allocation9], 0
    %13 = vsyncpa [#allocation4], 0
    // Predicated region
    $region2: #{tpu_custom_call.1} parent=1 // pred_check
      _
    $region3: #{tpu_custom_call.1} parent=1 // pred_check_branch
      %15 = sbr.rel (0) target = $region5
    $region4: #{tpu_custom_call.1} parent=1 // pred_region
      %s17 = ssub.s32 256, 256
      %18 = vsyncadd [#allocation3], %s17
      %s19 = sshll.u32 [#allocation2], 4
      %s20 = int_to_ptr.vmem [resolvable:$true] %s19
      %25 = dma.hbm_to_vmem [thread:$0]  %s0, 256, %s20, [#allocation3], 128, 128, 8
    $region5: #{tpu_custom_call.1} parent=1 // pred_fallthru
      _
    // Predicated region
    $region6: #{tpu_custom_call.1} parent=1 // pred_check
      _
    $region7: #{tpu_custom_call.1} parent=1 // pred_check_branch
      %27 = sbr.rel (0) target = $region9
    $region8: #{tpu_custom_call.1} parent=1 // pred_region
      %s29 = ssub.s32 256, 256
      %30 = vsyncadd [#allocation6], %s29
      %s31 = sshll.u32 [#allocation5], 4
      %s32 = int_to_ptr.vmem [resolvable:$true] %s31
      %37 = dma.hbm_to_vmem [thread:$0]  %s1, 256, %s32, [#allocation6], 128, 128, 8
    $region9: #{tpu_custom_call.1} parent=1 // pred_fallthru
      _
    // Predicated region
    $region10: #{tpu_custom_call.1} parent=1 // pred_check
      _
    $region11: #{tpu_custom_call.1} parent=1 // pred_check_branch
      %39 = sbr.rel (0) target = $region13
    $region12: #{tpu_custom_call.1} parent=1 // pred_region
      %s41 = ssub.s32 512, 512
      %42 = vsyncadd [#allocation6], %s41
      %s43 = sshll.u32 [#allocation7], 4
      %s44 = int_to_ptr.vmem [resolvable:$true] %s43
      %49 = dma.hbm_to_vmem [thread:$0]  %s2, 512, %s44, [#allocation6], 256, 256, 16
    $region13: #{tpu_custom_call.1} parent=1 // pred_fallthru
      _
    // Predicated region
    $region14: #{tpu_custom_call.1} parent=1 // pred_check
      _
    $region15: #{tpu_custom_call.1} parent=1 // pred_check_branch
      %51 = sbr.rel (0) target = $region17
    $region16: #{tpu_custom_call.1} parent=1 // pred_region
      %s53 = ssub.s32 3584, 3584
      %54 = vsyncadd [#allocation9], %s53
      %s55 = sshll.u32 [#allocation8], 4
      %s56 = int_to_ptr.vmem [resolvable:$true] %s55
      %61 = dma.hbm_to_vmem [thread:$0]  %s3, 3584, %s56, [#allocation9], 448, 448, 28
    $region17: #{tpu_custom_call.1} parent=1 // pred_fallthru
      _
    // Predicated region
    $region18: #{tpu_custom_call.1} parent=1 // pred_check
      _
    $region19: #{tpu_custom_call.1} parent=1 // pred_check_branch
      %63 = sbr.rel (0) target = $region21
    $region20: #{tpu_custom_call.1} parent=1 // pred_region
      %s65 = ssub.s32 896, 896
      %66 = vsyncadd [#allocation9], %s65
      %s68 = sshll.u32 [#allocation10], 4
      %s69 = int_to_ptr.vmem [resolvable:$true] %s68
      %71 = dma.hbm_to_vmem [thread:$0]  %s4, 896, %s69, [#allocation9]
    $region21: #{tpu_custom_call.1} parent=1 // pred_fallthru
      _
    // Predicated region
    $region22: #{tpu_custom_call.1} parent=1 // pred_check
      _
    $region23: #{tpu_custom_call.1} parent=1 // pred_check_branch
      %73 = sbr.rel (0) target = $region25
    $region24: #{tpu_custom_call.1} parent=1 // pred_region
      %74 = dma.done [#allocation3], 256
    $region25: #{tpu_custom_call.1} parent=1 // pred_fallthru
      _
    // Predicated region
    $region26: #{tpu_custom_call.1} parent=1 // pred_check
      _
    $region27: #{tpu_custom_call.1} parent=1 // pred_check_branch
      %76 = sbr.rel (0) target = $region29
    $region28: #{tpu_custom_call.1} parent=1 // pred_region
      %77 = dma.done [#allocation6], 256
    $region29: #{tpu_custom_call.1} parent=1 // pred_fallthru
      _
    // Predicated region
    $region30: #{tpu_custom_call.1} parent=1 // pred_check
      _
    $region31: #{tpu_custom_call.1} parent=1 // pred_check_branch
      %79 = sbr.rel (0) target = $region33
    $region32: #{tpu_custom_call.1} parent=1 // pred_region
      %80 = dma.done [#allocation6], 512
    $region33: #{tpu_custom_call.1} parent=1 // pred_fallthru
      _
    // Predicated region
    $region34: #{tpu_custom_call.1} parent=1 // pred_check
      _
    $region35: #{tpu_custom_call.1} parent=1 // pred_check_branch
      %82 = sbr.rel (0) target = $region37
    $region36: #{tpu_custom_call.1} parent=1 // pred_region
      %83 = dma.done [#allocation9], 3584
    $region37: #{tpu_custom_call.1} parent=1 // pred_fallthru
      _
    // Predicated region
    $region38: #{tpu_custom_call.1} parent=1 // pred_check
      _
    $region39: #{tpu_custom_call.1} parent=1 // pred_check_branch
      %85 = sbr.rel (0) target = $region41
    $region40: #{tpu_custom_call.1} parent=1 // pred_region
      %86 = dma.done [#allocation9], 896
    $region41: #{tpu_custom_call.1} parent=1 // pred_fallthru
      _
    %v88 = vld [vmem:[#allocation2] sm:$0xff]
    %v89 = vld [vmem:[#allocation2 + $0x8] sm:$0xff]
    %v90 = vld [vmem:[#allocation5] sm:$0xff]
    %v91 = vld [vmem:[#allocation5 + $0x8] sm:$0xff]
    %v92 = vld [vmem:[#allocation7] sm:$0xff]
    %v93 = vld [vmem:[#allocation7 + $0x10] sm:$0xff]
    %v94 = vld [vmem:[#allocation7 + $0x8] sm:$0xff]
    %v95 = vld [vmem:[#allocation7 + $0x18] sm:$0xff]
    %v96 = vld [vmem:[#allocation8] sm:$0xf]
    %v97 = vld [vmem:[#allocation8 + $0x1c] sm:$0xf]
    %v98 = vld [vmem:[#allocation8 + $0x38] sm:$0xf]
    %v99 = vld [vmem:[#allocation8 + $0x54] sm:$0xf]
    %v100 = vld [vmem:[#allocation8 + $0x4] sm:$0xf]
    %v101 = vld [vmem:[#allocation8 + $0x20] sm:$0xf]
    %v102 = vld [vmem:[#allocation8 + $0x3c] sm:$0xf]
    %v103 = vld [vmem:[#allocation8 + $0x58] sm:$0xf]
    %v104 = vld [vmem:[#allocation8 + $0x8] sm:$0xf]
    %v105 = vld [vmem:[#allocation8 + $0x24] sm:$0xf]
    %v106 = vld [vmem:[#allocation8 + $0x40] sm:$0xf]
    %v107 = vld [vmem:[#allocation8 + $0x5c] sm:$0xf]
    %v108 = vld [vmem:[#allocation8 + $0xc] sm:$0xf]
    %v109 = vld [vmem:[#allocation8 + $0x28] sm:$0xf]
    %v110 = vld [vmem:[#allocation8 + $0x44] sm:$0xf]
    %v111 = vld [vmem:[#allocation8 + $0x60] sm:$0xf]
    %v112 = vld [vmem:[#allocation8 + $0x10] sm:$0xf]
    %v113 = vld [vmem:[#allocation8 + $0x2c] sm:$0xf]
    %v114 = vld [vmem:[#allocation8 + $0x48] sm:$0xf]
    %v115 = vld [vmem:[#allocation8 + $0x64] sm:$0xf]
    %v116 = vld [vmem:[#allocation8 + $0x14] sm:$0xf]
    %v117 = vld [vmem:[#allocation8 + $0x30] sm:$0xf]
    %v118 = vld [vmem:[#allocation8 + $0x4c] sm:$0xf]
    %v119 = vld [vmem:[#allocation8 + $0x68] sm:$0xf]
    %v120 = vld [vmem:[#allocation8 + $0x18] sm:$0xf]
    %v121 = vld [vmem:[#allocation8 + $0x34] sm:$0xf]
    %v122 = vld [vmem:[#allocation8 + $0x50] sm:$0xf]
    %v123 = vld [vmem:[#allocation8 + $0x6c] sm:$0xf]
    %v124 = vld [vmem:[#allocation8 + $0x88] sm:$0xf]
    %v125 = vld [vmem:[#allocation8 + $0xa4] sm:$0xf]
    %v126 = vld [vmem:[#allocation8 + $0xc0] sm:$0xf]
    %v127 = vld [vmem:[#allocation8 + $0xdc] sm:$0xf]
    %v128 = vld [vmem:[#allocation10] ss:$0 sm:$0xff]
    %v129 = vld [vmem:[#allocation10 + $0x8] ss:$0 sm:$0xff]
    %v130 = vld [vmem:[#allocation10 + $0x10] ss:$0 sm:$0xff]
    %v131 = vld [vmem:[#allocation10 + $0x18] ss:$0 sm:$0xff]
    %v132 = vld [vmem:[#allocation10 + $0x20] ss:$0 sm:$0xff]
    %v133 = vld [vmem:[#allocation10 + $0x28] ss:$0 sm:$0xff]
    %v134 = vld [vmem:[#allocation10 + $0x30] ss:$0 sm:$0xff]
    %v135 = vld [vmem:[#allocation10 + $0x1] ss:$0 sm:$0xff]
    %v136 = vld [vmem:[#allocation10 + $0x2] ss:$0 sm:$0xff]
    %v137 = vld [vmem:[#allocation10 + $0x3] ss:$0 sm:$0xff]
    %v138 = vld [vmem:[#allocation10 + $0x4] ss:$0 sm:$0xff]
    %v139 = vld [vmem:[#allocation10 + $0x5] ss:$0 sm:$0xff]
    %v140 = vld [vmem:[#allocation10 + $0x6] ss:$0 sm:$0xff]
    %v141 = vpack.c.bf16 %v91, %v90
    %v146 = vunpack.c.l.b16 %v108
    %v147 = vunpack.c.l.b16 %v109
    %v148 = vunpack.c.l.b16 %v110
    %v149 = vunpack.c.l.b16 %v111
    %v150 = vpack.c.b16 %v147, %v146
    %v151 = vpack.c.b16 %v149, %v148
    %vm154 = vcmask 261120
    %v156 = vsel %vm154, %v141, 0
    %158 = vmatprep.subr.bf16.mxu0 0
    %159 = vmatpush1.bf16.msra.mxu0 0
    %160 = vmatprep.subr.bf16.mxu0 0
    %161 = vmatpush1.bf16.msra.mxu0 0
    %162 = vmatprep.subr.bf16.mxu0 0
    %163 = vmatpush1.bf16.msra.mxu0 0
    %164 = vmatprep.subr.bf16.mxu0 0
    %165 = vmatpush1.bf16.msra.mxu0 0
    %166 = vmatprep.subr.bf16.mxu0 0
    %167 = vmatpush1.bf16.msra.mxu0 0
    %168 = vmatprep.subr.bf16.mxu0 0
    %169 = vmatpush1.bf16.msra.mxu0 0
    %170 = vmatprep.subr.bf16.mxu0 0
    %171 = vmatpush1.bf16.msra.mxu0 %v151
    %172 = vmatprep.subr.bf16.mxu0 0
    %173 = vmatpush1.bf16.msra.mxu0 %v150
    %174 = vmatprep.subr.bf16.mxu0 0
    %175 = vmatpush2.bf16.msra.mxu0 0
    %176 = vmatprep.subr.bf16.mxu0 0
    %177 = vmatpush2.bf16.msra.mxu0 0
    %178 = vmatprep.subr.bf16.mxu0 0
    %179 = vmatpush2.bf16.msra.mxu0 0
    %180 = vmatprep.subr.bf16.mxu0 0
    %181 = vmatpush2.bf16.msra.mxu0 0
    %182 = vmatprep.subr.bf16.mxu0 0
    %183 = vmatpush2.bf16.msra.mxu0 0
    %184 = vmatprep.subr.bf16.mxu0 0
    %185 = vmatpush2.bf16.msra.mxu0 0
    %186 = vmatprep.subr.bf16.mxu0 0
    %187 = vmatpush2.bf16.msra.mxu0 0
    %188 = vmatprep.subr.bf16.mxu0 0
    %189 = vmatpush2.bf16.msra.mxu0 0
    %190 = vmatprep.mubr.bf16.mxu0 0
    %191 = vmatmul.mubr.bf16.gmra.mxu0 %v156
    %v192 = vpop.f32.mrf.mxu0
    %v193 = vadd.f32 %v131, %v192
    %v194 = vpop.f32.mrf.mxu0
    %v195 = vpop.f32.mrf.mxu0
    %v196 = vadd.f32 %v131, %v195
    %v197 = vpop.f32.mrf.mxu0
    %198 = vdwg.mxu0
    %v199 = vpack.c.bf16 %v196, %v193
    %v200 = vpack.c.bf16 %v89, %v88
    %v205 = vunpack.c.l.b16 %v96
    %v206 = vunpack.c.l.b16 %v97
    %v207 = vunpack.c.l.b16 %v98
    %v208 = vunpack.c.l.b16 %v99
    %v209 = vpack.c.b16 %v206, %v205
    %v210 = vpack.c.b16 %v208, %v207
    %v214 = vsel %vm154, %v200, 0
    %216 = vmatprep.subr.bf16.mxu0 0
    %217 = vmatpush1.bf16.msra.mxu0 0
    %218 = vmatprep.subr.bf16.mxu0 0
    %219 = vmatpush1.bf16.msra.mxu0 0
    %220 = vmatprep.subr.bf16.mxu0 0
    %221 = vmatpush1.bf16.msra.mxu0 0
    %222 = vmatprep.subr.bf16.mxu0 0
    %223 = vmatpush1.bf16.msra.mxu0 0
    %224 = vmatprep.subr.bf16.mxu0 0
    %225 = vmatpush1.bf16.msra.mxu0 0
    %226 = vmatprep.subr.bf16.mxu0 0
    %227 = vmatpush1.bf16.msra.mxu0 0
    %228 = vmatprep.subr.bf16.mxu0 0
    %229 = vmatpush1.bf16.msra.mxu0 %v210
    %230 = vmatprep.subr.bf16.mxu0 0
    %231 = vmatpush1.bf16.msra.mxu0 %v209
    %232 = vmatprep.subr.bf16.mxu0 0
    %233 = vmatpush2.bf16.msra.mxu0 0
    %234 = vmatprep.subr.bf16.mxu0 0
    %235 = vmatpush2.bf16.msra.mxu0 0
    %236 = vmatprep.subr.bf16.mxu0 0
    %237 = vmatpush2.bf16.msra.mxu0 0
    %238 = vmatprep.subr.bf16.mxu0 0
    %239 = vmatpush2.bf16.msra.mxu0 0
    %240 = vmatprep.subr.bf16.mxu0 0
    %241 = vmatpush2.bf16.msra.mxu0 0
    %242 = vmatprep.subr.bf16.mxu0 0
    %243 = vmatpush2.bf16.msra.mxu0 0
    %244 = vmatprep.subr.bf16.mxu0 0
    %245 = vmatpush2.bf16.msra.mxu0 0
    %246 = vmatprep.subr.bf16.mxu0 0
    %247 = vmatpush2.bf16.msra.mxu0 0
    %248 = vmatprep.mubr.bf16.mxu0 0
    %249 = vmatmul.mubr.bf16.gmra.mxu0 %v214
    %v250 = vpop.f32.mrf.mxu0
    %v251 = vadd.f32 %v128, %v250
    %v252 = vpop.f32.mrf.mxu0
    %v253 = vpop.f32.mrf.mxu0
    %v254 = vadd.f32 %v128, %v253
    %v255 = vpop.f32.mrf.mxu0
    %256 = vdwg.mxu0
    %v257 = vpack.c.bf16 %v254, %v251
    %259 = vrot.lane.b32.xlu0 %v257, 96
    %v260 = vpop.permute.xlu0 %259
    %vm261 = vcmask 64512
    %v263 = vsel %vm261, %v257, 0
    %v266 = vsel %vm261, %v260, 0
    %268 = vmatprep.subr.bf16.mxu0 0
    %269 = vmatpush1.bf16.xpose.msra.mxu0 0
    %270 = vmatprep.subr.bf16.mxu0 0
    %271 = vmatpush1.bf16.xpose.msra.mxu0 0
    %272 = vmatprep.subr.bf16.mxu0 0
    %273 = vmatpush1.bf16.xpose.msra.mxu0 0
    %274 = vmatprep.subr.bf16.mxu0 0
    %275 = vmatpush1.bf16.xpose.msra.mxu0 0
    %276 = vmatprep.subr.bf16.mxu0 0
    %277 = vmatpush1.bf16.xpose.msra.mxu0 0
    %278 = vmatprep.subr.bf16.mxu0 0
    %279 = vmatpush1.bf16.xpose.msra.mxu0 0
    %280 = vmatprep.subr.bf16.mxu0 0
    %281 = vmatpush1.bf16.xpose.msra.mxu0 0
    %282 = vmatprep.subr.bf16.mxu0 0
    %283 = vmatpush1.bf16.xpose.msra.mxu0 %v266
    %284 = vmatprep.subr.bf16.mxu0 0
    %285 = vmatpush2.bf16.xpose.msra.mxu0 0
    %286 = vmatprep.subr.bf16.mxu0 0
    %287 = vmatpush2.bf16.xpose.msra.mxu0 0
    %288 = vmatprep.subr.bf16.mxu0 0
    %289 = vmatpush2.bf16.xpose.msra.mxu0 0
    %290 = vmatprep.subr.bf16.mxu0 0
    %291 = vmatpush2.bf16.xpose.msra.mxu0 0
    %292 = vmatprep.subr.bf16.mxu0 0
    %293 = vmatpush2.bf16.xpose.msra.mxu0 0
    %294 = vmatprep.subr.bf16.mxu0 0
    %295 = vmatpush2.bf16.xpose.msra.mxu0 0
    %296 = vmatprep.subr.bf16.mxu0 0
    %297 = vmatpush2.bf16.xpose.msra.mxu0 0
    %298 = vmatprep.subr.bf16.mxu0 0
    %299 = vmatpush2.bf16.xpose.msra.mxu0 0
    %300 = vmatprep.mubr.bf16.mxu0 0
    %301 = vmatmul.mubr.bf16.gmra.mxu0 %v263
    %v302 = vpop.f32.mrf.mxu0
    %v303 = vadd.f32 %v92, %v302
    %v304 = vpop.f32.mrf.mxu0
    %v305 = vpop.f32.mrf.mxu0
    %v306 = vadd.f32 %v93, %v305
    %v307 = vpop.f32.mrf.mxu0
    %308 = vdwg.mxu0
    %vm309 = vcmask 130048
    %v310 = vsel %vm309, %v303, -inf
    %311 = vmax.xlane.f32.xlu0 %v310
    %v312 = vpop.xlane.xlu0 %311
    %v313 = vsel %vm309, %v306, -inf
    %314 = vmax.xlane.f32.xlu0 %v313
    %v315 = vpop.xlane.xlu0 %314
    %v316 = vsub.f32 %v303, %v312
    %v317 = vsub.f32 %v306, %v315
    %v318 = vmul.f32 %v316, 1.442695
    %v319 = vpow.pop %v318
    %v320 = vmul.f32 %v317, 1.442695
    %v321 = vpow.pop %v320
    %v322 = vsel %vm309, %v319, 0.0
    %323 = vadd.xlane.f32.xlu0 %v322
    %v324 = vpop.xlane.xlu0 %323
    %v325 = vsel %vm309, %v321, 0.0
    %326 = vadd.xlane.f32.xlu0 %v325
    %v327 = vpop.xlane.xlu0 %326
    %v328 = vrcp.pop %v324
    %v329 = vmul.f32 %v319, %v328
    %v330 = vrcp.pop %v327
    %v331 = vmul.f32 %v321, %v330
    %v332 = vpack.c.bf16 %v331, %v329
    %333 = vrot.lane.b32.xlu0 %v257, 64
    %v334 = vpop.permute.xlu0 %333
    %v337 = vsel %vm309, %v332, 0
    %339 = vmatprep.subr.bf16.mxu0 0
    %340 = vmatpush1.bf16.msra.mxu0 0
    %341 = vmatprep.subr.bf16.mxu0 0
    %342 = vmatpush1.bf16.msra.mxu0 0
    %343 = vmatprep.subr.bf16.mxu0 0
    %344 = vmatpush1.bf16.msra.mxu0 0
    %345 = vmatprep.subr.bf16.mxu0 0
    %346 = vmatpush1.bf16.msra.mxu0 0
    %347 = vmatprep.subr.bf16.mxu0 0
    %348 = vmatpush1.bf16.msra.mxu0 0
    %349 = vmatprep.subr.bf16.mxu0 0
    %350 = vmatpush1.bf16.msra.mxu0 0
    %351 = vmatprep.subr.bf16.mxu0 0
    %352 = vmatpush1.bf16.msra.mxu0 0
    %353 = vmatprep.subr.bf16.mxu0 0
    %354 = vmatpush1.bf16.msra.mxu0 %v334
    %355 = vmatprep.subr.bf16.mxu0 0
    %356 = vmatpush2.bf16.msra.mxu0 0
    %357 = vmatprep.subr.bf16.mxu0 0
    %358 = vmatpush2.bf16.msra.mxu0 0
    %359 = vmatprep.subr.bf16.mxu0 0
    %360 = vmatpush2.bf16.msra.mxu0 0
    %361 = vmatprep.subr.bf16.mxu0 0
    %362 = vmatpush2.bf16.msra.mxu0 0
    %363 = vmatprep.subr.bf16.mxu0 0
    %364 = vmatpush2.bf16.msra.mxu0 0
    %365 = vmatprep.subr.bf16.mxu0 0
    %366 = vmatpush2.bf16.msra.mxu0 0
    %367 = vmatprep.subr.bf16.mxu0 0
    %368 = vmatpush2.bf16.msra.mxu0 0
    %369 = vmatprep.subr.bf16.mxu0 0
    %370 = vmatpush2.bf16.msra.mxu0 0
    %371 = vmatprep.mubr.bf16.mxu0 0
    %372 = vmatmul.mubr.bf16.gmra.mxu0 %v337
    %v373 = vpop.f32.mrf.mxu0
    %v374 = vadd.f32 0.0, %v373
    %v375 = vpop.f32.mrf.mxu0
    %v376 = vpop.f32.mrf.mxu0
    %v377 = vadd.f32 0.0, %v376
    %v378 = vpop.f32.mrf.mxu0
    %379 = vdwg.mxu0
    %380 = vrot.lane.b32.xlu0 %v257, 120
    %v381 = vpop.permute.xlu0 %380
    %382 = vrot.lane.b32.xlu0 %v257, 88
    %v383 = vpop.permute.xlu0 %382
    %v385 = vsel %vm261, %v381, 0
    %v388 = vsel %vm261, %v383, 0
    %390 = vmatprep.subr.bf16.mxu0 0
    %391 = vmatpush1.bf16.xpose.msra.mxu0 0
    %392 = vmatprep.subr.bf16.mxu0 0
    %393 = vmatpush1.bf16.xpose.msra.mxu0 0
    %394 = vmatprep.subr.bf16.mxu0 0
    %395 = vmatpush1.bf16.xpose.msra.mxu0 0
    %396 = vmatprep.subr.bf16.mxu0 0
    %397 = vmatpush1.bf16.xpose.msra.mxu0 0
    %398 = vmatprep.subr.bf16.mxu0 0
    %399 = vmatpush1.bf16.xpose.msra.mxu0 0
    %400 = vmatprep.subr.bf16.mxu0 0
    %401 = vmatpush1.bf16.xpose.msra.mxu0 0
    %402 = vmatprep.subr.bf16.mxu0 0
    %403 = vmatpush1.bf16.xpose.msra.mxu0 0
    %404 = vmatprep.subr.bf16.mxu0 0
    %405 = vmatpush1.bf16.xpose.msra.mxu0 %v388
    %406 = vmatprep.subr.bf16.mxu0 0
    %407 = vmatpush2.bf16.xpose.msra.mxu0 0
    %408 = vmatprep.subr.bf16.mxu0 0
    %409 = vmatpush2.bf16.xpose.msra.mxu0 0
    %410 = vmatprep.subr.bf16.mxu0 0
    %411 = vmatpush2.bf16.xpose.msra.mxu0 0
    %412 = vmatprep.subr.bf16.mxu0 0
    %413 = vmatpush2.bf16.xpose.msra.mxu0 0
    %414 = vmatprep.subr.bf16.mxu0 0
    %415 = vmatpush2.bf16.xpose.msra.mxu0 0
    %416 = vmatprep.subr.bf16.mxu0 0
    %417 = vmatpush2.bf16.xpose.msra.mxu0 0
    %418 = vmatprep.subr.bf16.mxu0 0
    %419 = vmatpush2.bf16.xpose.msra.mxu0 0
    %420 = vmatprep.subr.bf16.mxu0 0
    %421 = vmatpush2.bf16.xpose.msra.mxu0 0
    %422 = vmatprep.mubr.bf16.mxu0 0
    %423 = vmatmul.mubr.bf16.gmra.mxu0 %v385
    %v424 = vpop.f32.mrf.mxu0
    %v425 = vadd.f32 %v92, %v424
    %v426 = vpop.f32.mrf.mxu0
    %v427 = vpop.f32.mrf.mxu0
    %v428 = vadd.f32 %v93, %v427
    %v429 = vpop.f32.mrf.mxu0
    %430 = vdwg.mxu0
    %v431 = vsel %vm309, %v425, -inf
    %432 = vmax.xlane.f32.xlu0 %v431
    %v433 = vpop.xlane.xlu0 %432
    %v434 = vsel %vm309, %v428, -inf
    %435 = vmax.xlane.f32.xlu0 %v434
    %v436 = vpop.xlane.xlu0 %435
    %v437 = vsub.f32 %v425, %v433
    %v438 = vsub.f32 %v428, %v436
    %v439 = vmul.f32 %v437, 1.442695
    %v440 = vpow.pop %v439
    %v441 = vmul.f32 %v438, 1.442695
    %v442 = vpow.pop %v441
    %v443 = vsel %vm309, %v440, 0.0
    %444 = vadd.xlane.f32.xlu0 %v443
    %v445 = vpop.xlane.xlu0 %444
    %v446 = vsel %vm309, %v442, 0.0
    %447 = vadd.xlane.f32.xlu0 %v446
    %v448 = vpop.xlane.xlu0 %447
    %v449 = vrcp.pop %v445
    %v450 = vmul.f32 %v440, %v449
    %v451 = vrcp.pop %v448
    %v452 = vmul.f32 %v442, %v451
    %v453 = vpack.c.bf16 %v452, %v450
    %454 = vrot.lane.b32.xlu0 %v257, 56
    %v455 = vpop.permute.xlu0 %454
    %v458 = vsel %vm309, %v453, 0
    %460 = vmatprep.subr.bf16.mxu0 0
    %461 = vmatpush1.bf16.msra.mxu0 0
    %462 = vmatprep.subr.bf16.mxu0 0
    %463 = vmatpush1.bf16.msra.mxu0 0
    %464 = vmatprep.subr.bf16.mxu0 0
    %465 = vmatpush1.bf16.msra.mxu0 0
    %466 = vmatprep.subr.bf16.mxu0 0
    %467 = vmatpush1.bf16.msra.mxu0 0
    %468 = vmatprep.subr.bf16.mxu0 0
    %469 = vmatpush1.bf16.msra.mxu0 0
    %470 = vmatprep.subr.bf16.mxu0 0
    %471 = vmatpush1.bf16.msra.mxu0 0
    %472 = vmatprep.subr.bf16.mxu0 0
    %473 = vmatpush1.bf16.msra.mxu0 0
    %474 = vmatprep.subr.bf16.mxu0 0
    %475 = vmatpush1.bf16.msra.mxu0 %v455
    %476 = vmatprep.subr.bf16.mxu0 0
    %477 = vmatpush2.bf16.msra.mxu0 0
    %478 = vmatprep.subr.bf16.mxu0 0
    %479 = vmatpush2.bf16.msra.mxu0 0
    %480 = vmatprep.subr.bf16.mxu0 0
    %481 = vmatpush2.bf16.msra.mxu0 0
    %482 = vmatprep.subr.bf16.mxu0 0
    %483 = vmatpush2.bf16.msra.mxu0 0
    %484 = vmatprep.subr.bf16.mxu0 0
    %485 = vmatpush2.bf16.msra.mxu0 0
    %486 = vmatprep.subr.bf16.mxu0 0
    %487 = vmatpush2.bf16.msra.mxu0 0
    %488 = vmatprep.subr.bf16.mxu0 0
    %489 = vmatpush2.bf16.msra.mxu0 0
    %490 = vmatprep.subr.bf16.mxu0 0
    %491 = vmatpush2.bf16.msra.mxu0 0
    %492 = vmatprep.mubr.bf16.mxu0 0
    %493 = vmatmul.mubr.bf16.gmra.mxu0 %v458
    %v494 = vpop.f32.mrf.mxu0
    %v495 = vadd.f32 0.0, %v494
    %v496 = vpop.f32.mrf.mxu0
    %v497 = vpop.f32.mrf.mxu0
    %v498 = vadd.f32 0.0, %v497
    %v499 = vpop.f32.mrf.mxu0
    %500 = vdwg.mxu0
    %501 = vrot.lane.b32.xlu0 %v257, 112
    %v502 = vpop.permute.xlu0 %501
    %503 = vrot.lane.b32.xlu0 %v257, 80
    %v504 = vpop.permute.xlu0 %503
    %v506 = vsel %vm261, %v502, 0
    %v509 = vsel %vm261, %v504, 0
    %511 = vmatprep.subr.bf16.mxu0 0
    %512 = vmatpush1.bf16.xpose.msra.mxu0 0
    %513 = vmatprep.subr.bf16.mxu0 0
    %514 = vmatpush1.bf16.xpose.msra.mxu0 0
    %515 = vmatprep.subr.bf16.mxu0 0
    %516 = vmatpush1.bf16.xpose.msra.mxu0 0
    %517 = vmatprep.subr.bf16.mxu0 0
    %518 = vmatpush1.bf16.xpose.msra.mxu0 0
    %519 = vmatprep.subr.bf16.mxu0 0
    %520 = vmatpush1.bf16.xpose.msra.mxu0 0
    %521 = vmatprep.subr.bf16.mxu0 0
    %522 = vmatpush1.bf16.xpose.msra.mxu0 0
    %523 = vmatprep.subr.bf16.mxu0 0
    %524 = vmatpush1.bf16.xpose.msra.mxu0 0
    %525 = vmatprep.subr.bf16.mxu0 0
    %526 = vmatpush1.bf16.xpose.msra.mxu0 %v509
    %527 = vmatprep.subr.bf16.mxu0 0
    %528 = vmatpush2.bf16.xpose.msra.mxu0 0
    %529 = vmatprep.subr.bf16.mxu0 0
    %530 = vmatpush2.bf16.xpose.msra.mxu0 0
    %531 = vmatprep.subr.bf16.mxu0 0
    %532 = vmatpush2.bf16.xpose.msra.mxu0 0
    %533 = vmatprep.subr.bf16.mxu0 0
    %534 = vmatpush2.bf16.xpose.msra.mxu0 0
    %535 = vmatprep.subr.bf16.mxu0 0
    %536 = vmatpush2.bf16.xpose.msra.mxu0 0
    %537 = vmatprep.subr.bf16.mxu0 0
    %538 = vmatpush2.bf16.xpose.msra.mxu0 0
    %539 = vmatprep.subr.bf16.mxu0 0
    %540 = vmatpush2.bf16.xpose.msra.mxu0 0
    %541 = vmatprep.subr.bf16.mxu0 0
    %542 = vmatpush2.bf16.xpose.msra.mxu0 0
    %543 = vmatprep.mubr.bf16.mxu0 0
    %544 = vmatmul.mubr.bf16.gmra.mxu0 %v506
    %v545 = vpop.f32.mrf.mxu0
    %v546 = vadd.f32 %v92, %v545
    %v547 = vpop.f32.mrf.mxu0
    %v548 = vpop.f32.mrf.mxu0
    %v549 = vadd.f32 %v93, %v548
    %v550 = vpop.f32.mrf.mxu0
    %551 = vdwg.mxu0
    %v552 = vsel %vm309, %v546, -inf
    %553 = vmax.xlane.f32.xlu0 %v552
    %v554 = vpop.xlane.xlu0 %553
    %v555 = vsel %vm309, %v549, -inf
    %556 = vmax.xlane.f32.xlu0 %v555
    %v557 = vpop.xlane.xlu0 %556
    %v558 = vsub.f32 %v546, %v554
    %v559 = vsub.f32 %v549, %v557
    %v560 = vmul.f32 %v558, 1.442695
    %v561 = vpow.pop %v560
    %v562 = vmul.f32 %v559, 1.442695
    %v563 = vpow.pop %v562
    %v564 = vsel %vm309, %v561, 0.0
    %565 = vadd.xlane.f32.xlu0 %v564
    %v566 = vpop.xlane.xlu0 %565
    %v567 = vsel %vm309, %v563, 0.0
    %568 = vadd.xlane.f32.xlu0 %v567
    %v569 = vpop.xlane.xlu0 %568
    %v570 = vrcp.pop %v566
    %v571 = vmul.f32 %v561, %v570
    %v572 = vrcp.pop %v569
    %v573 = vmul.f32 %v563, %v572
    %v574 = vpack.c.bf16 %v573, %v571
    %575 = vrot.lane.b32.xlu0 %v257, 48
    %v576 = vpop.permute.xlu0 %575
    %v579 = vsel %vm309, %v574, 0
    %581 = vmatprep.subr.bf16.mxu0 0
    %582 = vmatpush1.bf16.msra.mxu0 0
    %583 = vmatprep.subr.bf16.mxu0 0
    %584 = vmatpush1.bf16.msra.mxu0 0
    %585 = vmatprep.subr.bf16.mxu0 0
    %586 = vmatpush1.bf16.msra.mxu0 0
    %587 = vmatprep.subr.bf16.mxu0 0
    %588 = vmatpush1.bf16.msra.mxu0 0
    %589 = vmatprep.subr.bf16.mxu0 0
    %590 = vmatpush1.bf16.msra.mxu0 0
    %591 = vmatprep.subr.bf16.mxu0 0
    %592 = vmatpush1.bf16.msra.mxu0 0
    %593 = vmatprep.subr.bf16.mxu0 0
    %594 = vmatpush1.bf16.msra.mxu0 0
    %595 = vmatprep.subr.bf16.mxu0 0
    %596 = vmatpush1.bf16.msra.mxu0 %v576
    %597 = vmatprep.subr.bf16.mxu0 0
    %598 = vmatpush2.bf16.msra.mxu0 0
    %599 = vmatprep.subr.bf16.mxu0 0
    %600 = vmatpush2.bf16.msra.mxu0 0
    %601 = vmatprep.subr.bf16.mxu0 0
    %602 = vmatpush2.bf16.msra.mxu0 0
    %603 = vmatprep.subr.bf16.mxu0 0
    %604 = vmatpush2.bf16.msra.mxu0 0
    %605 = vmatprep.subr.bf16.mxu0 0
    %606 = vmatpush2.bf16.msra.mxu0 0
    %607 = vmatprep.subr.bf16.mxu0 0
    %608 = vmatpush2.bf16.msra.mxu0 0
    %609 = vmatprep.subr.bf16.mxu0 0
    %610 = vmatpush2.bf16.msra.mxu0 0
    %611 = vmatprep.subr.bf16.mxu0 0
    %612 = vmatpush2.bf16.msra.mxu0 0
    %613 = vmatprep.mubr.bf16.mxu0 0
    %614 = vmatmul.mubr.bf16.gmra.mxu0 %v579
    %v615 = vpop.f32.mrf.mxu0
    %v616 = vadd.f32 0.0, %v615
    %v617 = vpop.f32.mrf.mxu0
    %v618 = vpop.f32.mrf.mxu0
    %v619 = vadd.f32 0.0, %v618
    %v620 = vpop.f32.mrf.mxu0
    %621 = vdwg.mxu0
    %622 = vrot.lane.b32.xlu0 %v257, 104
    %v623 = vpop.permute.xlu0 %622
    %624 = vrot.lane.b32.xlu0 %v257, 72
    %v625 = vpop.permute.xlu0 %624
    %v627 = vsel %vm261, %v623, 0
    %v630 = vsel %vm261, %v625, 0
    %632 = vmatprep.subr.bf16.mxu0 0
    %633 = vmatpush1.bf16.xpose.msra.mxu0 0
    %634 = vmatprep.subr.bf16.mxu0 0
    %635 = vmatpush1.bf16.xpose.msra.mxu0 0
    %636 = vmatprep.subr.bf16.mxu0 0
    %637 = vmatpush1.bf16.xpose.msra.mxu0 0
    %638 = vmatprep.subr.bf16.mxu0 0
    %639 = vmatpush1.bf16.xpose.msra.mxu0 0
    %640 = vmatprep.subr.bf16.mxu0 0
    %641 = vmatpush1.bf16.xpose.msra.mxu0 0
    %642 = vmatprep.subr.bf16.mxu0 0
    %643 = vmatpush1.bf16.xpose.msra.mxu0 0
    %644 = vmatprep.subr.bf16.mxu0 0
    %645 = vmatpush1.bf16.xpose.msra.mxu0 0
    %646 = vmatprep.subr.bf16.mxu0 0
    %647 = vmatpush1.bf16.xpose.msra.mxu0 %v630
    %648 = vmatprep.subr.bf16.mxu0 0
    %649 = vmatpush2.bf16.xpose.msra.mxu0 0
    %650 = vmatprep.subr.bf16.mxu0 0
    %651 = vmatpush2.bf16.xpose.msra.mxu0 0
    %652 = vmatprep.subr.bf16.mxu0 0
    %653 = vmatpush2.bf16.xpose.msra.mxu0 0
    %654 = vmatprep.subr.bf16.mxu0 0
    %655 = vmatpush2.bf16.xpose.msra.mxu0 0
    %656 = vmatprep.subr.bf16.mxu0 0
    %657 = vmatpush2.bf16.xpose.msra.mxu0 0
    %658 = vmatprep.subr.bf16.mxu0 0
    %659 = vmatpush2.bf16.xpose.msra.mxu0 0
    %660 = vmatprep.subr.bf16.mxu0 0
    %661 = vmatpush2.bf16.xpose.msra.mxu0 0
    %662 = vmatprep.subr.bf16.mxu0 0
    %663 = vmatpush2.bf16.xpose.msra.mxu0 0
    %664 = vmatprep.mubr.bf16.mxu0 0
    %665 = vmatmul.mubr.bf16.gmra.mxu0 %v627
    %v666 = vpop.f32.mrf.mxu0
    %v667 = vadd.f32 %v92, %v666
    %v668 = vpop.f32.mrf.mxu0
    %v669 = vpop.f32.mrf.mxu0
    %v670 = vadd.f32 %v93, %v669
    %v671 = vpop.f32.mrf.mxu0
    %672 = vdwg.mxu0
    %v673 = vsel %vm309, %v667, -inf
    %674 = vmax.xlane.f32.xlu0 %v673
    %v675 = vpop.xlane.xlu0 %674
    %v676 = vsel %vm309, %v670, -inf
    %677 = vmax.xlane.f32.xlu0 %v676
    %v678 = vpop.xlane.xlu0 %677
    %v679 = vsub.f32 %v667, %v675
    %v680 = vsub.f32 %v670, %v678
    %v681 = vmul.f32 %v679, 1.442695
    %v682 = vpow.pop %v681
    %v683 = vmul.f32 %v680, 1.442695
    %v684 = vpow.pop %v683
    %v685 = vsel %vm309, %v682, 0.0
    %686 = vadd.xlane.f32.xlu0 %v685
    %v687 = vpop.xlane.xlu0 %686
    %v688 = vsel %vm309, %v684, 0.0
    %689 = vadd.xlane.f32.xlu0 %v688
    %v690 = vpop.xlane.xlu0 %689
    %v691 = vrcp.pop %v687
    %v692 = vmul.f32 %v682, %v691
    %v693 = vrcp.pop %v690
    %v694 = vmul.f32 %v684, %v693
    %v695 = vpack.c.bf16 %v694, %v692
    %696 = vrot.lane.b32.xlu0 %v257, 40
    %v697 = vpop.permute.xlu0 %696
    %v700 = vsel %vm309, %v695, 0
    %702 = vmatprep.subr.bf16.mxu0 0
    %703 = vmatpush1.bf16.msra.mxu0 0
    %704 = vmatprep.subr.bf16.mxu0 0
    %705 = vmatpush1.bf16.msra.mxu0 0
    %706 = vmatprep.subr.bf16.mxu0 0
    %707 = vmatpush1.bf16.msra.mxu0 0
    %708 = vmatprep.subr.bf16.mxu0 0
    %709 = vmatpush1.bf16.msra.mxu0 0
    %710 = vmatprep.subr.bf16.mxu0 0
    %711 = vmatpush1.bf16.msra.mxu0 0
    %712 = vmatprep.subr.bf16.mxu0 0
    %713 = vmatpush1.bf16.msra.mxu0 0
    %714 = vmatprep.subr.bf16.mxu0 0
    %715 = vmatpush1.bf16.msra.mxu0 0
    %716 = vmatprep.subr.bf16.mxu0 0
    %717 = vmatpush1.bf16.msra.mxu0 %v697
    %718 = vmatprep.subr.bf16.mxu0 0
    %719 = vmatpush2.bf16.msra.mxu0 0
    %720 = vmatprep.subr.bf16.mxu0 0
    %721 = vmatpush2.bf16.msra.mxu0 0
    %722 = vmatprep.subr.bf16.mxu0 0
    %723 = vmatpush2.bf16.msra.mxu0 0
    %724 = vmatprep.subr.bf16.mxu0 0
    %725 = vmatpush2.bf16.msra.mxu0 0
    %726 = vmatprep.subr.bf16.mxu0 0
    %727 = vmatpush2.bf16.msra.mxu0 0
    %728 = vmatprep.subr.bf16.mxu0 0
    %729 = vmatpush2.bf16.msra.mxu0 0
    %730 = vmatprep.subr.bf16.mxu0 0
    %731 = vmatpush2.bf16.msra.mxu0 0
    %732 = vmatprep.subr.bf16.mxu0 0
    %733 = vmatpush2.bf16.msra.mxu0 0
    %734 = vmatprep.mubr.bf16.mxu0 0
    %735 = vmatmul.mubr.bf16.gmra.mxu0 %v700
    %v736 = vpop.f32.mrf.mxu0
    %v737 = vadd.f32 0.0, %v736
    %v738 = vpop.f32.mrf.mxu0
    %v739 = vpop.f32.mrf.mxu0
    %v740 = vadd.f32 0.0, %v739
    %v741 = vpop.f32.mrf.mxu0
    %742 = vdwg.mxu0
    %745 = vrot.lane.b32.xlu0 %v495, 8
    %v746 = vpop.permute.xlu0 %745
    %747 = vrot.lane.b32.xlu0 %v498, 8
    %v748 = vpop.permute.xlu0 %747
    %753 = vrot.lane.b32.xlu0 %v616, 16
    %v754 = vpop.permute.xlu0 %753
    %755 = vrot.lane.b32.xlu0 %v619, 16
    %v756 = vpop.permute.xlu0 %755
    %761 = vrot.lane.b32.xlu0 %v737, 24
    %v762 = vpop.permute.xlu0 %761
    %763 = vrot.lane.b32.xlu0 %v740, 24
    %v764 = vpop.permute.xlu0 %763
    %v767 = vsel %vm261, %v374, %v746
    %v768 = vsel %vm261, %v377, %v748
    %v769 = vsel %vm309, %v767, %v754
    %v770 = vsel %vm309, %v768, %v756
    %vm771 = vcmask 195584
    %v772 = vsel %vm771, %v769, %v762
    %v773 = vsel %vm771, %v770, %v764
    %v774 = vpack.c.bf16 %v773, %v772
    %v779 = vunpack.c.l.b16 %v100
    %v780 = vunpack.c.l.b16 %v101
    %v781 = vunpack.c.l.b16 %v102
    %v782 = vunpack.c.l.b16 %v103
    %v783 = vpack.c.b16 %v780, %v779
    %v784 = vpack.c.b16 %v782, %v781
    %v788 = vsel %vm154, %v774, 0
    %790 = vmatprep.subr.bf16.mxu0 0
    %791 = vmatpush1.bf16.msra.mxu0 0
    %792 = vmatprep.subr.bf16.mxu0 0
    %793 = vmatpush1.bf16.msra.mxu0 0
    %794 = vmatprep.subr.bf16.mxu0 0
    %795 = vmatpush1.bf16.msra.mxu0 0
    %796 = vmatprep.subr.bf16.mxu0 0
    %797 = vmatpush1.bf16.msra.mxu0 0
    %798 = vmatprep.subr.bf16.mxu0 0
    %799 = vmatpush1.bf16.msra.mxu0 0
    %800 = vmatprep.subr.bf16.mxu0 0
    %801 = vmatpush1.bf16.msra.mxu0 0
    %802 = vmatprep.subr.bf16.mxu0 0
    %803 = vmatpush1.bf16.msra.mxu0 %v784
    %804 = vmatprep.subr.bf16.mxu0 0
    %805 = vmatpush1.bf16.msra.mxu0 %v783
    %806 = vmatprep.subr.bf16.mxu0 0
    %807 = vmatpush2.bf16.msra.mxu0 0
    %808 = vmatprep.subr.bf16.mxu0 0
    %809 = vmatpush2.bf16.msra.mxu0 0
    %810 = vmatprep.subr.bf16.mxu0 0
    %811 = vmatpush2.bf16.msra.mxu0 0
    %812 = vmatprep.subr.bf16.mxu0 0
    %813 = vmatpush2.bf16.msra.mxu0 0
    %814 = vmatprep.subr.bf16.mxu0 0
    %815 = vmatpush2.bf16.msra.mxu0 0
    %816 = vmatprep.subr.bf16.mxu0 0
    %817 = vmatpush2.bf16.msra.mxu0 0
    %818 = vmatprep.subr.bf16.mxu0 0
    %819 = vmatpush2.bf16.msra.mxu0 0
    %820 = vmatprep.subr.bf16.mxu0 0
    %821 = vmatpush2.bf16.msra.mxu0 0
    %822 = vmatprep.mubr.bf16.mxu0 0
    %823 = vmatmul.mubr.bf16.gmra.mxu0 %v788
    %v824 = vpop.f32.mrf.mxu0
    %v825 = vadd.f32 %v129, %v824
    %v826 = vpop.f32.mrf.mxu0
    %v827 = vpop.f32.mrf.mxu0
    %v828 = vadd.f32 %v129, %v827
    %v829 = vpop.f32.mrf.mxu0
    %830 = vdwg.mxu0
    %v831 = vadd.f32 %v88, %v825
    %v832 = vadd.f32 %v89, %v828
    %v833 = vsel %vm154, %v831, 0.0
    %834 = vadd.xlane.f32.xlu0 %v833
    %v835 = vpop.xlane.xlu0 %834
    %v836 = vsel %vm154, %v832, 0.0
    %837 = vadd.xlane.f32.xlu0 %v836
    %v838 = vpop.xlane.xlu0 %837
    %v839 = vrcp.pop 32.0
    %v840 = vmul.f32 %v835, %v839
    %v841 = vmul.f32 %v838, %v839
    %v842 = vsub.f32 %v831, %v840
    %v843 = vsub.f32 %v832, %v841
    %v844 = vmul.f32 %v842, %v842
    %v845 = vmul.f32 %v843, %v843
    %v846 = vsel %vm154, %v844, 0.0
    %847 = vadd.xlane.f32.xlu0 %v846
    %v848 = vpop.xlane.xlu0 %847
    %v849 = vsel %vm154, %v845, 0.0
    %850 = vadd.xlane.f32.xlu0 %v849
    %v851 = vpop.xlane.xlu0 %850
    %v852 = vmul.f32 %v848, %v839
    %v853 = vmul.f32 %v851, %v839
    %v854 = vadd.f32 %v852, 1e-05
    %v855 = vadd.f32 %v853, 1e-05
    %v856 = vrsqrt.pop %v854
    %v857 = vrsqrt.pop %v855
    %v858 = vmul.f32 %v842, %v856
    %v859 = vmul.f32 %v843, %v857
    %v860 = vmul.f32 %v858, %v135
    %v861 = vmul.f32 %v859, %v135
    %v862 = vadd.f32 %v860, %v138
    %v863 = vadd.f32 %v861, %v138
    %v864 = vpack.c.bf16 %v863, %v862
    %v869 = vunpack.c.l.b16 %v104
    %v870 = vunpack.c.l.b16 %v105
    %v871 = vunpack.c.l.b16 %v106
    %v872 = vunpack.c.l.b16 %v107
    %v873 = vpack.c.b16 %v870, %v869
    %v874 = vpack.c.b16 %v872, %v871
    %v878 = vsel %vm154, %v864, 0
    %880 = vmatprep.subr.bf16.mxu0 0
    %881 = vmatpush1.bf16.msra.mxu0 0
    %882 = vmatprep.subr.bf16.mxu0 0
    %883 = vmatpush1.bf16.msra.mxu0 0
    %884 = vmatprep.subr.bf16.mxu0 0
    %885 = vmatpush1.bf16.msra.mxu0 0
    %886 = vmatprep.subr.bf16.mxu0 0
    %887 = vmatpush1.bf16.msra.mxu0 0
    %888 = vmatprep.subr.bf16.mxu0 0
    %889 = vmatpush1.bf16.msra.mxu0 0
    %890 = vmatprep.subr.bf16.mxu0 0
    %891 = vmatpush1.bf16.msra.mxu0 0
    %892 = vmatprep.subr.bf16.mxu0 0
    %893 = vmatpush1.bf16.msra.mxu0 %v874
    %894 = vmatprep.subr.bf16.mxu0 0
    %895 = vmatpush1.bf16.msra.mxu0 %v873
    %896 = vmatprep.subr.bf16.mxu0 0
    %897 = vmatpush2.bf16.msra.mxu0 0
    %898 = vmatprep.subr.bf16.mxu0 0
    %899 = vmatpush2.bf16.msra.mxu0 0
    %900 = vmatprep.subr.bf16.mxu0 0
    %901 = vmatpush2.bf16.msra.mxu0 0
    %902 = vmatprep.subr.bf16.mxu0 0
    %903 = vmatpush2.bf16.msra.mxu0 0
    %904 = vmatprep.subr.bf16.mxu0 0
    %905 = vmatpush2.bf16.msra.mxu0 0
    %906 = vmatprep.subr.bf16.mxu0 0
    %907 = vmatpush2.bf16.msra.mxu0 0
    %908 = vmatprep.subr.bf16.mxu0 0
    %909 = vmatpush2.bf16.msra.mxu0 0
    %910 = vmatprep.subr.bf16.mxu0 0
    %911 = vmatpush2.bf16.msra.mxu0 0
    %912 = vmatprep.mubr.bf16.mxu0 0
    %913 = vmatmul.mubr.bf16.gmra.mxu0 %v878
    %v914 = vpop.f32.mrf.mxu0
    %v915 = vadd.f32 %v130, %v914
    %v916 = vpop.f32.mrf.mxu0
    %v917 = vpop.f32.mrf.mxu0
    %v918 = vadd.f32 %v130, %v917
    %v919 = vpop.f32.mrf.mxu0
    %920 = vdwg.mxu0
    %v921 = vpack.c.bf16 %v918, %v915
    %v923 = vsel %vm261, %v921, 0
    %v926 = vsel %vm261, %v199, 0
    %928 = vmatprep.subr.bf16.mxu0 0
    %929 = vmatpush1.bf16.xpose.msra.mxu0 0
    %930 = vmatprep.subr.bf16.mxu0 0
    %931 = vmatpush1.bf16.xpose.msra.mxu0 0
    %932 = vmatprep.subr.bf16.mxu0 0
    %933 = vmatpush1.bf16.xpose.msra.mxu0 0
    %934 = vmatprep.subr.bf16.mxu0 0
    %935 = vmatpush1.bf16.xpose.msra.mxu0 0
    %936 = vmatprep.subr.bf16.mxu0 0
    %937 = vmatpush1.bf16.xpose.msra.mxu0 0
    %938 = vmatprep.subr.bf16.mxu0 0
    %939 = vmatpush1.bf16.xpose.msra.mxu0 0
    %940 = vmatprep.subr.bf16.mxu0 0
    %941 = vmatpush1.bf16.xpose.msra.mxu0 0
    %942 = vmatprep.subr.bf16.mxu0 0
    %943 = vmatpush1.bf16.xpose.msra.mxu0 %v926
    %944 = vmatprep.subr.bf16.mxu0 0
    %945 = vmatpush2.bf16.xpose.msra.mxu0 0
    %946 = vmatprep.subr.bf16.mxu0 0
    %947 = vmatpush2.bf16.xpose.msra.mxu0 0
    %948 = vmatprep.subr.bf16.mxu0 0
    %949 = vmatpush2.bf16.xpose.msra.mxu0 0
    %950 = vmatprep.subr.bf16.mxu0 0
    %951 = vmatpush2.bf16.xpose.msra.mxu0 0
    %952 = vmatprep.subr.bf16.mxu0 0
    %953 = vmatpush2.bf16.xpose.msra.mxu0 0
    %954 = vmatprep.subr.bf16.mxu0 0
    %955 = vmatpush2.bf16.xpose.msra.mxu0 0
    %956 = vmatprep.subr.bf16.mxu0 0
    %957 = vmatpush2.bf16.xpose.msra.mxu0 0
    %958 = vmatprep.subr.bf16.mxu0 0
    %959 = vmatpush2.bf16.xpose.msra.mxu0 0
    %960 = vmatprep.mubr.bf16.mxu0 0
    %961 = vmatmul.mubr.bf16.gmra.mxu0 %v923
    %v962 = vpop.f32.mrf.mxu0
    %v963 = vadd.f32 %v94, %v962
    %v964 = vpop.f32.mrf.mxu0
    %v965 = vpop.f32.mrf.mxu0
    %v966 = vadd.f32 %v95, %v965
    %v967 = vpop.f32.mrf.mxu0
    %968 = vdwg.mxu0
    %v969 = vsel %vm309, %v963, -inf
    %970 = vmax.xlane.f32.xlu0 %v969
    %v971 = vpop.xlane.xlu0 %970
    %v972 = vsel %vm309, %v966, -inf
    %973 = vmax.xlane.f32.xlu0 %v972
    %v974 = vpop.xlane.xlu0 %973
    %v975 = vsub.f32 %v963, %v971
    %v976 = vsub.f32 %v966, %v974
    %v977 = vmul.f32 %v975, 1.442695
    %v978 = vpow.pop %v977
    %v979 = vmul.f32 %v976, 1.442695
    %v980 = vpow.pop %v979
    %v981 = vsel %vm309, %v978, 0.0
    %982 = vadd.xlane.f32.xlu0 %v981
    %v983 = vpop.xlane.xlu0 %982
    %v984 = vsel %vm309, %v980, 0.0
    %985 = vadd.xlane.f32.xlu0 %v984
    %v986 = vpop.xlane.xlu0 %985
    %v987 = vrcp.pop %v983
    %v988 = vmul.f32 %v978, %v987
    %v989 = vrcp.pop %v986
    %v990 = vmul.f32 %v980, %v989
    %v991 = vpack.c.bf16 %v990, %v988
    %993 = vrot.lane.b32.xlu0 %v199, 96
    %v994 = vpop.permute.xlu0 %993
    %v997 = vsel %vm309, %v991, 0
    %999 = vmatprep.subr.bf16.mxu0 0
    %1000 = vmatpush1.bf16.msra.mxu0 0
    %1001 = vmatprep.subr.bf16.mxu0 0
    %1002 = vmatpush1.bf16.msra.mxu0 0
    %1003 = vmatprep.subr.bf16.mxu0 0
    %1004 = vmatpush1.bf16.msra.mxu0 0
    %1005 = vmatprep.subr.bf16.mxu0 0
    %1006 = vmatpush1.bf16.msra.mxu0 0
    %1007 = vmatprep.subr.bf16.mxu0 0
    %1008 = vmatpush1.bf16.msra.mxu0 0
    %1009 = vmatprep.subr.bf16.mxu0 0
    %1010 = vmatpush1.bf16.msra.mxu0 0
    %1011 = vmatprep.subr.bf16.mxu0 0
    %1012 = vmatpush1.bf16.msra.mxu0 0
    %1013 = vmatprep.subr.bf16.mxu0 0
    %1014 = vmatpush1.bf16.msra.mxu0 %v994
    %1015 = vmatprep.subr.bf16.mxu0 0
    %1016 = vmatpush2.bf16.msra.mxu0 0
    %1017 = vmatprep.subr.bf16.mxu0 0
    %1018 = vmatpush2.bf16.msra.mxu0 0
    %1019 = vmatprep.subr.bf16.mxu0 0
    %1020 = vmatpush2.bf16.msra.mxu0 0
    %1021 = vmatprep.subr.bf16.mxu0 0
    %1022 = vmatpush2.bf16.msra.mxu0 0
    %1023 = vmatprep.subr.bf16.mxu0 0
    %1024 = vmatpush2.bf16.msra.mxu0 0
    %1025 = vmatprep.subr.bf16.mxu0 0
    %1026 = vmatpush2.bf16.msra.mxu0 0
    %1027 = vmatprep.subr.bf16.mxu0 0
    %1028 = vmatpush2.bf16.msra.mxu0 0
    %1029 = vmatprep.subr.bf16.mxu0 0
    %1030 = vmatpush2.bf16.msra.mxu0 0
    %1031 = vmatprep.mubr.bf16.mxu0 0
    %1032 = vmatmul.mubr.bf16.gmra.mxu0 %v997
    %v1033 = vpop.f32.mrf.mxu0
    %v1034 = vadd.f32 0.0, %v1033
    %v1035 = vpop.f32.mrf.mxu0
    %v1036 = vpop.f32.mrf.mxu0
    %v1037 = vadd.f32 0.0, %v1036
    %v1038 = vpop.f32.mrf.mxu0
    %1039 = vdwg.mxu0
    %1041 = vrot.lane.b32.xlu0 %v921, 120
    %v1042 = vpop.permute.xlu0 %1041
    %1043 = vrot.lane.b32.xlu0 %v199, 120
    %v1044 = vpop.permute.xlu0 %1043
    %v1046 = vsel %vm261, %v1042, 0
    %v1049 = vsel %vm261, %v1044, 0
    %1051 = vmatprep.subr.bf16.mxu0 0
    %1052 = vmatpush1.bf16.xpose.msra.mxu0 0
    %1053 = vmatprep.subr.bf16.mxu0 0
    %1054 = vmatpush1.bf16.xpose.msra.mxu0 0
    %1055 = vmatprep.subr.bf16.mxu0 0
    %1056 = vmatpush1.bf16.xpose.msra.mxu0 0
    %1057 = vmatprep.subr.bf16.mxu0 0
    %1058 = vmatpush1.bf16.xpose.msra.mxu0 0
    %1059 = vmatprep.subr.bf16.mxu0 0
    %1060 = vmatpush1.bf16.xpose.msra.mxu0 0
    %1061 = vmatprep.subr.bf16.mxu0 0
    %1062 = vmatpush1.bf16.xpose.msra.mxu0 0
    %1063 = vmatprep.subr.bf16.mxu0 0
    %1064 = vmatpush1.bf16.xpose.msra.mxu0 0
    %1065 = vmatprep.subr.bf16.mxu0 0
    %1066 = vmatpush1.bf16.xpose.msra.mxu0 %v1049
    %1067 = vmatprep.subr.bf16.mxu0 0
    %1068 = vmatpush2.bf16.xpose.msra.mxu0 0
    %1069 = vmatprep.subr.bf16.mxu0 0
    %1070 = vmatpush2.bf16.xpose.msra.mxu0 0
    %1071 = vmatprep.subr.bf16.mxu0 0
    %1072 = vmatpush2.bf16.xpose.msra.mxu0 0
    %1073 = vmatprep.subr.bf16.mxu0 0
    %1074 = vmatpush2.bf16.xpose.msra.mxu0 0
    %1075 = vmatprep.subr.bf16.mxu0 0
    %1076 = vmatpush2.bf16.xpose.msra.mxu0 0
    %1077 = vmatprep.subr.bf16.mxu0 0
    %1078 = vmatpush2.bf16.xpose.msra.mxu0 0
    %1079 = vmatprep.subr.bf16.mxu0 0
    %1080 = vmatpush2.bf16.xpose.msra.mxu0 0
    %1081 = vmatprep.subr.bf16.mxu0 0
    %1082 = vmatpush2.bf16.xpose.msra.mxu0 0
    %1083 = vmatprep.mubr.bf16.mxu0 0
    %1084 = vmatmul.mubr.bf16.gmra.mxu0 %v1046
    %v1085 = vpop.f32.mrf.mxu0
    %v1086 = vadd.f32 %v94, %v1085
    %v1087 = vpop.f32.mrf.mxu0
    %v1088 = vpop.f32.mrf.mxu0
    %v1089 = vadd.f32 %v95, %v1088
    %v1090 = vpop.f32.mrf.mxu0
    %1091 = vdwg.mxu0
    %v1092 = vsel %vm309, %v1086, -inf
    %1093 = vmax.xlane.f32.xlu0 %v1092
    %v1094 = vpop.xlane.xlu0 %1093
    %v1095 = vsel %vm309, %v1089, -inf
    %1096 = vmax.xlane.f32.xlu0 %v1095
    %v1097 = vpop.xlane.xlu0 %1096
    %v1098 = vsub.f32 %v1086, %v1094
    %v1099 = vsub.f32 %v1089, %v1097
    %v1100 = vmul.f32 %v1098, 1.442695
    %v1101 = vpow.pop %v1100
    %v1102 = vmul.f32 %v1099, 1.442695
    %v1103 = vpow.pop %v1102
    %v1104 = vsel %vm309, %v1101, 0.0
    %1105 = vadd.xlane.f32.xlu0 %v1104
    %v1106 = vpop.xlane.xlu0 %1105
    %v1107 = vsel %vm309, %v1103, 0.0
    %1108 = vadd.xlane.f32.xlu0 %v1107
    %v1109 = vpop.xlane.xlu0 %1108
    %v1110 = vrcp.pop %v1106
    %v1111 = vmul.f32 %v1101, %v1110
    %v1112 = vrcp.pop %v1109
    %v1113 = vmul.f32 %v1103, %v1112
    %v1114 = vpack.c.bf16 %v1113, %v1111
    %1115 = vrot.lane.b32.xlu0 %v199, 88
    %v1116 = vpop.permute.xlu0 %1115
    %v1119 = vsel %vm309, %v1114, 0
    %1121 = vmatprep.subr.bf16.mxu0 0
    %1122 = vmatpush1.bf16.msra.mxu0 0
    %1123 = vmatprep.subr.bf16.mxu0 0
    %1124 = vmatpush1.bf16.msra.mxu0 0
    %1125 = vmatprep.subr.bf16.mxu0 0
    %1126 = vmatpush1.bf16.msra.mxu0 0
    %1127 = vmatprep.subr.bf16.mxu0 0
    %1128 = vmatpush1.bf16.msra.mxu0 0
    %1129 = vmatprep.subr.bf16.mxu0 0
    %1130 = vmatpush1.bf16.msra.mxu0 0
    %1131 = vmatprep.subr.bf16.mxu0 0
    %1132 = vmatpush1.bf16.msra.mxu0 0
    %1133 = vmatprep.subr.bf16.mxu0 0
    %1134 = vmatpush1.bf16.msra.mxu0 0
    %1135 = vmatprep.subr.bf16.mxu0 0
    %1136 = vmatpush1.bf16.msra.mxu0 %v1116
    %1137 = vmatprep.subr.bf16.mxu0 0
    %1138 = vmatpush2.bf16.msra.mxu0 0
    %1139 = vmatprep.subr.bf16.mxu0 0
    %1140 = vmatpush2.bf16.msra.mxu0 0
    %1141 = vmatprep.subr.bf16.mxu0 0
    %1142 = vmatpush2.bf16.msra.mxu0 0
    %1143 = vmatprep.subr.bf16.mxu0 0
    %1144 = vmatpush2.bf16.msra.mxu0 0
    %1145 = vmatprep.subr.bf16.mxu0 0
    %1146 = vmatpush2.bf16.msra.mxu0 0
    %1147 = vmatprep.subr.bf16.mxu0 0
    %1148 = vmatpush2.bf16.msra.mxu0 0
    %1149 = vmatprep.subr.bf16.mxu0 0
    %1150 = vmatpush2.bf16.msra.mxu0 0
    %1151 = vmatprep.subr.bf16.mxu0 0
    %1152 = vmatpush2.bf16.msra.mxu0 0
    %1153 = vmatprep.mubr.bf16.mxu0 0
    %1154 = vmatmul.mubr.bf16.gmra.mxu0 %v1119
    %v1155 = vpop.f32.mrf.mxu0
    %v1156 = vadd.f32 0.0, %v1155
    %v1157 = vpop.f32.mrf.mxu0
    %v1158 = vpop.f32.mrf.mxu0
    %v1159 = vadd.f32 0.0, %v1158
    %v1160 = vpop.f32.mrf.mxu0
    %1161 = vdwg.mxu0
    %1162 = vrot.lane.b32.xlu0 %v921, 112
    %v1163 = vpop.permute.xlu0 %1162
    %1164 = vrot.lane.b32.xlu0 %v199, 112
    %v1165 = vpop.permute.xlu0 %1164
    %v1167 = vsel %vm261, %v1163, 0
    %v1170 = vsel %vm261, %v1165, 0
    %1172 = vmatprep.subr.bf16.mxu0 0
    %1173 = vmatpush1.bf16.xpose.msra.mxu0 0
    %1174 = vmatprep.subr.bf16.mxu0 0
    %1175 = vmatpush1.bf16.xpose.msra.mxu0 0
    %1176 = vmatprep.subr.bf16.mxu0 0
    %1177 = vmatpush1.bf16.xpose.msra.mxu0 0
    %1178 = vmatprep.subr.bf16.mxu0 0
    %1179 = vmatpush1.bf16.xpose.msra.mxu0 0
    %1180 = vmatprep.subr.bf16.mxu0 0
    %1181 = vmatpush1.bf16.xpose.msra.mxu0 0
    %1182 = vmatprep.subr.bf16.mxu0 0
    %1183 = vmatpush1.bf16.xpose.msra.mxu0 0
    %1184 = vmatprep.subr.bf16.mxu0 0
    %1185 = vmatpush1.bf16.xpose.msra.mxu0 0
    %1186 = vmatprep.subr.bf16.mxu0 0
    %1187 = vmatpush1.bf16.xpose.msra.mxu0 %v1170
    %1188 = vmatprep.subr.bf16.mxu0 0
    %1189 = vmatpush2.bf16.xpose.msra.mxu0 0
    %1190 = vmatprep.subr.bf16.mxu0 0
    %1191 = vmatpush2.bf16.xpose.msra.mxu0 0
    %1192 = vmatprep.subr.bf16.mxu0 0
    %1193 = vmatpush2.bf16.xpose.msra.mxu0 0
    %1194 = vmatprep.subr.bf16.mxu0 0
    %1195 = vmatpush2.bf16.xpose.msra.mxu0 0
    %1196 = vmatprep.subr.bf16.mxu0 0
    %1197 = vmatpush2.bf16.xpose.msra.mxu0 0
    %1198 = vmatprep.subr.bf16.mxu0 0
    %1199 = vmatpush2.bf16.xpose.msra.mxu0 0
    %1200 = vmatprep.subr.bf16.mxu0 0
    %1201 = vmatpush2.bf16.xpose.msra.mxu0 0
    %1202 = vmatprep.subr.bf16.mxu0 0
    %1203 = vmatpush2.bf16.xpose.msra.mxu0 0
    %1204 = vmatprep.mubr.bf16.mxu0 0
    %1205 = vmatmul.mubr.bf16.gmra.mxu0 %v1167
    %v1206 = vpop.f32.mrf.mxu0
    %v1207 = vadd.f32 %v94, %v1206
    %v1208 = vpop.f32.mrf.mxu0
    %v1209 = vpop.f32.mrf.mxu0
    %v1210 = vadd.f32 %v95, %v1209
    %v1211 = vpop.f32.mrf.mxu0
    %1212 = vdwg.mxu0
    %v1213 = vsel %vm309, %v1207, -inf
    %1214 = vmax.xlane.f32.xlu0 %v1213
    %v1215 = vpop.xlane.xlu0 %1214
    %v1216 = vsel %vm309, %v1210, -inf
    %1217 = vmax.xlane.f32.xlu0 %v1216
    %v1218 = vpop.xlane.xlu0 %1217
    %v1219 = vsub.f32 %v1207, %v1215
    %v1220 = vsub.f32 %v1210, %v1218
    %v1221 = vmul.f32 %v1219, 1.442695
    %v1222 = vpow.pop %v1221
    %v1223 = vmul.f32 %v1220, 1.442695
    %v1224 = vpow.pop %v1223
    %v1225 = vsel %vm309, %v1222, 0.0
    %1226 = vadd.xlane.f32.xlu0 %v1225
    %v1227 = vpop.xlane.xlu0 %1226
    %v1228 = vsel %vm309, %v1224, 0.0
    %1229 = vadd.xlane.f32.xlu0 %v1228
    %v1230 = vpop.xlane.xlu0 %1229
    %v1231 = vrcp.pop %v1227
    %v1232 = vmul.f32 %v1222, %v1231
    %v1233 = vrcp.pop %v1230
    %v1234 = vmul.f32 %v1224, %v1233
    %v1235 = vpack.c.bf16 %v1234, %v1232
    %1236 = vrot.lane.b32.xlu0 %v199, 80
    %v1237 = vpop.permute.xlu0 %1236
    %v1240 = vsel %vm309, %v1235, 0
    %1242 = vmatprep.subr.bf16.mxu0 0
    %1243 = vmatpush1.bf16.msra.mxu0 0
    %1244 = vmatprep.subr.bf16.mxu0 0
    %1245 = vmatpush1.bf16.msra.mxu0 0
    %1246 = vmatprep.subr.bf16.mxu0 0
    %1247 = vmatpush1.bf16.msra.mxu0 0
    %1248 = vmatprep.subr.bf16.mxu0 0
    %1249 = vmatpush1.bf16.msra.mxu0 0
    %1250 = vmatprep.subr.bf16.mxu0 0
    %1251 = vmatpush1.bf16.msra.mxu0 0
    %1252 = vmatprep.subr.bf16.mxu0 0
    %1253 = vmatpush1.bf16.msra.mxu0 0
    %1254 = vmatprep.subr.bf16.mxu0 0
    %1255 = vmatpush1.bf16.msra.mxu0 0
    %1256 = vmatprep.subr.bf16.mxu0 0
    %1257 = vmatpush1.bf16.msra.mxu0 %v1237
    %1258 = vmatprep.subr.bf16.mxu0 0
    %1259 = vmatpush2.bf16.msra.mxu0 0
    %1260 = vmatprep.subr.bf16.mxu0 0
    %1261 = vmatpush2.bf16.msra.mxu0 0
    %1262 = vmatprep.subr.bf16.mxu0 0
    %1263 = vmatpush2.bf16.msra.mxu0 0
    %1264 = vmatprep.subr.bf16.mxu0 0
    %1265 = vmatpush2.bf16.msra.mxu0 0
    %1266 = vmatprep.subr.bf16.mxu0 0
    %1267 = vmatpush2.bf16.msra.mxu0 0
    %1268 = vmatprep.subr.bf16.mxu0 0
    %1269 = vmatpush2.bf16.msra.mxu0 0
    %1270 = vmatprep.subr.bf16.mxu0 0
    %1271 = vmatpush2.bf16.msra.mxu0 0
    %1272 = vmatprep.subr.bf16.mxu0 0
    %1273 = vmatpush2.bf16.msra.mxu0 0
    %1274 = vmatprep.mubr.bf16.mxu0 0
    %1275 = vmatmul.mubr.bf16.gmra.mxu0 %v1240
    %v1276 = vpop.f32.mrf.mxu0
    %v1277 = vadd.f32 0.0, %v1276
    %v1278 = vpop.f32.mrf.mxu0
    %v1279 = vpop.f32.mrf.mxu0
    %v1280 = vadd.f32 0.0, %v1279
    %v1281 = vpop.f32.mrf.mxu0
    %1282 = vdwg.mxu0
    %1283 = vrot.lane.b32.xlu0 %v921, 104
    %v1284 = vpop.permute.xlu0 %1283
    %1285 = vrot.lane.b32.xlu0 %v199, 104
    %v1286 = vpop.permute.xlu0 %1285
    %v1288 = vsel %vm261, %v1284, 0
    %v1291 = vsel %vm261, %v1286, 0
    %1293 = vmatprep.subr.bf16.mxu0 0
    %1294 = vmatpush1.bf16.xpose.msra.mxu0 0
    %1295 = vmatprep.subr.bf16.mxu0 0
    %1296 = vmatpush1.bf16.xpose.msra.mxu0 0
    %1297 = vmatprep.subr.bf16.mxu0 0
    %1298 = vmatpush1.bf16.xpose.msra.mxu0 0
    %1299 = vmatprep.subr.bf16.mxu0 0
    %1300 = vmatpush1.bf16.xpose.msra.mxu0 0
    %1301 = vmatprep.subr.bf16.mxu0 0
    %1302 = vmatpush1.bf16.xpose.msra.mxu0 0
    %1303 = vmatprep.subr.bf16.mxu0 0
    %1304 = vmatpush1.bf16.xpose.msra.mxu0 0
    %1305 = vmatprep.subr.bf16.mxu0 0
    %1306 = vmatpush1.bf16.xpose.msra.mxu0 0
    %1307 = vmatprep.subr.bf16.mxu0 0
    %1308 = vmatpush1.bf16.xpose.msra.mxu0 %v1291
    %1309 = vmatprep.subr.bf16.mxu0 0
    %1310 = vmatpush2.bf16.xpose.msra.mxu0 0
    %1311 = vmatprep.subr.bf16.mxu0 0
    %1312 = vmatpush2.bf16.xpose.msra.mxu0 0
    %1313 = vmatprep.subr.bf16.mxu0 0
    %1314 = vmatpush2.bf16.xpose.msra.mxu0 0
    %1315 = vmatprep.subr.bf16.mxu0 0
    %1316 = vmatpush2.bf16.xpose.msra.mxu0 0
    %1317 = vmatprep.subr.bf16.mxu0 0
    %1318 = vmatpush2.bf16.xpose.msra.mxu0 0
    %1319 = vmatprep.subr.bf16.mxu0 0
    %1320 = vmatpush2.bf16.xpose.msra.mxu0 0
    %1321 = vmatprep.subr.bf16.mxu0 0
    %1322 = vmatpush2.bf16.xpose.msra.mxu0 0
    %1323 = vmatprep.subr.bf16.mxu0 0
    %1324 = vmatpush2.bf16.xpose.msra.mxu0 0
    %1325 = vmatprep.mubr.bf16.mxu0 0
    %1326 = vmatmul.mubr.bf16.gmra.mxu0 %v1288
    %v1327 = vpop.f32.mrf.mxu0
    %v1328 = vadd.f32 %v94, %v1327
    %v1329 = vpop.f32.mrf.mxu0
    %v1330 = vpop.f32.mrf.mxu0
    %v1331 = vadd.f32 %v95, %v1330
    %v1332 = vpop.f32.mrf.mxu0
    %1333 = vdwg.mxu0
    %v1334 = vsel %vm309, %v1328, -inf
    %1335 = vmax.xlane.f32.xlu0 %v1334
    %v1336 = vpop.xlane.xlu0 %1335
    %v1337 = vsel %vm309, %v1331, -inf
    %1338 = vmax.xlane.f32.xlu0 %v1337
    %v1339 = vpop.xlane.xlu0 %1338
    %v1340 = vsub.f32 %v1328, %v1336
    %v1341 = vsub.f32 %v1331, %v1339
    %v1342 = vmul.f32 %v1340, 1.442695
    %v1343 = vpow.pop %v1342
    %v1344 = vmul.f32 %v1341, 1.442695
    %v1345 = vpow.pop %v1344
    %v1346 = vsel %vm309, %v1343, 0.0
    %1347 = vadd.xlane.f32.xlu0 %v1346
    %v1348 = vpop.xlane.xlu0 %1347
    %v1349 = vsel %vm309, %v1345, 0.0
    %1350 = vadd.xlane.f32.xlu0 %v1349
    %v1351 = vpop.xlane.xlu0 %1350
    %v1352 = vrcp.pop %v1348
    %v1353 = vmul.f32 %v1343, %v1352
    %v1354 = vrcp.pop %v1351
    %v1355 = vmul.f32 %v1345, %v1354
    %v1356 = vpack.c.bf16 %v1355, %v1353
    %1357 = vrot.lane.b32.xlu0 %v199, 72
    %v1358 = vpop.permute.xlu0 %1357
    %v1361 = vsel %vm309, %v1356, 0
    %1363 = vmatprep.subr.bf16.mxu0 0
    %1364 = vmatpush1.bf16.msra.mxu0 0
    %1365 = vmatprep.subr.bf16.mxu0 0
    %1366 = vmatpush1.bf16.msra.mxu0 0
    %1367 = vmatprep.subr.bf16.mxu0 0
    %1368 = vmatpush1.bf16.msra.mxu0 0
    %1369 = vmatprep.subr.bf16.mxu0 0
    %1370 = vmatpush1.bf16.msra.mxu0 0
    %1371 = vmatprep.subr.bf16.mxu0 0
    %1372 = vmatpush1.bf16.msra.mxu0 0
    %1373 = vmatprep.subr.bf16.mxu0 0
    %1374 = vmatpush1.bf16.msra.mxu0 0
    %1375 = vmatprep.subr.bf16.mxu0 0
    %1376 = vmatpush1.bf16.msra.mxu0 0
    %1377 = vmatprep.subr.bf16.mxu0 0
    %1378 = vmatpush1.bf16.msra.mxu0 %v1358
    %1379 = vmatprep.subr.bf16.mxu0 0
    %1380 = vmatpush2.bf16.msra.mxu0 0
    %1381 = vmatprep.subr.bf16.mxu0 0
    %1382 = vmatpush2.bf16.msra.mxu0 0
    %1383 = vmatprep.subr.bf16.mxu0 0
    %1384 = vmatpush2.bf16.msra.mxu0 0
    %1385 = vmatprep.subr.bf16.mxu0 0
    %1386 = vmatpush2.bf16.msra.mxu0 0
    %1387 = vmatprep.subr.bf16.mxu0 0
    %1388 = vmatpush2.bf16.msra.mxu0 0
    %1389 = vmatprep.subr.bf16.mxu0 0
    %1390 = vmatpush2.bf16.msra.mxu0 0
    %1391 = vmatprep.subr.bf16.mxu0 0
    %1392 = vmatpush2.bf16.msra.mxu0 0
    %1393 = vmatprep.subr.bf16.mxu0 0
    %1394 = vmatpush2.bf16.msra.mxu0 0
    %1395 = vmatprep.mubr.bf16.mxu0 0
    %1396 = vmatmul.mubr.bf16.gmra.mxu0 %v1361
    %v1397 = vpop.f32.mrf.mxu0
    %v1398 = vadd.f32 0.0, %v1397
    %v1399 = vpop.f32.mrf.mxu0
    %v1400 = vpop.f32.mrf.mxu0
    %v1401 = vadd.f32 0.0, %v1400
    %v1402 = vpop.f32.mrf.mxu0
    %1403 = vdwg.mxu0
    %1406 = vrot.lane.b32.xlu0 %v1156, 8
    %v1407 = vpop.permute.xlu0 %1406
    %1408 = vrot.lane.b32.xlu0 %v1159, 8
    %v1409 = vpop.permute.xlu0 %1408
    %1414 = vrot.lane.b32.xlu0 %v1277, 16
    %v1415 = vpop.permute.xlu0 %1414
    %1416 = vrot.lane.b32.xlu0 %v1280, 16
    %v1417 = vpop.permute.xlu0 %1416
    %1422 = vrot.lane.b32.xlu0 %v1398, 24
    %v1423 = vpop.permute.xlu0 %1422
    %1424 = vrot.lane.b32.xlu0 %v1401, 24
    %v1425 = vpop.permute.xlu0 %1424
    %v1428 = vsel %vm261, %v1034, %v1407
    %v1429 = vsel %vm261, %v1037, %v1409
    %v1430 = vsel %vm309, %v1428, %v1415
    %v1431 = vsel %vm309, %v1429, %v1417
    %v1432 = vsel %vm771, %v1430, %v1423
    %v1433 = vsel %vm771, %v1431, %v1425
    %v1434 = vpack.c.bf16 %v1433, %v1432
    %v1439 = vunpack.c.l.b16 %v112
    %v1440 = vunpack.c.l.b16 %v113
    %v1441 = vunpack.c.l.b16 %v114
    %v1442 = vunpack.c.l.b16 %v115
    %v1443 = vpack.c.b16 %v1440, %v1439
    %v1444 = vpack.c.b16 %v1442, %v1441
    %v1448 = vsel %vm154, %v1434, 0
    %1450 = vmatprep.subr.bf16.mxu0 0
    %1451 = vmatpush1.bf16.msra.mxu0 0
    %1452 = vmatprep.subr.bf16.mxu0 0
    %1453 = vmatpush1.bf16.msra.mxu0 0
    %1454 = vmatprep.subr.bf16.mxu0 0
    %1455 = vmatpush1.bf16.msra.mxu0 0
    %1456 = vmatprep.subr.bf16.mxu0 0
    %1457 = vmatpush1.bf16.msra.mxu0 0
    %1458 = vmatprep.subr.bf16.mxu0 0
    %1459 = vmatpush1.bf16.msra.mxu0 0
    %1460 = vmatprep.subr.bf16.mxu0 0
    %1461 = vmatpush1.bf16.msra.mxu0 0
    %1462 = vmatprep.subr.bf16.mxu0 0
    %1463 = vmatpush1.bf16.msra.mxu0 %v1444
    %1464 = vmatprep.subr.bf16.mxu0 0
    %1465 = vmatpush1.bf16.msra.mxu0 %v1443
    %1466 = vmatprep.subr.bf16.mxu0 0
    %1467 = vmatpush2.bf16.msra.mxu0 0
    %1468 = vmatprep.subr.bf16.mxu0 0
    %1469 = vmatpush2.bf16.msra.mxu0 0
    %1470 = vmatprep.subr.bf16.mxu0 0
    %1471 = vmatpush2.bf16.msra.mxu0 0
    %1472 = vmatprep.subr.bf16.mxu0 0
    %1473 = vmatpush2.bf16.msra.mxu0 0
    %1474 = vmatprep.subr.bf16.mxu0 0
    %1475 = vmatpush2.bf16.msra.mxu0 0
    %1476 = vmatprep.subr.bf16.mxu0 0
    %1477 = vmatpush2.bf16.msra.mxu0 0
    %1478 = vmatprep.subr.bf16.mxu0 0
    %1479 = vmatpush2.bf16.msra.mxu0 0
    %1480 = vmatprep.subr.bf16.mxu0 0
    %1481 = vmatpush2.bf16.msra.mxu0 0
    %1482 = vmatprep.mubr.bf16.mxu0 0
    %1483 = vmatmul.mubr.bf16.gmra.mxu0 %v1448
    %v1484 = vpop.f32.mrf.mxu0
    %v1485 = vadd.f32 %v132, %v1484
    %v1486 = vpop.f32.mrf.mxu0
    %v1487 = vpop.f32.mrf.mxu0
    %v1488 = vadd.f32 %v132, %v1487
    %v1489 = vpop.f32.mrf.mxu0
    %1490 = vdwg.mxu0
    %v1491 = vadd.f32 %v862, %v1485
    %v1492 = vadd.f32 %v863, %v1488
    %v1493 = vsel %vm154, %v1491, 0.0
    %1494 = vadd.xlane.f32.xlu0 %v1493
    %v1495 = vpop.xlane.xlu0 %1494
    %v1496 = vsel %vm154, %v1492, 0.0
    %1497 = vadd.xlane.f32.xlu0 %v1496
    %v1498 = vpop.xlane.xlu0 %1497
    %v1499 = vmul.f32 %v1495, %v839
    %v1500 = vmul.f32 %v1498, %v839
    %v1501 = vsub.f32 %v1491, %v1499
    %v1502 = vsub.f32 %v1492, %v1500
    %v1503 = vmul.f32 %v1501, %v1501
    %v1504 = vmul.f32 %v1502, %v1502
    %v1505 = vsel %vm154, %v1503, 0.0
    %1506 = vadd.xlane.f32.xlu0 %v1505
    %v1507 = vpop.xlane.xlu0 %1506
    %v1508 = vsel %vm154, %v1504, 0.0
    %1509 = vadd.xlane.f32.xlu0 %v1508
    %v1510 = vpop.xlane.xlu0 %1509
    %v1511 = vmul.f32 %v1507, %v839
    %v1512 = vmul.f32 %v1510, %v839
    %v1513 = vadd.f32 %v1511, 1e-05
    %v1514 = vadd.f32 %v1512, 1e-05
    %v1515 = vrsqrt.pop %v1513
    %v1516 = vrsqrt.pop %v1514
    %v1517 = vmul.f32 %v1501, %v1515
    %v1518 = vmul.f32 %v1502, %v1516
    %v1519 = vmul.f32 %v1517, %v136
    %v1520 = vmul.f32 %v1518, %v136
    %v1521 = vadd.f32 %v1519, %v139
    %v1522 = vadd.f32 %v1520, %v139
    %v1523 = vpack.c.bf16 %v1522, %v1521
    %v1528 = vunpack.c.l.b16 %v116
    %v1529 = vunpack.c.l.b16 %v117
    %v1530 = vunpack.c.l.b16 %v118
    %v1531 = vunpack.c.l.b16 %v119
    %v1532 = vpack.c.b16 %v1529, %v1528
    %v1533 = vpack.c.b16 %v1531, %v1530
    %v1537 = vsel %vm154, %v1523, 0
    %1539 = vmatprep.subr.bf16.mxu0 0
    %1540 = vmatpush1.bf16.msra.mxu0 0
    %1541 = vmatprep.subr.bf16.mxu0 0
    %1542 = vmatpush1.bf16.msra.mxu0 0
    %1543 = vmatprep.subr.bf16.mxu0 0
    %1544 = vmatpush1.bf16.msra.mxu0 0
    %1545 = vmatprep.subr.bf16.mxu0 0
    %1546 = vmatpush1.bf16.msra.mxu0 0
    %1547 = vmatprep.subr.bf16.mxu0 0
    %1548 = vmatpush1.bf16.msra.mxu0 0
    %1549 = vmatprep.subr.bf16.mxu0 0
    %1550 = vmatpush1.bf16.msra.mxu0 0
    %1551 = vmatprep.subr.bf16.mxu0 0
    %1552 = vmatpush1.bf16.msra.mxu0 %v1533
    %1553 = vmatprep.subr.bf16.mxu0 0
    %1554 = vmatpush1.bf16.msra.mxu0 %v1532
    %1555 = vmatprep.subr.bf16.mxu0 0
    %1556 = vmatpush2.bf16.msra.mxu0 0
    %1557 = vmatprep.subr.bf16.mxu0 0
    %1558 = vmatpush2.bf16.msra.mxu0 0
    %1559 = vmatprep.subr.bf16.mxu0 0
    %1560 = vmatpush2.bf16.msra.mxu0 0
    %1561 = vmatprep.subr.bf16.mxu0 0
    %1562 = vmatpush2.bf16.msra.mxu0 0
    %1563 = vmatprep.subr.bf16.mxu0 0
    %1564 = vmatpush2.bf16.msra.mxu0 0
    %1565 = vmatprep.subr.bf16.mxu0 0
    %1566 = vmatpush2.bf16.msra.mxu0 0
    %1567 = vmatprep.subr.bf16.mxu0 0
    %1568 = vmatpush2.bf16.msra.mxu0 0
    %1569 = vmatprep.subr.bf16.mxu0 0
    %1570 = vmatpush2.bf16.msra.mxu0 0
    %1571 = vmatprep.mubr.bf16.mxu0 0
    %1572 = vmatmul.mubr.bf16.gmra.mxu0 %v1537
    %v1573 = vpop.f32.mrf.mxu0
    %v1574 = vadd.f32 %v133, %v1573
    %v1575 = vpop.f32.mrf.mxu0
    %v1576 = vpop.f32.mrf.mxu0
    %v1577 = vadd.f32 %v133, %v1576
    %v1578 = vpop.f32.mrf.mxu0
    %1579 = vdwg.mxu0
    %v1580 = vmax.f32 %v1574, 0.0
    %v1581 = vmax.f32 %v1577, 0.0
    %v1582 = vpack.c.bf16 %v1581, %v1580
    %v1591 = vunpack.c.l.b16 %v120
    %v1592 = vunpack.c.l.b16 %v121
    %v1593 = vunpack.c.l.b16 %v122
    %v1594 = vunpack.c.l.b16 %v123
    %v1595 = vunpack.c.l.b16 %v124
    %v1596 = vunpack.c.l.b16 %v125
    %v1597 = vunpack.c.l.b16 %v126
    %v1598 = vunpack.c.l.b16 %v127
    %v1599 = vpack.c.b16 %v1592, %v1591
    %v1600 = vpack.c.b16 %v1594, %v1593
    %v1601 = vpack.c.b16 %v1596, %v1595
    %v1602 = vpack.c.b16 %v1598, %v1597
    %vm1607 = vcmask 523264
    %v1609 = vsel %vm1607, %v1582, 0
    %1611 = vmatprep.subr.bf16.mxu0 0
    %1612 = vmatpush1.bf16.msra.mxu0 0
    %1613 = vmatprep.subr.bf16.mxu0 0
    %1614 = vmatpush1.bf16.msra.mxu0 0
    %1615 = vmatprep.subr.bf16.mxu0 0
    %1616 = vmatpush1.bf16.msra.mxu0 0
    %1617 = vmatprep.subr.bf16.mxu0 0
    %1618 = vmatpush1.bf16.msra.mxu0 0
    %1619 = vmatprep.subr.bf16.mxu0 0
    %1620 = vmatpush1.bf16.msra.mxu0 %v1602
    %1621 = vmatprep.subr.bf16.mxu0 0
    %1622 = vmatpush1.bf16.msra.mxu0 %v1601
    %1623 = vmatprep.subr.bf16.mxu0 0
    %1624 = vmatpush1.bf16.msra.mxu0 %v1600
    %1625 = vmatprep.subr.bf16.mxu0 0
    %1626 = vmatpush1.bf16.msra.mxu0 %v1599
    %1627 = vmatprep.subr.bf16.mxu0 0
    %1628 = vmatpush2.bf16.msra.mxu0 0
    %1629 = vmatprep.subr.bf16.mxu0 0
    %1630 = vmatpush2.bf16.msra.mxu0 0
    %1631 = vmatprep.subr.bf16.mxu0 0
    %1632 = vmatpush2.bf16.msra.mxu0 0
    %1633 = vmatprep.subr.bf16.mxu0 0
    %1634 = vmatpush2.bf16.msra.mxu0 0
    %1635 = vmatprep.subr.bf16.mxu0 0
    %1636 = vmatpush2.bf16.msra.mxu0 0
    %1637 = vmatprep.subr.bf16.mxu0 0
    %1638 = vmatpush2.bf16.msra.mxu0 0
    %1639 = vmatprep.subr.bf16.mxu0 0
    %1640 = vmatpush2.bf16.msra.mxu0 0
    %1641 = vmatprep.subr.bf16.mxu0 0
    %1642 = vmatpush2.bf16.msra.mxu0 0
    %1643 = vmatprep.mubr.bf16.mxu0 0
    %1644 = vmatmul.mubr.bf16.gmra.mxu0 %v1609
    %v1645 = vpop.f32.mrf.mxu0
    %v1646 = vadd.f32 %v134, %v1645
    %v1647 = vpop.f32.mrf.mxu0
    %v1648 = vpop.f32.mrf.mxu0
    %v1649 = vadd.f32 %v134, %v1648
    %v1650 = vpop.f32.mrf.mxu0
    %1651 = vdwg.mxu0
    %v1652 = vadd.f32 %v1521, %v1646
    %v1653 = vadd.f32 %v1522, %v1649
    %v1654 = vsel %vm154, %v1652, 0.0
    %1655 = vadd.xlane.f32.xlu0 %v1654
    %v1656 = vpop.xlane.xlu0 %1655
    %v1657 = vsel %vm154, %v1653, 0.0
    %1658 = vadd.xlane.f32.xlu0 %v1657
    %v1659 = vpop.xlane.xlu0 %1658
    %v1660 = vmul.f32 %v1656, %v839
    %v1661 = vmul.f32 %v1659, %v839
    %v1662 = vsub.f32 %v1652, %v1660
    %v1663 = vsub.f32 %v1653, %v1661
    %v1664 = vmul.f32 %v1662, %v1662
    %v1665 = vmul.f32 %v1663, %v1663
    %v1666 = vsel %vm154, %v1664, 0.0
    %1667 = vadd.xlane.f32.xlu0 %v1666
    %v1668 = vpop.xlane.xlu0 %1667
    %v1669 = vsel %vm154, %v1665, 0.0
    %1670 = vadd.xlane.f32.xlu0 %v1669
    %v1671 = vpop.xlane.xlu0 %1670
    %v1672 = vmul.f32 %v1668, %v839
    %v1673 = vmul.f32 %v1671, %v839
    %v1674 = vadd.f32 %v1672, 1e-05
    %v1675 = vadd.f32 %v1673, 1e-05
    %v1676 = vrsqrt.pop %v1674
    %v1677 = vrsqrt.pop %v1675
    %v1678 = vmul.f32 %v1662, %v1676
    %v1679 = vmul.f32 %v1663, %v1677
    %v1680 = vmul.f32 %v1678, %v137
    %v1681 = vmul.f32 %v1679, %v137
    %v1682 = vadd.f32 %v1680, %v140
    %v1683 = vadd.f32 %v1681, %v140
    %v1684 = vpack.c.bf16 %v1683, %v1682
    %v1686 = vsel %vm154, %v1684, 0
    %1688 = vmatprep.subr.bf16.mxu0 0
    %1689 = vmatpush1.bf16.msra.mxu0 0
    %1690 = vmatprep.subr.bf16.mxu0 0
    %1691 = vmatpush1.bf16.msra.mxu0 0
    %1692 = vmatprep.subr.bf16.mxu0 0
    %1693 = vmatpush1.bf16.msra.mxu0 0
    %1694 = vmatprep.subr.bf16.mxu0 0
    %1695 = vmatpush1.bf16.msra.mxu0 0
    %1696 = vmatprep.subr.bf16.mxu0 0
    %1697 = vmatpush1.bf16.msra.mxu0 0
    %1698 = vmatprep.subr.bf16.mxu0 0
    %1699 = vmatpush1.bf16.msra.mxu0 0
    %1700 = vmatprep.subr.bf16.mxu0 0
    %1701 = vmatpush1.bf16.msra.mxu0 %v210
    %1702 = vmatprep.subr.bf16.mxu0 0
    %1703 = vmatpush1.bf16.msra.mxu0 %v209
    %1704 = vmatprep.subr.bf16.mxu0 0
    %1705 = vmatpush2.bf16.msra.mxu0 0
    %1706 = vmatprep.subr.bf16.mxu0 0
    %1707 = vmatpush2.bf16.msra.mxu0 0
    %1708 = vmatprep.subr.bf16.mxu0 0
    %1709 = vmatpush2.bf16.msra.mxu0 0
    %1710 = vmatprep.subr.bf16.mxu0 0
    %1711 = vmatpush2.bf16.msra.mxu0 0
    %1712 = vmatprep.subr.bf16.mxu0 0
    %1713 = vmatpush2.bf16.msra.mxu0 0
    %1714 = vmatprep.subr.bf16.mxu0 0
    %1715 = vmatpush2.bf16.msra.mxu0 0
    %1716 = vmatprep.subr.bf16.mxu0 0
    %1717 = vmatpush2.bf16.msra.mxu0 0
    %1718 = vmatprep.subr.bf16.mxu0 0
    %1719 = vmatpush2.bf16.msra.mxu0 0
    %1720 = vmatprep.mubr.bf16.mxu0 0
    %1721 = vmatmul.mubr.bf16.gmra.mxu0 %v1686
    %v1722 = vpop.f32.mrf.mxu0
    %v1723 = vadd.f32 %v128, %v1722
    %v1724 = vpop.f32.mrf.mxu0
    %v1725 = vpop.f32.mrf.mxu0
    %v1726 = vadd.f32 %v128, %v1725
    %v1727 = vpop.f32.mrf.mxu0
    %1728 = vdwg.mxu0
    %v1729 = vpack.c.bf16 %v1726, %v1723
    %1731 = vrot.lane.b32.xlu0 %v1729, 96
    %v1732 = vpop.permute.xlu0 %1731
    %v1734 = vsel %vm261, %v1729, 0
    %v1737 = vsel %vm261, %v1732, 0
    %1739 = vmatprep.subr.bf16.mxu0 0
    %1740 = vmatpush1.bf16.xpose.msra.mxu0 0
    %1741 = vmatprep.subr.bf16.mxu0 0
    %1742 = vmatpush1.bf16.xpose.msra.mxu0 0
    %1743 = vmatprep.subr.bf16.mxu0 0
    %1744 = vmatpush1.bf16.xpose.msra.mxu0 0
    %1745 = vmatprep.subr.bf16.mxu0 0
    %1746 = vmatpush1.bf16.xpose.msra.mxu0 0
    %1747 = vmatprep.subr.bf16.mxu0 0
    %1748 = vmatpush1.bf16.xpose.msra.mxu0 0
    %1749 = vmatprep.subr.bf16.mxu0 0
    %1750 = vmatpush1.bf16.xpose.msra.mxu0 0
    %1751 = vmatprep.subr.bf16.mxu0 0
    %1752 = vmatpush1.bf16.xpose.msra.mxu0 0
    %1753 = vmatprep.subr.bf16.mxu0 0
    %1754 = vmatpush1.bf16.xpose.msra.mxu0 %v1737
    %1755 = vmatprep.subr.bf16.mxu0 0
    %1756 = vmatpush2.bf16.xpose.msra.mxu0 0
    %1757 = vmatprep.subr.bf16.mxu0 0
    %1758 = vmatpush2.bf16.xpose.msra.mxu0 0
    %1759 = vmatprep.subr.bf16.mxu0 0
    %1760 = vmatpush2.bf16.xpose.msra.mxu0 0
    %1761 = vmatprep.subr.bf16.mxu0 0
    %1762 = vmatpush2.bf16.xpose.msra.mxu0 0
    %1763 = vmatprep.subr.bf16.mxu0 0
    %1764 = vmatpush2.bf16.xpose.msra.mxu0 0
    %1765 = vmatprep.subr.bf16.mxu0 0
    %1766 = vmatpush2.bf16.xpose.msra.mxu0 0
    %1767 = vmatprep.subr.bf16.mxu0 0
    %1768 = vmatpush2.bf16.xpose.msra.mxu0 0
    %1769 = vmatprep.subr.bf16.mxu0 0
    %1770 = vmatpush2.bf16.xpose.msra.mxu0 0
    %1771 = vmatprep.mubr.bf16.mxu0 0
    %1772 = vmatmul.mubr.bf16.gmra.mxu0 %v1734
    %v1773 = vpop.f32.mrf.mxu0
    %v1774 = vadd.f32 %v92, %v1773
    %v1775 = vpop.f32.mrf.mxu0
    %v1776 = vpop.f32.mrf.mxu0
    %v1777 = vadd.f32 %v93, %v1776
    %v1778 = vpop.f32.mrf.mxu0
    %1779 = vdwg.mxu0
    %v1780 = vsel %vm309, %v1774, -inf
    %1781 = vmax.xlane.f32.xlu0 %v1780
    %v1782 = vpop.xlane.xlu0 %1781
    %v1783 = vsel %vm309, %v1777, -inf
    %1784 = vmax.xlane.f32.xlu0 %v1783
    %v1785 = vpop.xlane.xlu0 %1784
    %v1786 = vsub.f32 %v1774, %v1782
    %v1787 = vsub.f32 %v1777, %v1785
    %v1788 = vmul.f32 %v1786, 1.442695
    %v1789 = vpow.pop %v1788
    %v1790 = vmul.f32 %v1787, 1.442695
    %v1791 = vpow.pop %v1790
    %v1792 = vsel %vm309, %v1789, 0.0
    %1793 = vadd.xlane.f32.xlu0 %v1792
    %v1794 = vpop.xlane.xlu0 %1793
    %v1795 = vsel %vm309, %v1791, 0.0
    %1796 = vadd.xlane.f32.xlu0 %v1795
    %v1797 = vpop.xlane.xlu0 %1796
    %v1798 = vrcp.pop %v1794
    %v1799 = vmul.f32 %v1789, %v1798
    %v1800 = vrcp.pop %v1797
    %v1801 = vmul.f32 %v1791, %v1800
    %v1802 = vpack.c.bf16 %v1801, %v1799
    %1803 = vrot.lane.b32.xlu0 %v1729, 64
    %v1804 = vpop.permute.xlu0 %1803
    %v1807 = vsel %vm309, %v1802, 0
    %1809 = vmatprep.subr.bf16.mxu0 0
    %1810 = vmatpush1.bf16.msra.mxu0 0
    %1811 = vmatprep.subr.bf16.mxu0 0
    %1812 = vmatpush1.bf16.msra.mxu0 0
    %1813 = vmatprep.subr.bf16.mxu0 0
    %1814 = vmatpush1.bf16.msra.mxu0 0
    %1815 = vmatprep.subr.bf16.mxu0 0
    %1816 = vmatpush1.bf16.msra.mxu0 0
    %1817 = vmatprep.subr.bf16.mxu0 0
    %1818 = vmatpush1.bf16.msra.mxu0 0
    %1819 = vmatprep.subr.bf16.mxu0 0
    %1820 = vmatpush1.bf16.msra.mxu0 0
    %1821 = vmatprep.subr.bf16.mxu0 0
    %1822 = vmatpush1.bf16.msra.mxu0 0
    %1823 = vmatprep.subr.bf16.mxu0 0
    %1824 = vmatpush1.bf16.msra.mxu0 %v1804
    %1825 = vmatprep.subr.bf16.mxu0 0
    %1826 = vmatpush2.bf16.msra.mxu0 0
    %1827 = vmatprep.subr.bf16.mxu0 0
    %1828 = vmatpush2.bf16.msra.mxu0 0
    %1829 = vmatprep.subr.bf16.mxu0 0
    %1830 = vmatpush2.bf16.msra.mxu0 0
    %1831 = vmatprep.subr.bf16.mxu0 0
    %1832 = vmatpush2.bf16.msra.mxu0 0
    %1833 = vmatprep.subr.bf16.mxu0 0
    %1834 = vmatpush2.bf16.msra.mxu0 0
    %1835 = vmatprep.subr.bf16.mxu0 0
    %1836 = vmatpush2.bf16.msra.mxu0 0
    %1837 = vmatprep.subr.bf16.mxu0 0
    %1838 = vmatpush2.bf16.msra.mxu0 0
    %1839 = vmatprep.subr.bf16.mxu0 0
    %1840 = vmatpush2.bf16.msra.mxu0 0
    %1841 = vmatprep.mubr.bf16.mxu0 0
    %1842 = vmatmul.mubr.bf16.gmra.mxu0 %v1807
    %v1843 = vpop.f32.mrf.mxu0
    %v1844 = vadd.f32 0.0, %v1843
    %v1845 = vpop.f32.mrf.mxu0
    %v1846 = vpop.f32.mrf.mxu0
    %v1847 = vadd.f32 0.0, %v1846
    %v1848 = vpop.f32.mrf.mxu0
    %1849 = vdwg.mxu0
    %1850 = vrot.lane.b32.xlu0 %v1729, 120
    %v1851 = vpop.permute.xlu0 %1850
    %1852 = vrot.lane.b32.xlu0 %v1729, 88
    %v1853 = vpop.permute.xlu0 %1852
    %v1855 = vsel %vm261, %v1851, 0
    %v1858 = vsel %vm261, %v1853, 0
    %1860 = vmatprep.subr.bf16.mxu0 0
    %1861 = vmatpush1.bf16.xpose.msra.mxu0 0
    %1862 = vmatprep.subr.bf16.mxu0 0
    %1863 = vmatpush1.bf16.xpose.msra.mxu0 0
    %1864 = vmatprep.subr.bf16.mxu0 0
    %1865 = vmatpush1.bf16.xpose.msra.mxu0 0
    %1866 = vmatprep.subr.bf16.mxu0 0
    %1867 = vmatpush1.bf16.xpose.msra.mxu0 0
    %1868 = vmatprep.subr.bf16.mxu0 0
    %1869 = vmatpush1.bf16.xpose.msra.mxu0 0
    %1870 = vmatprep.subr.bf16.mxu0 0
    %1871 = vmatpush1.bf16.xpose.msra.mxu0 0
    %1872 = vmatprep.subr.bf16.mxu0 0
    %1873 = vmatpush1.bf16.xpose.msra.mxu0 0
    %1874 = vmatprep.subr.bf16.mxu0 0
    %1875 = vmatpush1.bf16.xpose.msra.mxu0 %v1858
    %1876 = vmatprep.subr.bf16.mxu0 0
    %1877 = vmatpush2.bf16.xpose.msra.mxu0 0
    %1878 = vmatprep.subr.bf16.mxu0 0
    %1879 = vmatpush2.bf16.xpose.msra.mxu0 0
    %1880 = vmatprep.subr.bf16.mxu0 0
    %1881 = vmatpush2.bf16.xpose.msra.mxu0 0
    %1882 = vmatprep.subr.bf16.mxu0 0
    %1883 = vmatpush2.bf16.xpose.msra.mxu0 0
    %1884 = vmatprep.subr.bf16.mxu0 0
    %1885 = vmatpush2.bf16.xpose.msra.mxu0 0
    %1886 = vmatprep.subr.bf16.mxu0 0
    %1887 = vmatpush2.bf16.xpose.msra.mxu0 0
    %1888 = vmatprep.subr.bf16.mxu0 0
    %1889 = vmatpush2.bf16.xpose.msra.mxu0 0
    %1890 = vmatprep.subr.bf16.mxu0 0
    %1891 = vmatpush2.bf16.xpose.msra.mxu0 0
    %1892 = vmatprep.mubr.bf16.mxu0 0
    %1893 = vmatmul.mubr.bf16.gmra.mxu0 %v1855
    %v1894 = vpop.f32.mrf.mxu0
    %v1895 = vadd.f32 %v92, %v1894
    %v1896 = vpop.f32.mrf.mxu0
    %v1897 = vpop.f32.mrf.mxu0
    %v1898 = vadd.f32 %v93, %v1897
    %v1899 = vpop.f32.mrf.mxu0
    %1900 = vdwg.mxu0
    %v1901 = vsel %vm309, %v1895, -inf
    %1902 = vmax.xlane.f32.xlu0 %v1901
    %v1903 = vpop.xlane.xlu0 %1902
    %v1904 = vsel %vm309, %v1898, -inf
    %1905 = vmax.xlane.f32.xlu0 %v1904
    %v1906 = vpop.xlane.xlu0 %1905
    %v1907 = vsub.f32 %v1895, %v1903
    %v1908 = vsub.f32 %v1898, %v1906
    %v1909 = vmul.f32 %v1907, 1.442695
    %v1910 = vpow.pop %v1909
    %v1911 = vmul.f32 %v1908, 1.442695
    %v1912 = vpow.pop %v1911
    %v1913 = vsel %vm309, %v1910, 0.0
    %1914 = vadd.xlane.f32.xlu0 %v1913
    %v1915 = vpop.xlane.xlu0 %1914
    %v1916 = vsel %vm309, %v1912, 0.0
    %1917 = vadd.xlane.f32.xlu0 %v1916
    %v1918 = vpop.xlane.xlu0 %1917
    %v1919 = vrcp.pop %v1915
    %v1920 = vmul.f32 %v1910, %v1919
    %v1921 = vrcp.pop %v1918
    %v1922 = vmul.f32 %v1912, %v1921
    %v1923 = vpack.c.bf16 %v1922, %v1920
    %1924 = vrot.lane.b32.xlu0 %v1729, 56
    %v1925 = vpop.permute.xlu0 %1924
    %v1928 = vsel %vm309, %v1923, 0
    %1930 = vmatprep.subr.bf16.mxu0 0
    %1931 = vmatpush1.bf16.msra.mxu0 0
    %1932 = vmatprep.subr.bf16.mxu0 0
    %1933 = vmatpush1.bf16.msra.mxu0 0
    %1934 = vmatprep.subr.bf16.mxu0 0
    %1935 = vmatpush1.bf16.msra.mxu0 0
    %1936 = vmatprep.subr.bf16.mxu0 0
    %1937 = vmatpush1.bf16.msra.mxu0 0
    %1938 = vmatprep.subr.bf16.mxu0 0
    %1939 = vmatpush1.bf16.msra.mxu0 0
    %1940 = vmatprep.subr.bf16.mxu0 0
    %1941 = vmatpush1.bf16.msra.mxu0 0
    %1942 = vmatprep.subr.bf16.mxu0 0
    %1943 = vmatpush1.bf16.msra.mxu0 0
    %1944 = vmatprep.subr.bf16.mxu0 0
    %1945 = vmatpush1.bf16.msra.mxu0 %v1925
    %1946 = vmatprep.subr.bf16.mxu0 0
    %1947 = vmatpush2.bf16.msra.mxu0 0
    %1948 = vmatprep.subr.bf16.mxu0 0
    %1949 = vmatpush2.bf16.msra.mxu0 0
    %1950 = vmatprep.subr.bf16.mxu0 0
    %1951 = vmatpush2.bf16.msra.mxu0 0
    %1952 = vmatprep.subr.bf16.mxu0 0
    %1953 = vmatpush2.bf16.msra.mxu0 0
    %1954 = vmatprep.subr.bf16.mxu0 0
    %1955 = vmatpush2.bf16.msra.mxu0 0
    %1956 = vmatprep.subr.bf16.mxu0 0
    %1957 = vmatpush2.bf16.msra.mxu0 0
    %1958 = vmatprep.subr.bf16.mxu0 0
    %1959 = vmatpush2.bf16.msra.mxu0 0
    %1960 = vmatprep.subr.bf16.mxu0 0
    %1961 = vmatpush2.bf16.msra.mxu0 0
    %1962 = vmatprep.mubr.bf16.mxu0 0
    %1963 = vmatmul.mubr.bf16.gmra.mxu0 %v1928
    %v1964 = vpop.f32.mrf.mxu0
    %v1965 = vadd.f32 0.0, %v1964
    %v1966 = vpop.f32.mrf.mxu0
    %v1967 = vpop.f32.mrf.mxu0
    %v1968 = vadd.f32 0.0, %v1967
    %v1969 = vpop.f32.mrf.mxu0
    %1970 = vdwg.mxu0
    %1971 = vrot.lane.b32.xlu0 %v1729, 112
    %v1972 = vpop.permute.xlu0 %1971
    %1973 = vrot.lane.b32.xlu0 %v1729, 80
    %v1974 = vpop.permute.xlu0 %1973
    %v1976 = vsel %vm261, %v1972, 0
    %v1979 = vsel %vm261, %v1974, 0
    %1981 = vmatprep.subr.bf16.mxu0 0
    %1982 = vmatpush1.bf16.xpose.msra.mxu0 0
    %1983 = vmatprep.subr.bf16.mxu0 0
    %1984 = vmatpush1.bf16.xpose.msra.mxu0 0
    %1985 = vmatprep.subr.bf16.mxu0 0
    %1986 = vmatpush1.bf16.xpose.msra.mxu0 0
    %1987 = vmatprep.subr.bf16.mxu0 0
    %1988 = vmatpush1.bf16.xpose.msra.mxu0 0
    %1989 = vmatprep.subr.bf16.mxu0 0
    %1990 = vmatpush1.bf16.xpose.msra.mxu0 0
    %1991 = vmatprep.subr.bf16.mxu0 0
    %1992 = vmatpush1.bf16.xpose.msra.mxu0 0
    %1993 = vmatprep.subr.bf16.mxu0 0
    %1994 = vmatpush1.bf16.xpose.msra.mxu0 0
    %1995 = vmatprep.subr.bf16.mxu0 0
    %1996 = vmatpush1.bf16.xpose.msra.mxu0 %v1979
    %1997 = vmatprep.subr.bf16.mxu0 0
    %1998 = vmatpush2.bf16.xpose.msra.mxu0 0
    %1999 = vmatprep.subr.bf16.mxu0 0
    %2000 = vmatpush2.bf16.xpose.msra.mxu0 0
    %2001 = vmatprep.subr.bf16.mxu0 0
    %2002 = vmatpush2.bf16.xpose.msra.mxu0 0
    %2003 = vmatprep.subr.bf16.mxu0 0
    %2004 = vmatpush2.bf16.xpose.msra.mxu0 0
    %2005 = vmatprep.subr.bf16.mxu0 0
    %2006 = vmatpush2.bf16.xpose.msra.mxu0 0
    %2007 = vmatprep.subr.bf16.mxu0 0
    %2008 = vmatpush2.bf16.xpose.msra.mxu0 0
    %2009 = vmatprep.subr.bf16.mxu0 0
    %2010 = vmatpush2.bf16.xpose.msra.mxu0 0
    %2011 = vmatprep.subr.bf16.mxu0 0
    %2012 = vmatpush2.bf16.xpose.msra.mxu0 0
    %2013 = vmatprep.mubr.bf16.mxu0 0
    %2014 = vmatmul.mubr.bf16.gmra.mxu0 %v1976
    %v2015 = vpop.f32.mrf.mxu0
    %v2016 = vadd.f32 %v92, %v2015
    %v2017 = vpop.f32.mrf.mxu0
    %v2018 = vpop.f32.mrf.mxu0
    %v2019 = vadd.f32 %v93, %v2018
    %v2020 = vpop.f32.mrf.mxu0
    %2021 = vdwg.mxu0
    %v2022 = vsel %vm309, %v2016, -inf
    %2023 = vmax.xlane.f32.xlu0 %v2022
    %v2024 = vpop.xlane.xlu0 %2023
    %v2025 = vsel %vm309, %v2019, -inf
    %2026 = vmax.xlane.f32.xlu0 %v2025
    %v2027 = vpop.xlane.xlu0 %2026
    %v2028 = vsub.f32 %v2016, %v2024
    %v2029 = vsub.f32 %v2019, %v2027
    %v2030 = vmul.f32 %v2028, 1.442695
    %v2031 = vpow.pop %v2030
    %v2032 = vmul.f32 %v2029, 1.442695
    %v2033 = vpow.pop %v2032
    %v2034 = vsel %vm309, %v2031, 0.0
    %2035 = vadd.xlane.f32.xlu0 %v2034
    %v2036 = vpop.xlane.xlu0 %2035
    %v2037 = vsel %vm309, %v2033, 0.0
    %2038 = vadd.xlane.f32.xlu0 %v2037
    %v2039 = vpop.xlane.xlu0 %2038
    %v2040 = vrcp.pop %v2036
    %v2041 = vmul.f32 %v2031, %v2040
    %v2042 = vrcp.pop %v2039
    %v2043 = vmul.f32 %v2033, %v2042
    %v2044 = vpack.c.bf16 %v2043, %v2041
    %2045 = vrot.lane.b32.xlu0 %v1729, 48
    %v2046 = vpop.permute.xlu0 %2045
    %v2049 = vsel %vm309, %v2044, 0
    %2051 = vmatprep.subr.bf16.mxu0 0
    %2052 = vmatpush1.bf16.msra.mxu0 0
    %2053 = vmatprep.subr.bf16.mxu0 0
    %2054 = vmatpush1.bf16.msra.mxu0 0
    %2055 = vmatprep.subr.bf16.mxu0 0
    %2056 = vmatpush1.bf16.msra.mxu0 0
    %2057 = vmatprep.subr.bf16.mxu0 0
    %2058 = vmatpush1.bf16.msra.mxu0 0
    %2059 = vmatprep.subr.bf16.mxu0 0
    %2060 = vmatpush1.bf16.msra.mxu0 0
    %2061 = vmatprep.subr.bf16.mxu0 0
    %2062 = vmatpush1.bf16.msra.mxu0 0
    %2063 = vmatprep.subr.bf16.mxu0 0
    %2064 = vmatpush1.bf16.msra.mxu0 0
    %2065 = vmatprep.subr.bf16.mxu0 0
    %2066 = vmatpush1.bf16.msra.mxu0 %v2046
    %2067 = vmatprep.subr.bf16.mxu0 0
    %2068 = vmatpush2.bf16.msra.mxu0 0
    %2069 = vmatprep.subr.bf16.mxu0 0
    %2070 = vmatpush2.bf16.msra.mxu0 0
    %2071 = vmatprep.subr.bf16.mxu0 0
    %2072 = vmatpush2.bf16.msra.mxu0 0
    %2073 = vmatprep.subr.bf16.mxu0 0
    %2074 = vmatpush2.bf16.msra.mxu0 0
    %2075 = vmatprep.subr.bf16.mxu0 0
    %2076 = vmatpush2.bf16.msra.mxu0 0
    %2077 = vmatprep.subr.bf16.mxu0 0
    %2078 = vmatpush2.bf16.msra.mxu0 0
    %2079 = vmatprep.subr.bf16.mxu0 0
    %2080 = vmatpush2.bf16.msra.mxu0 0
    %2081 = vmatprep.subr.bf16.mxu0 0
    %2082 = vmatpush2.bf16.msra.mxu0 0
    %2083 = vmatprep.mubr.bf16.mxu0 0
    %2084 = vmatmul.mubr.bf16.gmra.mxu0 %v2049
    %v2085 = vpop.f32.mrf.mxu0
    %v2086 = vadd.f32 0.0, %v2085
    %v2087 = vpop.f32.mrf.mxu0
    %v2088 = vpop.f32.mrf.mxu0
    %v2089 = vadd.f32 0.0, %v2088
    %v2090 = vpop.f32.mrf.mxu0
    %2091 = vdwg.mxu0
    %2092 = vrot.lane.b32.xlu0 %v1729, 104
    %v2093 = vpop.permute.xlu0 %2092
    %2094 = vrot.lane.b32.xlu0 %v1729, 72
    %v2095 = vpop.permute.xlu0 %2094
    %v2097 = vsel %vm261, %v2093, 0
    %v2100 = vsel %vm261, %v2095, 0
    %2102 = vmatprep.subr.bf16.mxu0 0
    %2103 = vmatpush1.bf16.xpose.msra.mxu0 0
    %2104 = vmatprep.subr.bf16.mxu0 0
    %2105 = vmatpush1.bf16.xpose.msra.mxu0 0
    %2106 = vmatprep.subr.bf16.mxu0 0
    %2107 = vmatpush1.bf16.xpose.msra.mxu0 0
    %2108 = vmatprep.subr.bf16.mxu0 0
    %2109 = vmatpush1.bf16.xpose.msra.mxu0 0
    %2110 = vmatprep.subr.bf16.mxu0 0
    %2111 = vmatpush1.bf16.xpose.msra.mxu0 0
    %2112 = vmatprep.subr.bf16.mxu0 0
    %2113 = vmatpush1.bf16.xpose.msra.mxu0 0
    %2114 = vmatprep.subr.bf16.mxu0 0
    %2115 = vmatpush1.bf16.xpose.msra.mxu0 0
    %2116 = vmatprep.subr.bf16.mxu0 0
    %2117 = vmatpush1.bf16.xpose.msra.mxu0 %v2100
    %2118 = vmatprep.subr.bf16.mxu0 0
    %2119 = vmatpush2.bf16.xpose.msra.mxu0 0
    %2120 = vmatprep.subr.bf16.mxu0 0
    %2121 = vmatpush2.bf16.xpose.msra.mxu0 0
    %2122 = vmatprep.subr.bf16.mxu0 0
    %2123 = vmatpush2.bf16.xpose.msra.mxu0 0
    %2124 = vmatprep.subr.bf16.mxu0 0
    %2125 = vmatpush2.bf16.xpose.msra.mxu0 0
    %2126 = vmatprep.subr.bf16.mxu0 0
    %2127 = vmatpush2.bf16.xpose.msra.mxu0 0
    %2128 = vmatprep.subr.bf16.mxu0 0
    %2129 = vmatpush2.bf16.xpose.msra.mxu0 0
    %2130 = vmatprep.subr.bf16.mxu0 0
    %2131 = vmatpush2.bf16.xpose.msra.mxu0 0
    %2132 = vmatprep.subr.bf16.mxu0 0
    %2133 = vmatpush2.bf16.xpose.msra.mxu0 0
    %2134 = vmatprep.mubr.bf16.mxu0 0
    %2135 = vmatmul.mubr.bf16.gmra.mxu0 %v2097
    %v2136 = vpop.f32.mrf.mxu0
    %v2137 = vadd.f32 %v92, %v2136
    %v2138 = vpop.f32.mrf.mxu0
    %v2139 = vpop.f32.mrf.mxu0
    %v2140 = vadd.f32 %v93, %v2139
    %v2141 = vpop.f32.mrf.mxu0
    %2142 = vdwg.mxu0
    %v2143 = vsel %vm309, %v2137, -inf
    %2144 = vmax.xlane.f32.xlu0 %v2143
    %v2145 = vpop.xlane.xlu0 %2144
    %v2146 = vsel %vm309, %v2140, -inf
    %2147 = vmax.xlane.f32.xlu0 %v2146
    %v2148 = vpop.xlane.xlu0 %2147
    %v2149 = vsub.f32 %v2137, %v2145
    %v2150 = vsub.f32 %v2140, %v2148
    %v2151 = vmul.f32 %v2149, 1.442695
    %v2152 = vpow.pop %v2151
    %v2153 = vmul.f32 %v2150, 1.442695
    %v2154 = vpow.pop %v2153
    %v2155 = vsel %vm309, %v2152, 0.0
    %2156 = vadd.xlane.f32.xlu0 %v2155
    %v2157 = vpop.xlane.xlu0 %2156
    %v2158 = vsel %vm309, %v2154, 0.0
    %2159 = vadd.xlane.f32.xlu0 %v2158
    %v2160 = vpop.xlane.xlu0 %2159
    %v2161 = vrcp.pop %v2157
    %v2162 = vmul.f32 %v2152, %v2161
    %v2163 = vrcp.pop %v2160
    %v2164 = vmul.f32 %v2154, %v2163
    %v2165 = vpack.c.bf16 %v2164, %v2162
    %2166 = vrot.lane.b32.xlu0 %v1729, 40
    %v2167 = vpop.permute.xlu0 %2166
    %v2170 = vsel %vm309, %v2165, 0
    %2172 = vmatprep.subr.bf16.mxu0 0
    %2173 = vmatpush1.bf16.msra.mxu0 0
    %2174 = vmatprep.subr.bf16.mxu0 0
    %2175 = vmatpush1.bf16.msra.mxu0 0
    %2176 = vmatprep.subr.bf16.mxu0 0
    %2177 = vmatpush1.bf16.msra.mxu0 0
    %2178 = vmatprep.subr.bf16.mxu0 0
    %2179 = vmatpush1.bf16.msra.mxu0 0
    %2180 = vmatprep.subr.bf16.mxu0 0
    %2181 = vmatpush1.bf16.msra.mxu0 0
    %2182 = vmatprep.subr.bf16.mxu0 0
    %2183 = vmatpush1.bf16.msra.mxu0 0
    %2184 = vmatprep.subr.bf16.mxu0 0
    %2185 = vmatpush1.bf16.msra.mxu0 0
    %2186 = vmatprep.subr.bf16.mxu0 0
    %2187 = vmatpush1.bf16.msra.mxu0 %v2167
    %2188 = vmatprep.subr.bf16.mxu0 0
    %2189 = vmatpush2.bf16.msra.mxu0 0
    %2190 = vmatprep.subr.bf16.mxu0 0
    %2191 = vmatpush2.bf16.msra.mxu0 0
    %2192 = vmatprep.subr.bf16.mxu0 0
    %2193 = vmatpush2.bf16.msra.mxu0 0
    %2194 = vmatprep.subr.bf16.mxu0 0
    %2195 = vmatpush2.bf16.msra.mxu0 0
    %2196 = vmatprep.subr.bf16.mxu0 0
    %2197 = vmatpush2.bf16.msra.mxu0 0
    %2198 = vmatprep.subr.bf16.mxu0 0
    %2199 = vmatpush2.bf16.msra.mxu0 0
    %2200 = vmatprep.subr.bf16.mxu0 0
    %2201 = vmatpush2.bf16.msra.mxu0 0
    %2202 = vmatprep.subr.bf16.mxu0 0
    %2203 = vmatpush2.bf16.msra.mxu0 0
    %2204 = vmatprep.mubr.bf16.mxu0 0
    %2205 = vmatmul.mubr.bf16.gmra.mxu0 %v2170
    %v2206 = vpop.f32.mrf.mxu0
    %v2207 = vadd.f32 0.0, %v2206
    %v2208 = vpop.f32.mrf.mxu0
    %v2209 = vpop.f32.mrf.mxu0
    %v2210 = vadd.f32 0.0, %v2209
    %v2211 = vpop.f32.mrf.mxu0
    %2212 = vdwg.mxu0
    %2215 = vrot.lane.b32.xlu0 %v1965, 8
    %v2216 = vpop.permute.xlu0 %2215
    %2217 = vrot.lane.b32.xlu0 %v1968, 8
    %v2218 = vpop.permute.xlu0 %2217
    %2223 = vrot.lane.b32.xlu0 %v2086, 16
    %v2224 = vpop.permute.xlu0 %2223
    %2225 = vrot.lane.b32.xlu0 %v2089, 16
    %v2226 = vpop.permute.xlu0 %2225
    %2231 = vrot.lane.b32.xlu0 %v2207, 24
    %v2232 = vpop.permute.xlu0 %2231
    %2233 = vrot.lane.b32.xlu0 %v2210, 24
    %v2234 = vpop.permute.xlu0 %2233
    %v2237 = vsel %vm261, %v1844, %v2216
    %v2238 = vsel %vm261, %v1847, %v2218
    %v2239 = vsel %vm309, %v2237, %v2224
    %v2240 = vsel %vm309, %v2238, %v2226
    %v2241 = vsel %vm771, %v2239, %v2232
    %v2242 = vsel %vm771, %v2240, %v2234
    %v2243 = vpack.c.bf16 %v2242, %v2241
    %v2245 = vsel %vm154, %v2243, 0
    %2247 = vmatprep.subr.bf16.mxu0 0
    %2248 = vmatpush1.bf16.msra.mxu0 0
    %2249 = vmatprep.subr.bf16.mxu0 0
    %2250 = vmatpush1.bf16.msra.mxu0 0
    %2251 = vmatprep.subr.bf16.mxu0 0
    %2252 = vmatpush1.bf16.msra.mxu0 0
    %2253 = vmatprep.subr.bf16.mxu0 0
    %2254 = vmatpush1.bf16.msra.mxu0 0
    %2255 = vmatprep.subr.bf16.mxu0 0
    %2256 = vmatpush1.bf16.msra.mxu0 0
    %2257 = vmatprep.subr.bf16.mxu0 0
    %2258 = vmatpush1.bf16.msra.mxu0 0
    %2259 = vmatprep.subr.bf16.mxu0 0
    %2260 = vmatpush1.bf16.msra.mxu0 %v784
    %2261 = vmatprep.subr.bf16.mxu0 0
    %2262 = vmatpush1.bf16.msra.mxu0 %v783
    %2263 = vmatprep.subr.bf16.mxu0 0
    %2264 = vmatpush2.bf16.msra.mxu0 0
    %2265 = vmatprep.subr.bf16.mxu0 0
    %2266 = vmatpush2.bf16.msra.mxu0 0
    %2267 = vmatprep.subr.bf16.mxu0 0
    %2268 = vmatpush2.bf16.msra.mxu0 0
    %2269 = vmatprep.subr.bf16.mxu0 0
    %2270 = vmatpush2.bf16.msra.mxu0 0
    %2271 = vmatprep.subr.bf16.mxu0 0
    %2272 = vmatpush2.bf16.msra.mxu0 0
    %2273 = vmatprep.subr.bf16.mxu0 0
    %2274 = vmatpush2.bf16.msra.mxu0 0
    %2275 = vmatprep.subr.bf16.mxu0 0
    %2276 = vmatpush2.bf16.msra.mxu0 0
    %2277 = vmatprep.subr.bf16.mxu0 0
    %2278 = vmatpush2.bf16.msra.mxu0 0
    %2279 = vmatprep.mubr.bf16.mxu0 0
    %2280 = vmatmul.mubr.bf16.gmra.mxu0 %v2245
    %v2281 = vpop.f32.mrf.mxu0
    %v2282 = vadd.f32 %v129, %v2281
    %v2283 = vpop.f32.mrf.mxu0
    %v2284 = vpop.f32.mrf.mxu0
    %v2285 = vadd.f32 %v129, %v2284
    %v2286 = vpop.f32.mrf.mxu0
    %2287 = vdwg.mxu0
    %v2288 = vadd.f32 %v1682, %v2282
    %v2289 = vadd.f32 %v1683, %v2285
    %v2290 = vsel %vm154, %v2288, 0.0
    %2291 = vadd.xlane.f32.xlu0 %v2290
    %v2292 = vpop.xlane.xlu0 %2291
    %v2293 = vsel %vm154, %v2289, 0.0
    %2294 = vadd.xlane.f32.xlu0 %v2293
    %v2295 = vpop.xlane.xlu0 %2294
    %v2296 = vmul.f32 %v2292, %v839
    %v2297 = vmul.f32 %v2295, %v839
    %v2298 = vsub.f32 %v2288, %v2296
    %v2299 = vsub.f32 %v2289, %v2297
    %v2300 = vmul.f32 %v2298, %v2298
    %v2301 = vmul.f32 %v2299, %v2299
    %v2302 = vsel %vm154, %v2300, 0.0
    %2303 = vadd.xlane.f32.xlu0 %v2302
    %v2304 = vpop.xlane.xlu0 %2303
    %v2305 = vsel %vm154, %v2301, 0.0
    %2306 = vadd.xlane.f32.xlu0 %v2305
    %v2307 = vpop.xlane.xlu0 %2306
    %v2308 = vmul.f32 %v2304, %v839
    %v2309 = vmul.f32 %v2307, %v839
    %v2310 = vadd.f32 %v2308, 1e-05
    %v2311 = vadd.f32 %v2309, 1e-05
    %v2312 = vrsqrt.pop %v2310
    %v2313 = vrsqrt.pop %v2311
    %v2314 = vmul.f32 %v2298, %v2312
    %v2315 = vmul.f32 %v2299, %v2313
    %v2316 = vmul.f32 %v2314, %v135
    %v2317 = vmul.f32 %v2315, %v135
    %v2318 = vadd.f32 %v2316, %v138
    %v2319 = vadd.f32 %v2317, %v138
    %v2320 = vpack.c.bf16 %v2319, %v2318
    %v2322 = vsel %vm154, %v2320, 0
    %2324 = vmatprep.subr.bf16.mxu0 0
    %2325 = vmatpush1.bf16.msra.mxu0 0
    %2326 = vmatprep.subr.bf16.mxu0 0
    %2327 = vmatpush1.bf16.msra.mxu0 0
    %2328 = vmatprep.subr.bf16.mxu0 0
    %2329 = vmatpush1.bf16.msra.mxu0 0
    %2330 = vmatprep.subr.bf16.mxu0 0
    %2331 = vmatpush1.bf16.msra.mxu0 0
    %2332 = vmatprep.subr.bf16.mxu0 0
    %2333 = vmatpush1.bf16.msra.mxu0 0
    %2334 = vmatprep.subr.bf16.mxu0 0
    %2335 = vmatpush1.bf16.msra.mxu0 0
    %2336 = vmatprep.subr.bf16.mxu0 0
    %2337 = vmatpush1.bf16.msra.mxu0 %v874
    %2338 = vmatprep.subr.bf16.mxu0 0
    %2339 = vmatpush1.bf16.msra.mxu0 %v873
    %2340 = vmatprep.subr.bf16.mxu0 0
    %2341 = vmatpush2.bf16.msra.mxu0 0
    %2342 = vmatprep.subr.bf16.mxu0 0
    %2343 = vmatpush2.bf16.msra.mxu0 0
    %2344 = vmatprep.subr.bf16.mxu0 0
    %2345 = vmatpush2.bf16.msra.mxu0 0
    %2346 = vmatprep.subr.bf16.mxu0 0
    %2347 = vmatpush2.bf16.msra.mxu0 0
    %2348 = vmatprep.subr.bf16.mxu0 0
    %2349 = vmatpush2.bf16.msra.mxu0 0
    %2350 = vmatprep.subr.bf16.mxu0 0
    %2351 = vmatpush2.bf16.msra.mxu0 0
    %2352 = vmatprep.subr.bf16.mxu0 0
    %2353 = vmatpush2.bf16.msra.mxu0 0
    %2354 = vmatprep.subr.bf16.mxu0 0
    %2355 = vmatpush2.bf16.msra.mxu0 0
    %2356 = vmatprep.mubr.bf16.mxu0 0
    %2357 = vmatmul.mubr.bf16.gmra.mxu0 %v2322
    %v2358 = vpop.f32.mrf.mxu0
    %v2359 = vadd.f32 %v130, %v2358
    %v2360 = vpop.f32.mrf.mxu0
    %v2361 = vpop.f32.mrf.mxu0
    %v2362 = vadd.f32 %v130, %v2361
    %v2363 = vpop.f32.mrf.mxu0
    %2364 = vdwg.mxu0
    %v2365 = vpack.c.bf16 %v2362, %v2359
    %v2367 = vsel %vm261, %v2365, 0
    %2369 = vmatprep.subr.bf16.mxu0 0
    %2370 = vmatpush1.bf16.xpose.msra.mxu0 0
    %2371 = vmatprep.subr.bf16.mxu0 0
    %2372 = vmatpush1.bf16.xpose.msra.mxu0 0
    %2373 = vmatprep.subr.bf16.mxu0 0
    %2374 = vmatpush1.bf16.xpose.msra.mxu0 0
    %2375 = vmatprep.subr.bf16.mxu0 0
    %2376 = vmatpush1.bf16.xpose.msra.mxu0 0
    %2377 = vmatprep.subr.bf16.mxu0 0
    %2378 = vmatpush1.bf16.xpose.msra.mxu0 0
    %2379 = vmatprep.subr.bf16.mxu0 0
    %2380 = vmatpush1.bf16.xpose.msra.mxu0 0
    %2381 = vmatprep.subr.bf16.mxu0 0
    %2382 = vmatpush1.bf16.xpose.msra.mxu0 0
    %2383 = vmatprep.subr.bf16.mxu0 0
    %2384 = vmatpush1.bf16.xpose.msra.mxu0 %v926
    %2385 = vmatprep.subr.bf16.mxu0 0
    %2386 = vmatpush2.bf16.xpose.msra.mxu0 0
    %2387 = vmatprep.subr.bf16.mxu0 0
    %2388 = vmatpush2.bf16.xpose.msra.mxu0 0
    %2389 = vmatprep.subr.bf16.mxu0 0
    %2390 = vmatpush2.bf16.xpose.msra.mxu0 0
    %2391 = vmatprep.subr.bf16.mxu0 0
    %2392 = vmatpush2.bf16.xpose.msra.mxu0 0
    %2393 = vmatprep.subr.bf16.mxu0 0
    %2394 = vmatpush2.bf16.xpose.msra.mxu0 0
    %2395 = vmatprep.subr.bf16.mxu0 0
    %2396 = vmatpush2.bf16.xpose.msra.mxu0 0
    %2397 = vmatprep.subr.bf16.mxu0 0
    %2398 = vmatpush2.bf16.xpose.msra.mxu0 0
    %2399 = vmatprep.subr.bf16.mxu0 0
    %2400 = vmatpush2.bf16.xpose.msra.mxu0 0
    %2401 = vmatprep.mubr.bf16.mxu0 0
    %2402 = vmatmul.mubr.bf16.gmra.mxu0 %v2367
    %v2403 = vpop.f32.mrf.mxu0
    %v2404 = vadd.f32 %v94, %v2403
    %v2405 = vpop.f32.mrf.mxu0
    %v2406 = vpop.f32.mrf.mxu0
    %v2407 = vadd.f32 %v95, %v2406
    %v2408 = vpop.f32.mrf.mxu0
    %2409 = vdwg.mxu0
    %v2410 = vsel %vm309, %v2404, -inf
    %2411 = vmax.xlane.f32.xlu0 %v2410
    %v2412 = vpop.xlane.xlu0 %2411
    %v2413 = vsel %vm309, %v2407, -inf
    %2414 = vmax.xlane.f32.xlu0 %v2413
    %v2415 = vpop.xlane.xlu0 %2414
    %v2416 = vsub.f32 %v2404, %v2412
    %v2417 = vsub.f32 %v2407, %v2415
    %v2418 = vmul.f32 %v2416, 1.442695
    %v2419 = vpow.pop %v2418
    %v2420 = vmul.f32 %v2417, 1.442695
    %v2421 = vpow.pop %v2420
    %v2422 = vsel %vm309, %v2419, 0.0
    %2423 = vadd.xlane.f32.xlu0 %v2422
    %v2424 = vpop.xlane.xlu0 %2423
    %v2425 = vsel %vm309, %v2421, 0.0
    %2426 = vadd.xlane.f32.xlu0 %v2425
    %v2427 = vpop.xlane.xlu0 %2426
    %v2428 = vrcp.pop %v2424
    %v2429 = vmul.f32 %v2419, %v2428
    %v2430 = vrcp.pop %v2427
    %v2431 = vmul.f32 %v2421, %v2430
    %v2432 = vpack.c.bf16 %v2431, %v2429
    %v2434 = vsel %vm309, %v2432, 0
    %2436 = vmatprep.subr.bf16.mxu0 0
    %2437 = vmatpush1.bf16.msra.mxu0 0
    %2438 = vmatprep.subr.bf16.mxu0 0
    %2439 = vmatpush1.bf16.msra.mxu0 0
    %2440 = vmatprep.subr.bf16.mxu0 0
    %2441 = vmatpush1.bf16.msra.mxu0 0
    %2442 = vmatprep.subr.bf16.mxu0 0
    %2443 = vmatpush1.bf16.msra.mxu0 0
    %2444 = vmatprep.subr.bf16.mxu0 0
    %2445 = vmatpush1.bf16.msra.mxu0 0
    %2446 = vmatprep.subr.bf16.mxu0 0
    %2447 = vmatpush1.bf16.msra.mxu0 0
    %2448 = vmatprep.subr.bf16.mxu0 0
    %2449 = vmatpush1.bf16.msra.mxu0 0
    %2450 = vmatprep.subr.bf16.mxu0 0
    %2451 = vmatpush1.bf16.msra.mxu0 %v994
    %2452 = vmatprep.subr.bf16.mxu0 0
    %2453 = vmatpush2.bf16.msra.mxu0 0
    %2454 = vmatprep.subr.bf16.mxu0 0
    %2455 = vmatpush2.bf16.msra.mxu0 0
    %2456 = vmatprep.subr.bf16.mxu0 0
    %2457 = vmatpush2.bf16.msra.mxu0 0
    %2458 = vmatprep.subr.bf16.mxu0 0
    %2459 = vmatpush2.bf16.msra.mxu0 0
    %2460 = vmatprep.subr.bf16.mxu0 0
    %2461 = vmatpush2.bf16.msra.mxu0 0
    %2462 = vmatprep.subr.bf16.mxu0 0
    %2463 = vmatpush2.bf16.msra.mxu0 0
    %2464 = vmatprep.subr.bf16.mxu0 0
    %2465 = vmatpush2.bf16.msra.mxu0 0
    %2466 = vmatprep.subr.bf16.mxu0 0
    %2467 = vmatpush2.bf16.msra.mxu0 0
    %2468 = vmatprep.mubr.bf16.mxu0 0
    %2469 = vmatmul.mubr.bf16.gmra.mxu0 %v2434
    %v2470 = vpop.f32.mrf.mxu0
    %v2471 = vadd.f32 0.0, %v2470
    %v2472 = vpop.f32.mrf.mxu0
    %v2473 = vpop.f32.mrf.mxu0
    %v2474 = vadd.f32 0.0, %v2473
    %v2475 = vpop.f32.mrf.mxu0
    %2476 = vdwg.mxu0
    %2478 = vrot.lane.b32.xlu0 %v2365, 120
    %v2479 = vpop.permute.xlu0 %2478
    %v2481 = vsel %vm261, %v2479, 0
    %2483 = vmatprep.subr.bf16.mxu0 0
    %2484 = vmatpush1.bf16.xpose.msra.mxu0 0
    %2485 = vmatprep.subr.bf16.mxu0 0
    %2486 = vmatpush1.bf16.xpose.msra.mxu0 0
    %2487 = vmatprep.subr.bf16.mxu0 0
    %2488 = vmatpush1.bf16.xpose.msra.mxu0 0
    %2489 = vmatprep.subr.bf16.mxu0 0
    %2490 = vmatpush1.bf16.xpose.msra.mxu0 0
    %2491 = vmatprep.subr.bf16.mxu0 0
    %2492 = vmatpush1.bf16.xpose.msra.mxu0 0
    %2493 = vmatprep.subr.bf16.mxu0 0
    %2494 = vmatpush1.bf16.xpose.msra.mxu0 0
    %2495 = vmatprep.subr.bf16.mxu0 0
    %2496 = vmatpush1.bf16.xpose.msra.mxu0 0
    %2497 = vmatprep.subr.bf16.mxu0 0
    %2498 = vmatpush1.bf16.xpose.msra.mxu0 %v1049
    %2499 = vmatprep.subr.bf16.mxu0 0
    %2500 = vmatpush2.bf16.xpose.msra.mxu0 0
    %2501 = vmatprep.subr.bf16.mxu0 0
    %2502 = vmatpush2.bf16.xpose.msra.mxu0 0
    %2503 = vmatprep.subr.bf16.mxu0 0
    %2504 = vmatpush2.bf16.xpose.msra.mxu0 0
    %2505 = vmatprep.subr.bf16.mxu0 0
    %2506 = vmatpush2.bf16.xpose.msra.mxu0 0
    %2507 = vmatprep.subr.bf16.mxu0 0
    %2508 = vmatpush2.bf16.xpose.msra.mxu0 0
    %2509 = vmatprep.subr.bf16.mxu0 0
    %2510 = vmatpush2.bf16.xpose.msra.mxu0 0
    %2511 = vmatprep.subr.bf16.mxu0 0
    %2512 = vmatpush2.bf16.xpose.msra.mxu0 0
    %2513 = vmatprep.subr.bf16.mxu0 0
    %2514 = vmatpush2.bf16.xpose.msra.mxu0 0
    %2515 = vmatprep.mubr.bf16.mxu0 0
    %2516 = vmatmul.mubr.bf16.gmra.mxu0 %v2481
    %v2517 = vpop.f32.mrf.mxu0
    %v2518 = vadd.f32 %v94, %v2517
    %v2519 = vpop.f32.mrf.mxu0
    %v2520 = vpop.f32.mrf.mxu0
    %v2521 = vadd.f32 %v95, %v2520
    %v2522 = vpop.f32.mrf.mxu0
    %2523 = vdwg.mxu0
    %v2524 = vsel %vm309, %v2518, -inf
    %2525 = vmax.xlane.f32.xlu0 %v2524
    %v2526 = vpop.xlane.xlu0 %2525
    %v2527 = vsel %vm309, %v2521, -inf
    %2528 = vmax.xlane.f32.xlu0 %v2527
    %v2529 = vpop.xlane.xlu0 %2528
    %v2530 = vsub.f32 %v2518, %v2526
    %v2531 = vsub.f32 %v2521, %v2529
    %v2532 = vmul.f32 %v2530, 1.442695
    %v2533 = vpow.pop %v2532
    %v2534 = vmul.f32 %v2531, 1.442695
    %v2535 = vpow.pop %v2534
    %v2536 = vsel %vm309, %v2533, 0.0
    %2537 = vadd.xlane.f32.xlu0 %v2536
    %v2538 = vpop.xlane.xlu0 %2537
    %v2539 = vsel %vm309, %v2535, 0.0
    %2540 = vadd.xlane.f32.xlu0 %v2539
    %v2541 = vpop.xlane.xlu0 %2540
    %v2542 = vrcp.pop %v2538
    %v2543 = vmul.f32 %v2533, %v2542
    %v2544 = vrcp.pop %v2541
    %v2545 = vmul.f32 %v2535, %v2544
    %v2546 = vpack.c.bf16 %v2545, %v2543
    %v2548 = vsel %vm309, %v2546, 0
    %2550 = vmatprep.subr.bf16.mxu0 0
    %2551 = vmatpush1.bf16.msra.mxu0 0
    %2552 = vmatprep.subr.bf16.mxu0 0
    %2553 = vmatpush1.bf16.msra.mxu0 0
    %2554 = vmatprep.subr.bf16.mxu0 0
    %2555 = vmatpush1.bf16.msra.mxu0 0
    %2556 = vmatprep.subr.bf16.mxu0 0
    %2557 = vmatpush1.bf16.msra.mxu0 0
    %2558 = vmatprep.subr.bf16.mxu0 0
    %2559 = vmatpush1.bf16.msra.mxu0 0
    %2560 = vmatprep.subr.bf16.mxu0 0
    %2561 = vmatpush1.bf16.msra.mxu0 0
    %2562 = vmatprep.subr.bf16.mxu0 0
    %2563 = vmatpush1.bf16.msra.mxu0 0
    %2564 = vmatprep.subr.bf16.mxu0 0
    %2565 = vmatpush1.bf16.msra.mxu0 %v1116
    %2566 = vmatprep.subr.bf16.mxu0 0
    %2567 = vmatpush2.bf16.msra.mxu0 0
    %2568 = vmatprep.subr.bf16.mxu0 0
    %2569 = vmatpush2.bf16.msra.mxu0 0
    %2570 = vmatprep.subr.bf16.mxu0 0
    %2571 = vmatpush2.bf16.msra.mxu0 0
    %2572 = vmatprep.subr.bf16.mxu0 0
    %2573 = vmatpush2.bf16.msra.mxu0 0
    %2574 = vmatprep.subr.bf16.mxu0 0
    %2575 = vmatpush2.bf16.msra.mxu0 0
    %2576 = vmatprep.subr.bf16.mxu0 0
    %2577 = vmatpush2.bf16.msra.mxu0 0
    %2578 = vmatprep.subr.bf16.mxu0 0
    %2579 = vmatpush2.bf16.msra.mxu0 0
    %2580 = vmatprep.subr.bf16.mxu0 0
    %2581 = vmatpush2.bf16.msra.mxu0 0
    %2582 = vmatprep.mubr.bf16.mxu0 0
    %2583 = vmatmul.mubr.bf16.gmra.mxu0 %v2548
    %v2584 = vpop.f32.mrf.mxu0
    %v2585 = vadd.f32 0.0, %v2584
    %v2586 = vpop.f32.mrf.mxu0
    %v2587 = vpop.f32.mrf.mxu0
    %v2588 = vadd.f32 0.0, %v2587
    %v2589 = vpop.f32.mrf.mxu0
    %2590 = vdwg.mxu0
    %2591 = vrot.lane.b32.xlu0 %v2365, 112
    %v2592 = vpop.permute.xlu0 %2591
    %v2594 = vsel %vm261, %v2592, 0
    %2596 = vmatprep.subr.bf16.mxu0 0
    %2597 = vmatpush1.bf16.xpose.msra.mxu0 0
    %2598 = vmatprep.subr.bf16.mxu0 0
    %2599 = vmatpush1.bf16.xpose.msra.mxu0 0
    %2600 = vmatprep.subr.bf16.mxu0 0
    %2601 = vmatpush1.bf16.xpose.msra.mxu0 0
    %2602 = vmatprep.subr.bf16.mxu0 0
    %2603 = vmatpush1.bf16.xpose.msra.mxu0 0
    %2604 = vmatprep.subr.bf16.mxu0 0
    %2605 = vmatpush1.bf16.xpose.msra.mxu0 0
    %2606 = vmatprep.subr.bf16.mxu0 0
    %2607 = vmatpush1.bf16.xpose.msra.mxu0 0
    %2608 = vmatprep.subr.bf16.mxu0 0
    %2609 = vmatpush1.bf16.xpose.msra.mxu0 0
    %2610 = vmatprep.subr.bf16.mxu0 0
    %2611 = vmatpush1.bf16.xpose.msra.mxu0 %v1170
    %2612 = vmatprep.subr.bf16.mxu0 0
    %2613 = vmatpush2.bf16.xpose.msra.mxu0 0
    %2614 = vmatprep.subr.bf16.mxu0 0
    %2615 = vmatpush2.bf16.xpose.msra.mxu0 0
    %2616 = vmatprep.subr.bf16.mxu0 0
    %2617 = vmatpush2.bf16.xpose.msra.mxu0 0
    %2618 = vmatprep.subr.bf16.mxu0 0
    %2619 = vmatpush2.bf16.xpose.msra.mxu0 0
    %2620 = vmatprep.subr.bf16.mxu0 0
    %2621 = vmatpush2.bf16.xpose.msra.mxu0 0
    %2622 = vmatprep.subr.bf16.mxu0 0
    %2623 = vmatpush2.bf16.xpose.msra.mxu0 0
    %2624 = vmatprep.subr.bf16.mxu0 0
    %2625 = vmatpush2.bf16.xpose.msra.mxu0 0
    %2626 = vmatprep.subr.bf16.mxu0 0
    %2627 = vmatpush2.bf16.xpose.msra.mxu0 0
    %2628 = vmatprep.mubr.bf16.mxu0 0
    %2629 = vmatmul.mubr.bf16.gmra.mxu0 %v2594
    %v2630 = vpop.f32.mrf.mxu0
    %v2631 = vadd.f32 %v94, %v2630
    %v2632 = vpop.f32.mrf.mxu0
    %v2633 = vpop.f32.mrf.mxu0
    %v2634 = vadd.f32 %v95, %v2633
    %v2635 = vpop.f32.mrf.mxu0
    %2636 = vdwg.mxu0
    %v2637 = vsel %vm309, %v2631, -inf
    %2638 = vmax.xlane.f32.xlu0 %v2637
    %v2639 = vpop.xlane.xlu0 %2638
    %v2640 = vsel %vm309, %v2634, -inf
    %2641 = vmax.xlane.f32.xlu0 %v2640
    %v2642 = vpop.xlane.xlu0 %2641
    %v2643 = vsub.f32 %v2631, %v2639
    %v2644 = vsub.f32 %v2634, %v2642
    %v2645 = vmul.f32 %v2643, 1.442695
    %v2646 = vpow.pop %v2645
    %v2647 = vmul.f32 %v2644, 1.442695
    %v2648 = vpow.pop %v2647
    %v2649 = vsel %vm309, %v2646, 0.0
    %2650 = vadd.xlane.f32.xlu0 %v2649
    %v2651 = vpop.xlane.xlu0 %2650
    %v2652 = vsel %vm309, %v2648, 0.0
    %2653 = vadd.xlane.f32.xlu0 %v2652
    %v2654 = vpop.xlane.xlu0 %2653
    %v2655 = vrcp.pop %v2651
    %v2656 = vmul.f32 %v2646, %v2655
    %v2657 = vrcp.pop %v2654
    %v2658 = vmul.f32 %v2648, %v2657
    %v2659 = vpack.c.bf16 %v2658, %v2656
    %v2661 = vsel %vm309, %v2659, 0
    %2663 = vmatprep.subr.bf16.mxu0 0
    %2664 = vmatpush1.bf16.msra.mxu0 0
    %2665 = vmatprep.subr.bf16.mxu0 0
    %2666 = vmatpush1.bf16.msra.mxu0 0
    %2667 = vmatprep.subr.bf16.mxu0 0
    %2668 = vmatpush1.bf16.msra.mxu0 0
    %2669 = vmatprep.subr.bf16.mxu0 0
    %2670 = vmatpush1.bf16.msra.mxu0 0
    %2671 = vmatprep.subr.bf16.mxu0 0
    %2672 = vmatpush1.bf16.msra.mxu0 0
    %2673 = vmatprep.subr.bf16.mxu0 0
    %2674 = vmatpush1.bf16.msra.mxu0 0
    %2675 = vmatprep.subr.bf16.mxu0 0
    %2676 = vmatpush1.bf16.msra.mxu0 0
    %2677 = vmatprep.subr.bf16.mxu0 0
    %2678 = vmatpush1.bf16.msra.mxu0 %v1237
    %2679 = vmatprep.subr.bf16.mxu0 0
    %2680 = vmatpush2.bf16.msra.mxu0 0
    %2681 = vmatprep.subr.bf16.mxu0 0
    %2682 = vmatpush2.bf16.msra.mxu0 0
    %2683 = vmatprep.subr.bf16.mxu0 0
    %2684 = vmatpush2.bf16.msra.mxu0 0
    %2685 = vmatprep.subr.bf16.mxu0 0
    %2686 = vmatpush2.bf16.msra.mxu0 0
    %2687 = vmatprep.subr.bf16.mxu0 0
    %2688 = vmatpush2.bf16.msra.mxu0 0
    %2689 = vmatprep.subr.bf16.mxu0 0
    %2690 = vmatpush2.bf16.msra.mxu0 0
    %2691 = vmatprep.subr.bf16.mxu0 0
    %2692 = vmatpush2.bf16.msra.mxu0 0
    %2693 = vmatprep.subr.bf16.mxu0 0
    %2694 = vmatpush2.bf16.msra.mxu0 0
    %2695 = vmatprep.mubr.bf16.mxu0 0
    %2696 = vmatmul.mubr.bf16.gmra.mxu0 %v2661
    %v2697 = vpop.f32.mrf.mxu0
    %v2698 = vadd.f32 0.0, %v2697
    %v2699 = vpop.f32.mrf.mxu0
    %v2700 = vpop.f32.mrf.mxu0
    %v2701 = vadd.f32 0.0, %v2700
    %v2702 = vpop.f32.mrf.mxu0
    %2703 = vdwg.mxu0
    %2704 = vrot.lane.b32.xlu0 %v2365, 104
    %v2705 = vpop.permute.xlu0 %2704
    %v2707 = vsel %vm261, %v2705, 0
    %2709 = vmatprep.subr.bf16.mxu0 0
    %2710 = vmatpush1.bf16.xpose.msra.mxu0 0
    %2711 = vmatprep.subr.bf16.mxu0 0
    %2712 = vmatpush1.bf16.xpose.msra.mxu0 0
    %2713 = vmatprep.subr.bf16.mxu0 0
    %2714 = vmatpush1.bf16.xpose.msra.mxu0 0
    %2715 = vmatprep.subr.bf16.mxu0 0
    %2716 = vmatpush1.bf16.xpose.msra.mxu0 0
    %2717 = vmatprep.subr.bf16.mxu0 0
    %2718 = vmatpush1.bf16.xpose.msra.mxu0 0
    %2719 = vmatprep.subr.bf16.mxu0 0
    %2720 = vmatpush1.bf16.xpose.msra.mxu0 0
    %2721 = vmatprep.subr.bf16.mxu0 0
    %2722 = vmatpush1.bf16.xpose.msra.mxu0 0
    %2723 = vmatprep.subr.bf16.mxu0 0
    %2724 = vmatpush1.bf16.xpose.msra.mxu0 %v1291
    %2725 = vmatprep.subr.bf16.mxu0 0
    %2726 = vmatpush2.bf16.xpose.msra.mxu0 0
    %2727 = vmatprep.subr.bf16.mxu0 0
    %2728 = vmatpush2.bf16.xpose.msra.mxu0 0
    %2729 = vmatprep.subr.bf16.mxu0 0
    %2730 = vmatpush2.bf16.xpose.msra.mxu0 0
    %2731 = vmatprep.subr.bf16.mxu0 0
    %2732 = vmatpush2.bf16.xpose.msra.mxu0 0
    %2733 = vmatprep.subr.bf16.mxu0 0
    %2734 = vmatpush2.bf16.xpose.msra.mxu0 0
    %2735 = vmatprep.subr.bf16.mxu0 0
    %2736 = vmatpush2.bf16.xpose.msra.mxu0 0
    %2737 = vmatprep.subr.bf16.mxu0 0
    %2738 = vmatpush2.bf16.xpose.msra.mxu0 0
    %2739 = vmatprep.subr.bf16.mxu0 0
    %2740 = vmatpush2.bf16.xpose.msra.mxu0 0
    %2741 = vmatprep.mubr.bf16.mxu0 0
    %2742 = vmatmul.mubr.bf16.gmra.mxu0 %v2707
    %v2743 = vpop.f32.mrf.mxu0
    %v2744 = vadd.f32 %v94, %v2743
    %v2745 = vpop.f32.mrf.mxu0
    %v2746 = vpop.f32.mrf.mxu0
    %v2747 = vadd.f32 %v95, %v2746
    %v2748 = vpop.f32.mrf.mxu0
    %2749 = vdwg.mxu0
    %v2750 = vsel %vm309, %v2744, -inf
    %2751 = vmax.xlane.f32.xlu0 %v2750
    %v2752 = vpop.xlane.xlu0 %2751
    %v2753 = vsel %vm309, %v2747, -inf
    %2754 = vmax.xlane.f32.xlu0 %v2753
    %v2755 = vpop.xlane.xlu0 %2754
    %v2756 = vsub.f32 %v2744, %v2752
    %v2757 = vsub.f32 %v2747, %v2755
    %v2758 = vmul.f32 %v2756, 1.442695
    %v2759 = vpow.pop %v2758
    %v2760 = vmul.f32 %v2757, 1.442695
    %v2761 = vpow.pop %v2760
    %v2762 = vsel %vm309, %v2759, 0.0
    %2763 = vadd.xlane.f32.xlu0 %v2762
    %v2764 = vpop.xlane.xlu0 %2763
    %v2765 = vsel %vm309, %v2761, 0.0
    %2766 = vadd.xlane.f32.xlu0 %v2765
    %v2767 = vpop.xlane.xlu0 %2766
    %v2768 = vrcp.pop %v2764
    %v2769 = vmul.f32 %v2759, %v2768
    %v2770 = vrcp.pop %v2767
    %v2771 = vmul.f32 %v2761, %v2770
    %v2772 = vpack.c.bf16 %v2771, %v2769
    %v2774 = vsel %vm309, %v2772, 0
    %2776 = vmatprep.subr.bf16.mxu0 0
    %2777 = vmatpush1.bf16.msra.mxu0 0
    %2778 = vmatprep.subr.bf16.mxu0 0
    %2779 = vmatpush1.bf16.msra.mxu0 0
    %2780 = vmatprep.subr.bf16.mxu0 0
    %2781 = vmatpush1.bf16.msra.mxu0 0
    %2782 = vmatprep.subr.bf16.mxu0 0
    %2783 = vmatpush1.bf16.msra.mxu0 0
    %2784 = vmatprep.subr.bf16.mxu0 0
    %2785 = vmatpush1.bf16.msra.mxu0 0
    %2786 = vmatprep.subr.bf16.mxu0 0
    %2787 = vmatpush1.bf16.msra.mxu0 0
    %2788 = vmatprep.subr.bf16.mxu0 0
    %2789 = vmatpush1.bf16.msra.mxu0 0
    %2790 = vmatprep.subr.bf16.mxu0 0
    %2791 = vmatpush1.bf16.msra.mxu0 %v1358
    %2792 = vmatprep.subr.bf16.mxu0 0
    %2793 = vmatpush2.bf16.msra.mxu0 0
    %2794 = vmatprep.subr.bf16.mxu0 0
    %2795 = vmatpush2.bf16.msra.mxu0 0
    %2796 = vmatprep.subr.bf16.mxu0 0
    %2797 = vmatpush2.bf16.msra.mxu0 0
    %2798 = vmatprep.subr.bf16.mxu0 0
    %2799 = vmatpush2.bf16.msra.mxu0 0
    %2800 = vmatprep.subr.bf16.mxu0 0
    %2801 = vmatpush2.bf16.msra.mxu0 0
    %2802 = vmatprep.subr.bf16.mxu0 0
    %2803 = vmatpush2.bf16.msra.mxu0 0
    %2804 = vmatprep.subr.bf16.mxu0 0
    %2805 = vmatpush2.bf16.msra.mxu0 0
    %2806 = vmatprep.subr.bf16.mxu0 0
    %2807 = vmatpush2.bf16.msra.mxu0 0
    %2808 = vmatprep.mubr.bf16.mxu0 0
    %2809 = vmatmul.mubr.bf16.gmra.mxu0 %v2774
    %v2810 = vpop.f32.mrf.mxu0
    %v2811 = vadd.f32 0.0, %v2810
    %v2812 = vpop.f32.mrf.mxu0
    %v2813 = vpop.f32.mrf.mxu0
    %v2814 = vadd.f32 0.0, %v2813
    %v2815 = vpop.f32.mrf.mxu0
    %2816 = vdwg.mxu0
    %2819 = vrot.lane.b32.xlu0 %v2585, 8
    %v2820 = vpop.permute.xlu0 %2819
    %2821 = vrot.lane.b32.xlu0 %v2588, 8
    %v2822 = vpop.permute.xlu0 %2821
    %2827 = vrot.lane.b32.xlu0 %v2698, 16
    %v2828 = vpop.permute.xlu0 %2827
    %2829 = vrot.lane.b32.xlu0 %v2701, 16
    %v2830 = vpop.permute.xlu0 %2829
    %2835 = vrot.lane.b32.xlu0 %v2811, 24
    %v2836 = vpop.permute.xlu0 %2835
    %2837 = vrot.lane.b32.xlu0 %v2814, 24
    %v2838 = vpop.permute.xlu0 %2837
    %v2841 = vsel %vm261, %v2471, %v2820
    %v2842 = vsel %vm261, %v2474, %v2822
    %v2843 = vsel %vm309, %v2841, %v2828
    %v2844 = vsel %vm309, %v2842, %v2830
    %v2845 = vsel %vm771, %v2843, %v2836
    %v2846 = vsel %vm771, %v2844, %v2838
    %v2847 = vpack.c.bf16 %v2846, %v2845
    %v2849 = vsel %vm154, %v2847, 0
    %2851 = vmatprep.subr.bf16.mxu0 0
    %2852 = vmatpush1.bf16.msra.mxu0 0
    %2853 = vmatprep.subr.bf16.mxu0 0
    %2854 = vmatpush1.bf16.msra.mxu0 0
    %2855 = vmatprep.subr.bf16.mxu0 0
    %2856 = vmatpush1.bf16.msra.mxu0 0
    %2857 = vmatprep.subr.bf16.mxu0 0
    %2858 = vmatpush1.bf16.msra.mxu0 0
    %2859 = vmatprep.subr.bf16.mxu0 0
    %2860 = vmatpush1.bf16.msra.mxu0 0
    %2861 = vmatprep.subr.bf16.mxu0 0
    %2862 = vmatpush1.bf16.msra.mxu0 0
    %2863 = vmatprep.subr.bf16.mxu0 0
    %2864 = vmatpush1.bf16.msra.mxu0 %v1444
    %2865 = vmatprep.subr.bf16.mxu0 0
    %2866 = vmatpush1.bf16.msra.mxu0 %v1443
    %2867 = vmatprep.subr.bf16.mxu0 0
    %2868 = vmatpush2.bf16.msra.mxu0 0
    %2869 = vmatprep.subr.bf16.mxu0 0
    %2870 = vmatpush2.bf16.msra.mxu0 0
    %2871 = vmatprep.subr.bf16.mxu0 0
    %2872 = vmatpush2.bf16.msra.mxu0 0
    %2873 = vmatprep.subr.bf16.mxu0 0
    %2874 = vmatpush2.bf16.msra.mxu0 0
    %2875 = vmatprep.subr.bf16.mxu0 0
    %2876 = vmatpush2.bf16.msra.mxu0 0
    %2877 = vmatprep.subr.bf16.mxu0 0
    %2878 = vmatpush2.bf16.msra.mxu0 0
    %2879 = vmatprep.subr.bf16.mxu0 0
    %2880 = vmatpush2.bf16.msra.mxu0 0
    %2881 = vmatprep.subr.bf16.mxu0 0
    %2882 = vmatpush2.bf16.msra.mxu0 0
    %2883 = vmatprep.mubr.bf16.mxu0 0
    %2884 = vmatmul.mubr.bf16.gmra.mxu0 %v2849
    %v2885 = vpop.f32.mrf.mxu0
    %v2886 = vadd.f32 %v132, %v2885
    %v2887 = vpop.f32.mrf.mxu0
    %v2888 = vpop.f32.mrf.mxu0
    %v2889 = vadd.f32 %v132, %v2888
    %v2890 = vpop.f32.mrf.mxu0
    %2891 = vdwg.mxu0
    %v2892 = vadd.f32 %v2318, %v2886
    %v2893 = vadd.f32 %v2319, %v2889
    %v2894 = vsel %vm154, %v2892, 0.0
    %2895 = vadd.xlane.f32.xlu0 %v2894
    %v2896 = vpop.xlane.xlu0 %2895
    %v2897 = vsel %vm154, %v2893, 0.0
    %2898 = vadd.xlane.f32.xlu0 %v2897
    %v2899 = vpop.xlane.xlu0 %2898
    %v2900 = vmul.f32 %v2896, %v839
    %v2901 = vmul.f32 %v2899, %v839
    %v2902 = vsub.f32 %v2892, %v2900
    %v2903 = vsub.f32 %v2893, %v2901
    %v2904 = vmul.f32 %v2902, %v2902
    %v2905 = vmul.f32 %v2903, %v2903
    %v2906 = vsel %vm154, %v2904, 0.0
    %2907 = vadd.xlane.f32.xlu0 %v2906
    %v2908 = vpop.xlane.xlu0 %2907
    %v2909 = vsel %vm154, %v2905, 0.0
    %2910 = vadd.xlane.f32.xlu0 %v2909
    %v2911 = vpop.xlane.xlu0 %2910
    %v2912 = vmul.f32 %v2908, %v839
    %v2913 = vmul.f32 %v2911, %v839
    %v2914 = vadd.f32 %v2912, 1e-05
    %v2915 = vadd.f32 %v2913, 1e-05
    %v2916 = vrsqrt.pop %v2914
    %v2917 = vrsqrt.pop %v2915
    %v2918 = vmul.f32 %v2902, %v2916
    %v2919 = vmul.f32 %v2903, %v2917
    %v2920 = vmul.f32 %v2918, %v136
    %v2921 = vmul.f32 %v2919, %v136
    %v2922 = vadd.f32 %v2920, %v139
    %v2923 = vadd.f32 %v2921, %v139
    %v2924 = vpack.c.bf16 %v2923, %v2922
    %v2926 = vsel %vm154, %v2924, 0
    %2928 = vmatprep.subr.bf16.mxu0 0
    %2929 = vmatpush1.bf16.msra.mxu0 0
    %2930 = vmatprep.subr.bf16.mxu0 0
    %2931 = vmatpush1.bf16.msra.mxu0 0
    %2932 = vmatprep.subr.bf16.mxu0 0
    %2933 = vmatpush1.bf16.msra.mxu0 0
    %2934 = vmatprep.subr.bf16.mxu0 0
    %2935 = vmatpush1.bf16.msra.mxu0 0
    %2936 = vmatprep.subr.bf16.mxu0 0
    %2937 = vmatpush1.bf16.msra.mxu0 0
    %2938 = vmatprep.subr.bf16.mxu0 0
    %2939 = vmatpush1.bf16.msra.mxu0 0
    %2940 = vmatprep.subr.bf16.mxu0 0
    %2941 = vmatpush1.bf16.msra.mxu0 %v1533
    %2942 = vmatprep.subr.bf16.mxu0 0
    %2943 = vmatpush1.bf16.msra.mxu0 %v1532
    %2944 = vmatprep.subr.bf16.mxu0 0
    %2945 = vmatpush2.bf16.msra.mxu0 0
    %2946 = vmatprep.subr.bf16.mxu0 0
    %2947 = vmatpush2.bf16.msra.mxu0 0
    %2948 = vmatprep.subr.bf16.mxu0 0
    %2949 = vmatpush2.bf16.msra.mxu0 0
    %2950 = vmatprep.subr.bf16.mxu0 0
    %2951 = vmatpush2.bf16.msra.mxu0 0
    %2952 = vmatprep.subr.bf16.mxu0 0
    %2953 = vmatpush2.bf16.msra.mxu0 0
    %2954 = vmatprep.subr.bf16.mxu0 0
    %2955 = vmatpush2.bf16.msra.mxu0 0
    %2956 = vmatprep.subr.bf16.mxu0 0
    %2957 = vmatpush2.bf16.msra.mxu0 0
    %2958 = vmatprep.subr.bf16.mxu0 0
    %2959 = vmatpush2.bf16.msra.mxu0 0
    %2960 = vmatprep.mubr.bf16.mxu0 0
    %2961 = vmatmul.mubr.bf16.gmra.mxu0 %v2926
    %v2962 = vpop.f32.mrf.mxu0
    %v2963 = vadd.f32 %v133, %v2962
    %v2964 = vpop.f32.mrf.mxu0
    %v2965 = vpop.f32.mrf.mxu0
    %v2966 = vadd.f32 %v133, %v2965
    %v2967 = vpop.f32.mrf.mxu0
    %2968 = vdwg.mxu0
    %v2969 = vmax.f32 %v2963, 0.0
    %v2970 = vmax.f32 %v2966, 0.0
    %v2971 = vpack.c.bf16 %v2970, %v2969
    %v2973 = vsel %vm1607, %v2971, 0
    %2975 = vmatprep.subr.bf16.mxu0 0
    %2976 = vmatpush1.bf16.msra.mxu0 0
    %2977 = vmatprep.subr.bf16.mxu0 0
    %2978 = vmatpush1.bf16.msra.mxu0 0
    %2979 = vmatprep.subr.bf16.mxu0 0
    %2980 = vmatpush1.bf16.msra.mxu0 0
    %2981 = vmatprep.subr.bf16.mxu0 0
    %2982 = vmatpush1.bf16.msra.mxu0 0
    %2983 = vmatprep.subr.bf16.mxu0 0
    %2984 = vmatpush1.bf16.msra.mxu0 %v1602
    %2985 = vmatprep.subr.bf16.mxu0 0
    %2986 = vmatpush1.bf16.msra.mxu0 %v1601
    %2987 = vmatprep.subr.bf16.mxu0 0
    %2988 = vmatpush1.bf16.msra.mxu0 %v1600
    %2989 = vmatprep.subr.bf16.mxu0 0
    %2990 = vmatpush1.bf16.msra.mxu0 %v1599
    %2991 = vmatprep.subr.bf16.mxu0 0
    %2992 = vmatpush2.bf16.msra.mxu0 0
    %2993 = vmatprep.subr.bf16.mxu0 0
    %2994 = vmatpush2.bf16.msra.mxu0 0
    %2995 = vmatprep.subr.bf16.mxu0 0
    %2996 = vmatpush2.bf16.msra.mxu0 0
    %2997 = vmatprep.subr.bf16.mxu0 0
    %2998 = vmatpush2.bf16.msra.mxu0 0
    %2999 = vmatprep.subr.bf16.mxu0 0
    %3000 = vmatpush2.bf16.msra.mxu0 0
    %3001 = vmatprep.subr.bf16.mxu0 0
    %3002 = vmatpush2.bf16.msra.mxu0 0
    %3003 = vmatprep.subr.bf16.mxu0 0
    %3004 = vmatpush2.bf16.msra.mxu0 0
    %3005 = vmatprep.subr.bf16.mxu0 0
    %3006 = vmatpush2.bf16.msra.mxu0 0
    %3007 = vmatprep.mubr.bf16.mxu0 0
    %3008 = vmatmul.mubr.bf16.gmra.mxu0 %v2973
    %v3009 = vpop.f32.mrf.mxu0
    %v3010 = vadd.f32 %v134, %v3009
    %v3011 = vpop.f32.mrf.mxu0
    %v3012 = vpop.f32.mrf.mxu0
    %v3013 = vadd.f32 %v134, %v3012
    %v3014 = vpop.f32.mrf.mxu0
    %3015 = vdwg.mxu0
    %v3016 = vadd.f32 %v2922, %v3010
    %v3017 = vadd.f32 %v2923, %v3013
    %v3018 = vsel %vm154, %v3016, 0.0
    %3019 = vadd.xlane.f32.xlu0 %v3018
    %v3020 = vpop.xlane.xlu0 %3019
    %v3021 = vsel %vm154, %v3017, 0.0
    %3022 = vadd.xlane.f32.xlu0 %v3021
    %v3023 = vpop.xlane.xlu0 %3022
    %v3024 = vmul.f32 %v3020, %v839
    %v3025 = vmul.f32 %v3023, %v839
    %v3026 = vsub.f32 %v3016, %v3024
    %v3027 = vsub.f32 %v3017, %v3025
    %v3028 = vmul.f32 %v3026, %v3026
    %v3029 = vmul.f32 %v3027, %v3027
    %v3030 = vsel %vm154, %v3028, 0.0
    %3031 = vadd.xlane.f32.xlu0 %v3030
    %v3032 = vpop.xlane.xlu0 %3031
    %v3033 = vsel %vm154, %v3029, 0.0
    %3034 = vadd.xlane.f32.xlu0 %v3033
    %v3035 = vpop.xlane.xlu0 %3034
    %v3036 = vmul.f32 %v3032, %v839
    %v3037 = vmul.f32 %v3035, %v839
    %v3038 = vadd.f32 %v3036, 1e-05
    %v3039 = vadd.f32 %v3037, 1e-05
    %v3040 = vrsqrt.pop %v3038
    %v3041 = vrsqrt.pop %v3039
    %v3042 = vmul.f32 %v3026, %v3040
    %v3043 = vmul.f32 %v3027, %v3041
    %v3044 = vmul.f32 %v3042, %v137
    %v3045 = vmul.f32 %v3043, %v137
    %v3046 = vadd.f32 %v3044, %v140
    %v3047 = vadd.f32 %v3045, %v140
    %v3048 = vsel %vm154, %v3046, 0.0
    %v3049 = vsel %vm154, %v3047, 0.0
    %v3050 = vadd.f32 %v3048, %v3049
    %v3051 = vrot.slane %v3050, 4
    %v3052 = vadd.f32 %v3050, %v3051
    %v3053 = vrot.slane %v3052, 2
    %v3054 = vadd.f32 %v3052, %v3053
    %v3055 = vrot.slane %v3054, 1
    %v3056 = vadd.f32 %v3054, %v3055
    %v3057 = vrcp.pop 16.0
    %v3058 = vmul.f32 %v3056, %v3057
    %v3059 = vsub.f32 %v3046, %v3058
    %v3060 = vsub.f32 %v3047, %v3058
    %v3061 = vmul.f32 %v3059, %v3059
    %v3062 = vmul.f32 %v3060, %v3060
    %v3063 = vsel %vm154, %v3061, 0.0
    %v3064 = vsel %vm154, %v3062, 0.0
    %v3065 = vadd.f32 %v3063, %v3064
    %v3066 = vrot.slane %v3065, 4
    %v3067 = vadd.f32 %v3065, %v3066
    %v3068 = vrot.slane %v3067, 2
    %v3069 = vadd.f32 %v3067, %v3068
    %v3070 = vrot.slane %v3069, 1
    %v3071 = vadd.f32 %v3069, %v3070
    %v3072 = vmul.f32 %v3071, %v3057
    %v3073 = vadd.f32 %v3072, 1e-05
    %v3074 = vrsqrt.pop %v3073
    %v3075 = vmul.f32 %v3059, %v3074
    %v3076 = vmul.f32 %v3060, %v3074
    %3077 = vst.msk [vmem:[#allocation11] sm:$0xff] %vm154, %v3075
    %3078 = vst.msk [vmem:[#allocation11 + $0x8] sm:$0xff] %vm154, %v3076
    // Predicated region
    $region42: #{tpu_custom_call.1} parent=1 // pred_check
      _
    $region43: #{tpu_custom_call.1} parent=1 // pred_check_branch
      %3080 = sbr.rel (0) target = $region45
    $region44: #{tpu_custom_call.1} parent=1 // pred_region
      %s3082 = ssub.s32 256, 256
      %3083 = vsyncadd [#allocation4], %s3082
      %s3084 = sshll.u32 [#allocation11], 4
      %s3085 = int_to_ptr.vmem [resolvable:$true] %s3084
      %3090 = dma.vmem_to_hbm [thread:$0]  %s3085, 256, %s5, [#allocation4], 128, 128, 8
    $region45: #{tpu_custom_call.1} parent=1 // pred_fallthru
      _
    // Predicated region
    $region46: #{tpu_custom_call.1} parent=1 // pred_check
      _
    $region47: #{tpu_custom_call.1} parent=1 // pred_check_branch
      %3092 = sbr.rel (0) target = $region49
    $region48: #{tpu_custom_call.1} parent=1 // pred_region
      %3093 = dma.done [#allocation4], 256
    $region49: #{tpu_custom_call.1} parent=1 // pred_fallthru
      _
    %3094 = vsyncpa [#allocation3], 1
    %3095 = vsyncpa [#allocation6], 1
    %3096 = vsyncpa [#allocation9], 1
    %3097 = vsyncpa [#allocation4], 1

</llo_original>
